<compile_context>
chip_gen: v6e
topology: v6e:2x2x1
jax: 0.10.0
libtpu: 0.0.40
codegen_flags: <defaults>
</compile_context>

<pallas_src>
import jax
import jax.numpy as jnp
from jax.experimental import pallas as pl
from jax.experimental.pallas import tpu as pltpu

EPS = 1e-5


# ---------------------------------------------------------------------------
# Fused Pallas kernel: conv-as-GEMM (swapped orientation) + InstanceNorm + PReLU
# ---------------------------------------------------------------------------
def _conv_in_prelu_kernel(w_ref, p_ref, alpha_ref, o_ref):
    # w_ref:     [Cout, Kp]  bf16  (resident across grid steps)
    # p_ref:     [Kp, S]     bf16  (im2col patches for one sample n, channel-major)
    # alpha_ref: [1]         f32   (PReLU slope, SMEM scalar)
    # o_ref:     [Cout, S]   f32   (channel-major output for sample n)
    acc = jnp.dot(w_ref[...], p_ref[...], preferred_element_type=jnp.float32)
    # InstanceNorm (no affine): per (n, c) statistics over the full spatial extent S.
    mean = jnp.mean(acc, axis=-1, keepdims=True)
    cent = acc - mean
    var = jnp.mean(cent * cent, axis=-1, keepdims=True)      # biased, as nn.InstanceNorm3d
    y = cent * jax.lax.rsqrt(var + EPS)
    # Dropout(p=0.1) in eval mode == identity (NDA: Norm -> Dropout -> Act).
    a = alpha_ref[0]
    o_ref[...] = jnp.where(y > 0, y, a * y)


def fused_conv_block_call(w_mat, patches, alpha):
    """patches: [N, Kp, S] bf16, w_mat: [Cout, Kp] bf16 -> [N, Cout, S] f32."""
    N, Kp, S = patches.shape
    Cout = w_mat.shape[0]
    return pl.pallas_call(
        _conv_in_prelu_kernel,
        out_shape=jax.ShapeDtypeStruct((N, Cout, S), jnp.float32),
        grid=(N,),
        in_specs=[
            pl.BlockSpec((Cout, Kp), lambda n: (0, 0)),          # weights, resident
            pl.BlockSpec((None, Kp, S), lambda n: (n, 0, 0)),    # patches for sample n
            pl.BlockSpec(memory_space=pltpu.MemorySpace.SMEM),   # PReLU alpha scalar
        ],
        out_specs=pl.BlockSpec((None, Cout, S), lambda n: (n, 0, 0)),
        compiler_params=pltpu.CompilerParams(
            dimension_semantics=("parallel",),
            vmem_limit_bytes=32 * 1024 * 1024,
        ),
    )(w_mat, patches, alpha)


# ---------------------------------------------------------------------------
# JAX glue: channel-major bf16 im2col, block assembly, parameter init
# ---------------------------------------------------------------------------
def _round_up(v, m):
    return ((v + m - 1) // m) * m


def im2col_channel_major(x, stride):
    """x: [N, C, D, H, W] -> patches [N, Kp, S] bf16 with K index = (ci, kd, kh, kw)."""
    N, C, D, H, W = x.shape
    Do = (D + 2 - 3) // stride + 1
    Ho = (H + 2 - 3) // stride + 1
    Wo = (W + 2 - 3) // stride + 1
    xp = jnp.pad(x.astype(jnp.bfloat16), ((0, 0), (0, 0), (1, 1), (1, 1), (1, 1)))
    taps = []
    for kd in range(3):
        for kh in range(3):
            for kw in range(3):
                taps.append(xp[:, :,
                               kd:kd + (Do - 1) * stride + 1:stride,
                               kh:kh + (Ho - 1) * stride + 1:stride,
                               kw:kw + (Wo - 1) * stride + 1:stride])
    pat = jnp.stack(taps, axis=2)                    # [N, C, 27, Do, Ho, Wo]
    K = C * 27
    S = Do * Ho * Wo
    pat = pat.reshape(N, K, S)                       # channel-major, matches W flatten order
    Kp = _round_up(K, 16)                            # bf16 sublane-friendly contraction dim
    if Kp != K:
        pat = jnp.pad(pat, ((0, 0), (0, Kp - K), (0, 0)))
    return pat, (Do, Ho, Wo), Kp


def conv_block(x, params, stride):
    """One MONAI Convolution block, fully fused in a single Pallas kernel."""
    w, alpha = params["w"], params["alpha"]
    Cout, Cin = w.shape[0], w.shape[1]
    N = x.shape[0]
    patches, (Do, Ho, Wo), Kp = im2col_channel_major(x, stride)
    # torch weight [Cout, Cin, 3, 3, 3] -> [Cout, Cin*27] (flatten order (cin,kd,kh,kw)),
    # zero-padded along K to match the patch padding; bf16 MXU operand, f32 accumulation.
    w_mat = w.reshape(Cout, Cin * 27)
    if Kp != Cin * 27:
        w_mat = jnp.pad(w_mat, ((0, 0), (0, Kp - Cin * 27)))
    w_mat = w_mat.astype(jnp.bfloat16)
    y = fused_conv_block_call(w_mat, patches, alpha)   # [N, Cout, S] f32, channel-major
    return y.reshape(N, Cout, Do, Ho, Wo)              # free view (NCDHW), no transpose


def init_encoder_params(key, depth=5, in_channels=4):
    params = []
    strides = []
    in_c = in_channels
    out_c = in_channels
    for i in range(depth):
        stride = 2 if i < depth - 1 else 1
        key, kw = jax.random.split(key)
        fan_in = in_c * 27
        w = jax.random.normal(kw, (out_c, in_c, 3, 3, 3), jnp.float32) / jnp.sqrt(
            jnp.float32(fan_in))
        # Conv bias omitted on purpose: it is exactly cancelled by the affine-free
        # InstanceNorm that follows, so the forward output is unchanged.
        alpha = jnp.array([0.2], jnp.float32)          # PReLU, single param, init=0.2
        params.append({"w": w, "alpha": alpha})
        strides.append(stride)
        in_c = out_c
        out_c *= 2
    return params, strides


def encoder3d_forward(x, params, strides):
    skip = []
    for p, s in zip(params, strides):
        x = conv_block(x, p, s)
        skip.append(x)
    skip.pop()
    skip.reverse()
    return x, skip


# ---------------------------------------------------------------------------
if __name__ == "__main__":
    key = jax.random.PRNGKey(0)
    kx, kp = jax.random.split(key)
    # NCDHW input: batch=2, channels=4, spatial=32 (spatial path 32->16->8->4->2->2).
    N, C, SP = 2, 4, 32
    x = jax.random.normal(kx, (N, C, SP, SP, SP), jnp.float32)
    params, strides = init_encoder_params(kp, depth=5, in_channels=C)

    fwd = jax.jit(lambda xx, pp: encoder3d_forward(xx, pp, strides))
    out, skips = fwd(x, params)
    jax.block_until_ready(out)
    for s in skips:
        jax.block_until_ready(s)

    # sanity on shapes: out [2,64,2,2,2]; skips (reversed) [2,32,2..], [2,16,4..], ...
    assert out.shape == (N, 64, 2, 2, 2)
    assert [t.shape for t in skips] == [
        (N, 32, 2, 2, 2), (N, 16, 4, 4, 4), (N, 8, 8, 8, 8), (N, 4, 16, 16, 16)]
    print("KERNEL_OK")
</pallas_src>

<mosaic_0001>
module attributes {stable_mosaic.version = 11 : i64} {
  func.func @_conv_in_prelu_kernel(%arg0: i32, %arg1: memref<4x112xbf16, #tpu.memory_space<vmem>>, %arg2: memref<1x112x4096xbf16, #tpu.memory_space<vmem>>, %arg3: memref<1xf32, #tpu.memory_space<smem>>, %arg4: memref<1x4x4096xf32, #tpu.memory_space<vmem>>) attributes {dimension_semantics = [#tpu.dimension_semantics<parallel>], iteration_bounds = array<i64: 2>, scalar_prefetch = 0 : i64, scratch_operands = 0 : i64, tpu.core_type = #tpu.core_type<tc>, window_params = [{pipeline_mode = #tpu.pipeline_mode<synchronous>, transform_indices = @transform_0, window_bounds = array<i64: 4, 112>}, {transform_indices = @transform_1, window_bounds = array<i64: 1, 112, 4096>}, {transform_indices = @transform_2, window_bounds = array<i64: 1>}, {transform_indices = @transform_3, window_bounds = array<i64: 1, 4, 4096>}]} {
    %c0 = arith.constant 0 : index
    %c0_0 = arith.constant 0 : index
    %0 = vector.load %arg1[%c0, %c0_0] : memref<4x112xbf16, #tpu.memory_space<vmem>>, vector<4x112xbf16>
    %c0_1 = arith.constant 0 : index
    %c0_2 = arith.constant 0 : index
    %c0_3 = arith.constant 0 : index
    %1 = vector.load %arg2[%c0_1, %c0_2, %c0_3] : memref<1x112x4096xbf16, #tpu.memory_space<vmem>>, vector<1x112x4096xbf16>
    %2 = vector.shape_cast %1 : vector<1x112x4096xbf16> to vector<112x4096xbf16>
    %cst = arith.constant dense<0.000000e+00> : vector<4x4096xf32>
    %3 = tpu.matmul %0, %2, %cst {dimension_numbers = #tpu.dot_dimension_numbers<[1], [0], [0], [1], [0, 0, 1, 1], [], []>} : vector<4x112xbf16>, vector<112x4096xbf16>, vector<4x4096xf32> -> vector<4x4096xf32>
    %cst_4 = arith.constant dense<0.000000e+00> : vector<4xf32>
    %4 = vector.multi_reduction <add>, %3, %cst_4 [1] : vector<4x4096xf32> to vector<4xf32>
    %5 = vector.shape_cast %4 : vector<4xf32> to vector<4x1xf32>
    %cst_5 = arith.constant 4.096000e+03 : f32
    %6 = vector.broadcast %cst_5 : f32 to vector<4x1xf32>
    %7 = arith.divf %5, %6 : vector<4x1xf32>
    %8 = vector.broadcast %7 : vector<4x1xf32> to vector<4x4096xf32>
    %9 = arith.subf %3, %8 : vector<4x4096xf32>
    %10 = arith.mulf %9, %9 : vector<4x4096xf32>
    %cst_6 = arith.constant dense<0.000000e+00> : vector<4xf32>
    %11 = vector.multi_reduction <add>, %10, %cst_6 [1] : vector<4x4096xf32> to vector<4xf32>
    %12 = vector.shape_cast %11 : vector<4xf32> to vector<4x1xf32>
    %cst_7 = arith.constant 4.096000e+03 : f32
    %13 = vector.broadcast %cst_7 : f32 to vector<4x1xf32>
    %14 = arith.divf %12, %13 : vector<4x1xf32>
    %cst_8 = arith.constant 9.99999974E-6 : f32
    %15 = vector.broadcast %cst_8 : f32 to vector<4x1xf32>
    %16 = arith.addf %14, %15 : vector<4x1xf32>
    %17 = math.rsqrt %16 : vector<4x1xf32>
    %18 = vector.broadcast %17 : vector<4x1xf32> to vector<4x4096xf32>
    %19 = arith.mulf %9, %18 : vector<4x4096xf32>
    %c0_9 = arith.constant 0 : index
    %20 = memref.load %arg3[%c0_9] : memref<1xf32, #tpu.memory_space<smem>>
    %cst_10 = arith.constant 0.000000e+00 : f32
    %21 = vector.broadcast %cst_10 : f32 to vector<4x4096xf32>
    %22 = arith.cmpf ogt, %19, %21 : vector<4x4096xf32>
    %23 = vector.broadcast %20 : f32 to vector<4x4096xf32>
    %24 = arith.mulf %23, %19 : vector<4x4096xf32>
    %25 = arith.select %22, %19, %24 : vector<4x4096xi1>, vector<4x4096xf32>
    %c0_11 = arith.constant 0 : index
    %c0_12 = arith.constant 0 : index
    %c0_13 = arith.constant 0 : index
    %26 = vector.load %arg4[%c0_11, %c0_12, %c0_13] : memref<1x4x4096xf32, #tpu.memory_space<vmem>>, vector<1x4x4096xf32>
    %27 = vector.shape_cast %26 : vector<1x4x4096xf32> to vector<4x4096xf32>
    %28 = vector.shape_cast %25 : vector<4x4096xf32> to vector<1x4x4096xf32>
    tpu.vector_store %arg4[%c0_11, %c0_12, %c0_13], %28 {strides = array<i32>} : memref<1x4x4096xf32, #tpu.memory_space<vmem>>, vector<1x4x4096xf32>,
    return
  }
  func.func @transform_0(%arg0: i32) -> (i32, i32) {
    %c0_i32 = arith.constant 0 : i32
    %c0_i32_0 = arith.constant 0 : i32
    %c0_i32_1 = arith.constant 0 : i32
    return %c0_i32, %c0_i32_0 : i32, i32
  }
  func.func @transform_1(%arg0: i32) -> (i32, i32, i32) {
    %c0_i32 = arith.constant 0 : i32
    %c0_i32_0 = arith.constant 0 : i32
    %c0_i32_1 = arith.constant 0 : i32
    return %arg0, %c0_i32, %c0_i32_0 : i32, i32, i32
  }
  func.func @transform_2(%arg0: i32) -> i32 {
    %c0_i32 = arith.constant 0 : i32
    %c0_i32_0 = arith.constant 0 : i32
    return %c0_i32 : i32
  }
  func.func @transform_3(%arg0: i32) -> (i32, i32, i32) {
    %c0_i32 = arith.constant 0 : i32
    %c0_i32_0 = arith.constant 0 : i32
    %c0_i32_1 = arith.constant 0 : i32
    return %arg0, %c0_i32, %c0_i32_0 : i32, i32, i32
  }
}

module attributes {stable_mosaic.version = 11 : i64} {
  func.func @_conv_in_prelu_kernel(%arg0: i32, %arg1: memref<8x112xbf16, #tpu.memory_space<vmem>>, %arg2: memref<1x112x512xbf16, #tpu.memory_space<vmem>>, %arg3: memref<1xf32, #tpu.memory_space<smem>>, %arg4: memref<1x8x512xf32, #tpu.memory_space<vmem>>) attributes {dimension_semantics = [#tpu.dimension_semantics<parallel>], iteration_bounds = array<i64: 2>, scalar_prefetch = 0 : i64, scratch_operands = 0 : i64, tpu.core_type = #tpu.core_type<tc>, window_params = [{pipeline_mode = #tpu.pipeline_mode<synchronous>, transform_indices = @transform_0, window_bounds = array<i64: 8, 112>}, {transform_indices = @transform_1, window_bounds = array<i64: 1, 112, 512>}, {transform_indices = @transform_2, window_bounds = array<i64: 1>}, {transform_indices = @transform_3, window_bounds = array<i64: 1, 8, 512>}]} {
    %c0 = arith.constant 0 : index
    %c0_0 = arith.constant 0 : index
    %0 = vector.load %arg1[%c0, %c0_0] : memref<8x112xbf16, #tpu.memory_space<vmem>>, vector<8x112xbf16>
    %c0_1 = arith.constant 0 : index
    %c0_2 = arith.constant 0 : index
    %c0_3 = arith.constant 0 : index
    %1 = vector.load %arg2[%c0_1, %c0_2, %c0_3] : memref<1x112x512xbf16, #tpu.memory_space<vmem>>, vector<1x112x512xbf16>
    %2 = vector.shape_cast %1 : vector<1x112x512xbf16> to vector<112x512xbf16>
    %cst = arith.constant dense<0.000000e+00> : vector<8x512xf32>
    %3 = tpu.matmul %0, %2, %cst {dimension_numbers = #tpu.dot_dimension_numbers<[1], [0], [0], [1], [0, 0, 1, 1], [], []>} : vector<8x112xbf16>, vector<112x512xbf16>, vector<8x512xf32> -> vector<8x512xf32>
    %cst_4 = arith.constant dense<0.000000e+00> : vector<8xf32>
    %4 = vector.multi_reduction <add>, %3, %cst_4 [1] : vector<8x512xf32> to vector<8xf32>
    %5 = vector.shape_cast %4 : vector<8xf32> to vector<8x1xf32>
    %cst_5 = arith.constant 5.120000e+02 : f32
    %6 = vector.broadcast %cst_5 : f32 to vector<8x1xf32>
    %7 = arith.divf %5, %6 : vector<8x1xf32>
    %8 = vector.broadcast %7 : vector<8x1xf32> to vector<8x512xf32>
    %9 = arith.subf %3, %8 : vector<8x512xf32>
    %10 = arith.mulf %9, %9 : vector<8x512xf32>
    %cst_6 = arith.constant dense<0.000000e+00> : vector<8xf32>
    %11 = vector.multi_reduction <add>, %10, %cst_6 [1] : vector<8x512xf32> to vector<8xf32>
    %12 = vector.shape_cast %11 : vector<8xf32> to vector<8x1xf32>
    %cst_7 = arith.constant 5.120000e+02 : f32
    %13 = vector.broadcast %cst_7 : f32 to vector<8x1xf32>
    %14 = arith.divf %12, %13 : vector<8x1xf32>
    %cst_8 = arith.constant 9.99999974E-6 : f32
    %15 = vector.broadcast %cst_8 : f32 to vector<8x1xf32>
    %16 = arith.addf %14, %15 : vector<8x1xf32>
    %17 = math.rsqrt %16 : vector<8x1xf32>
    %18 = vector.broadcast %17 : vector<8x1xf32> to vector<8x512xf32>
    %19 = arith.mulf %9, %18 : vector<8x512xf32>
    %c0_9 = arith.constant 0 : index
    %20 = memref.load %arg3[%c0_9] : memref<1xf32, #tpu.memory_space<smem>>
    %cst_10 = arith.constant 0.000000e+00 : f32
    %21 = vector.broadcast %cst_10 : f32 to vector<8x512xf32>
    %22 = arith.cmpf ogt, %19, %21 : vector<8x512xf32>
    %23 = vector.broadcast %20 : f32 to vector<8x512xf32>
    %24 = arith.mulf %23, %19 : vector<8x512xf32>
    %25 = arith.select %22, %19, %24 : vector<8x512xi1>, vector<8x512xf32>
    %c0_11 = arith.constant 0 : index
    %c0_12 = arith.constant 0 : index
    %c0_13 = arith.constant 0 : index
    %26 = vector.load %arg4[%c0_11, %c0_12, %c0_13] : memref<1x8x512xf32, #tpu.memory_space<vmem>>, vector<1x8x512xf32>
    %27 = vector.shape_cast %26 : vector<1x8x512xf32> to vector<8x512xf32>
    %28 = vector.shape_cast %25 : vector<8x512xf32> to vector<1x8x512xf32>
    tpu.vector_store %arg4[%c0_11, %c0_12, %c0_13], %28 {strides = array<i32>} : memref<1x8x512xf32, #tpu.memory_space<vmem>>, vector<1x8x512xf32>,
    return
  }
  func.func @transform_0(%arg0: i32) -> (i32, i32) {
    %c0_i32 = arith.constant 0 : i32
    %c0_i32_0 = arith.constant 0 : i32
    %c0_i32_1 = arith.constant 0 : i32
    return %c0_i32, %c0_i32_0 : i32, i32
  }
  func.func @transform_1(%arg0: i32) -> (i32, i32, i32) {
    %c0_i32 = arith.constant 0 : i32
    %c0_i32_0 = arith.constant 0 : i32
    %c0_i32_1 = arith.constant 0 : i32
    return %arg0, %c0_i32, %c0_i32_0 : i32, i32, i32
  }
  func.func @transform_2(%arg0: i32) -> i32 {
    %c0_i32 = arith.constant 0 : i32
    %c0_i32_0 = arith.constant 0 : i32
    return %c0_i32 : i32
  }
  func.func @transform_3(%arg0: i32) -> (i32, i32, i32) {
    %c0_i32 = arith.constant 0 : i32
    %c0_i32_0 = arith.constant 0 : i32
    %c0_i32_1 = arith.constant 0 : i32
    return %arg0, %c0_i32, %c0_i32_0 : i32, i32, i32
  }
}

module attributes {stable_mosaic.version = 11 : i64} {
  func.func @_conv_in_prelu_kernel(%arg0: i32, %arg1: memref<16x224xbf16, #tpu.memory_space<vmem>>, %arg2: memref<1x224x64xbf16, #tpu.memory_space<vmem>>, %arg3: memref<1xf32, #tpu.memory_space<smem>>, %arg4: memref<1x16x64xf32, #tpu.memory_space<vmem>>) attributes {dimension_semantics = [#tpu.dimension_semantics<parallel>], iteration_bounds = array<i64: 2>, scalar_prefetch = 0 : i64, scratch_operands = 0 : i64, tpu.core_type = #tpu.core_type<tc>, window_params = [{pipeline_mode = #tpu.pipeline_mode<synchronous>, transform_indices = @transform_0, window_bounds = array<i64: 16, 224>}, {transform_indices = @transform_1, window_bounds = array<i64: 1, 224, 64>}, {transform_indices = @transform_2, window_bounds = array<i64: 1>}, {transform_indices = @transform_3, window_bounds = array<i64: 1, 16, 64>}]} {
    %c0 = arith.constant 0 : index
    %c0_0 = arith.constant 0 : index
    %0 = vector.load %arg1[%c0, %c0_0] : memref<16x224xbf16, #tpu.memory_space<vmem>>, vector<16x224xbf16>
    %c0_1 = arith.constant 0 : index
    %c0_2 = arith.constant 0 : index
    %c0_3 = arith.constant 0 : index
    %1 = vector.load %arg2[%c0_1, %c0_2, %c0_3] : memref<1x224x64xbf16, #tpu.memory_space<vmem>>, vector<1x224x64xbf16>
    %2 = vector.shape_cast %1 : vector<1x224x64xbf16> to vector<224x64xbf16>
    %cst = arith.constant dense<0.000000e+00> : vector<16x64xf32>
    %3 = tpu.matmul %0, %2, %cst {dimension_numbers = #tpu.dot_dimension_numbers<[1], [0], [0], [1], [0, 0, 1, 1], [], []>} : vector<16x224xbf16>, vector<224x64xbf16>, vector<16x64xf32> -> vector<16x64xf32>
    %cst_4 = arith.constant dense<0.000000e+00> : vector<16xf32>
    %4 = vector.multi_reduction <add>, %3, %cst_4 [1] : vector<16x64xf32> to vector<16xf32>
    %5 = vector.shape_cast %4 : vector<16xf32> to vector<16x1xf32>
    %cst_5 = arith.constant 6.400000e+01 : f32
    %6 = vector.broadcast %cst_5 : f32 to vector<16x1xf32>
    %7 = arith.divf %5, %6 : vector<16x1xf32>
    %8 = vector.broadcast %7 : vector<16x1xf32> to vector<16x64xf32>
    %9 = arith.subf %3, %8 : vector<16x64xf32>
    %10 = arith.mulf %9, %9 : vector<16x64xf32>
    %cst_6 = arith.constant dense<0.000000e+00> : vector<16xf32>
    %11 = vector.multi_reduction <add>, %10, %cst_6 [1] : vector<16x64xf32> to vector<16xf32>
    %12 = vector.shape_cast %11 : vector<16xf32> to vector<16x1xf32>
    %cst_7 = arith.constant 6.400000e+01 : f32
    %13 = vector.broadcast %cst_7 : f32 to vector<16x1xf32>
    %14 = arith.divf %12, %13 : vector<16x1xf32>
    %cst_8 = arith.constant 9.99999974E-6 : f32
    %15 = vector.broadcast %cst_8 : f32 to vector<16x1xf32>
    %16 = arith.addf %14, %15 : vector<16x1xf32>
    %17 = math.rsqrt %16 : vector<16x1xf32>
    %18 = vector.broadcast %17 : vector<16x1xf32> to vector<16x64xf32>
    %19 = arith.mulf %9, %18 : vector<16x64xf32>
    %c0_9 = arith.constant 0 : index
    %20 = memref.load %arg3[%c0_9] : memref<1xf32, #tpu.memory_space<smem>>
    %cst_10 = arith.constant 0.000000e+00 : f32
    %21 = vector.broadcast %cst_10 : f32 to vector<16x64xf32>
    %22 = arith.cmpf ogt, %19, %21 : vector<16x64xf32>
    %23 = vector.broadcast %20 : f32 to vector<16x64xf32>
    %24 = arith.mulf %23, %19 : vector<16x64xf32>
    %25 = arith.select %22, %19, %24 : vector<16x64xi1>, vector<16x64xf32>
    %c0_11 = arith.constant 0 : index
    %c0_12 = arith.constant 0 : index
    %c0_13 = arith.constant 0 : index
    %26 = vector.load %arg4[%c0_11, %c0_12, %c0_13] : memref<1x16x64xf32, #tpu.memory_space<vmem>>, vector<1x16x64xf32>
    %27 = vector.shape_cast %26 : vector<1x16x64xf32> to vector<16x64xf32>
    %28 = vector.shape_cast %25 : vector<16x64xf32> to vector<1x16x64xf32>
    tpu.vector_store %arg4[%c0_11, %c0_12, %c0_13], %28 {strides = array<i32>} : memref<1x16x64xf32, #tpu.memory_space<vmem>>, vector<1x16x64xf32>,
    return
  }
  func.func @transform_0(%arg0: i32) -> (i32, i32) {
    %c0_i32 = arith.constant 0 : i32
    %c0_i32_0 = arith.constant 0 : i32
    %c0_i32_1 = arith.constant 0 : i32
    return %c0_i32, %c0_i32_0 : i32, i32
  }
  func.func @transform_1(%arg0: i32) -> (i32, i32, i32) {
    %c0_i32 = arith.constant 0 : i32
    %c0_i32_0 = arith.constant 0 : i32
    %c0_i32_1 = arith.constant 0 : i32
    return %arg0, %c0_i32, %c0_i32_0 : i32, i32, i32
  }
  func.func @transform_2(%arg0: i32) -> i32 {
    %c0_i32 = arith.constant 0 : i32
    %c0_i32_0 = arith.constant 0 : i32
    return %c0_i32 : i32
  }
  func.func @transform_3(%arg0: i32) -> (i32, i32, i32) {
    %c0_i32 = arith.constant 0 : i32
    %c0_i32_0 = arith.constant 0 : i32
    %c0_i32_1 = arith.constant 0 : i32
    return %arg0, %c0_i32, %c0_i32_0 : i32, i32, i32
  }
}

module attributes {stable_mosaic.version = 11 : i64} {
  func.func @_conv_in_prelu_kernel(%arg0: i32, %arg1: memref<32x432xbf16, #tpu.memory_space<vmem>>, %arg2: memref<1x432x8xbf16, #tpu.memory_space<vmem>>, %arg3: memref<1xf32, #tpu.memory_space<smem>>, %arg4: memref<1x32x8xf32, #tpu.memory_space<vmem>>) attributes {dimension_semantics = [#tpu.dimension_semantics<parallel>], iteration_bounds = array<i64: 2>, scalar_prefetch = 0 : i64, scratch_operands = 0 : i64, tpu.core_type = #tpu.core_type<tc>, window_params = [{pipeline_mode = #tpu.pipeline_mode<synchronous>, transform_indices = @transform_0, window_bounds = array<i64: 32, 432>}, {transform_indices = @transform_1, window_bounds = array<i64: 1, 432, 8>}, {transform_indices = @transform_2, window_bounds = array<i64: 1>}, {transform_indices = @transform_3, window_bounds = array<i64: 1, 32, 8>}]} {
    %c0 = arith.constant 0 : index
    %c0_0 = arith.constant 0 : index
    %0 = vector.load %arg1[%c0, %c0_0] : memref<32x432xbf16, #tpu.memory_space<vmem>>, vector<32x432xbf16>
    %c0_1 = arith.constant 0 : index
    %c0_2 = arith.constant 0 : index
    %c0_3 = arith.constant 0 : index
    %1 = vector.load %arg2[%c0_1, %c0_2, %c0_3] : memref<1x432x8xbf16, #tpu.memory_space<vmem>>, vector<1x432x8xbf16>
    %2 = vector.shape_cast %1 : vector<1x432x8xbf16> to vector<432x8xbf16>
    %cst = arith.constant dense<0.000000e+00> : vector<32x8xf32>
    %3 = tpu.matmul %0, %2, %cst {dimension_numbers = #tpu.dot_dimension_numbers<[1], [0], [0], [1], [0, 0, 1, 1], [], []>} : vector<32x432xbf16>, vector<432x8xbf16>, vector<32x8xf32> -> vector<32x8xf32>
    %cst_4 = arith.constant dense<0.000000e+00> : vector<32xf32>
    %4 = vector.multi_reduction <add>, %3, %cst_4 [1] : vector<32x8xf32> to vector<32xf32>
    %5 = vector.shape_cast %4 : vector<32xf32> to vector<32x1xf32>
    %cst_5 = arith.constant 8.000000e+00 : f32
    %6 = vector.broadcast %cst_5 : f32 to vector<32x1xf32>
    %7 = arith.divf %5, %6 : vector<32x1xf32>
    %8 = vector.broadcast %7 : vector<32x1xf32> to vector<32x8xf32>
    %9 = arith.subf %3, %8 : vector<32x8xf32>
    %10 = arith.mulf %9, %9 : vector<32x8xf32>
    %cst_6 = arith.constant dense<0.000000e+00> : vector<32xf32>
    %11 = vector.multi_reduction <add>, %10, %cst_6 [1] : vector<32x8xf32> to vector<32xf32>
    %12 = vector.shape_cast %11 : vector<32xf32> to vector<32x1xf32>
    %cst_7 = arith.constant 8.000000e+00 : f32
    %13 = vector.broadcast %cst_7 : f32 to vector<32x1xf32>
    %14 = arith.divf %12, %13 : vector<32x1xf32>
    %cst_8 = arith.constant 9.99999974E-6 : f32
    %15 = vector.broadcast %cst_8 : f32 to vector<32x1xf32>
    %16 = arith.addf %14, %15 : vector<32x1xf32>
    %17 = math.rsqrt %16 : vector<32x1xf32>
    %18 = vector.broadcast %17 : vector<32x1xf32> to vector<32x8xf32>
    %19 = arith.mulf %9, %18 : vector<32x8xf32>
    %c0_9 = arith.constant 0 : index
    %20 = memref.load %arg3[%c0_9] : memref<1xf32, #tpu.memory_space<smem>>
    %cst_10 = arith.constant 0.000000e+00 : f32
    %21 = vector.broadcast %cst_10 : f32 to vector<32x8xf32>
    %22 = arith.cmpf ogt, %19, %21 : vector<32x8xf32>
    %23 = vector.broadcast %20 : f32 to vector<32x8xf32>
    %24 = arith.mulf %23, %19 : vector<32x8xf32>
    %25 = arith.select %22, %19, %24 : vector<32x8xi1>, vector<32x8xf32>
    %c0_11 = arith.constant 0 : index
    %c0_12 = arith.constant 0 : index
    %c0_13 = arith.constant 0 : index
    %26 = vector.load %arg4[%c0_11, %c0_12, %c0_13] : memref<1x32x8xf32, #tpu.memory_space<vmem>>, vector<1x32x8xf32>
    %27 = vector.shape_cast %26 : vector<1x32x8xf32> to vector<32x8xf32>
    %28 = vector.shape_cast %25 : vector<32x8xf32> to vector<1x32x8xf32>
    tpu.vector_store %arg4[%c0_11, %c0_12, %c0_13], %28 {strides = array<i32>} : memref<1x32x8xf32, #tpu.memory_space<vmem>>, vector<1x32x8xf32>,
    return
  }
  func.func @transform_0(%arg0: i32) -> (i32, i32) {
    %c0_i32 = arith.constant 0 : i32
    %c0_i32_0 = arith.constant 0 : i32
    %c0_i32_1 = arith.constant 0 : i32
    return %c0_i32, %c0_i32_0 : i32, i32
  }
  func.func @transform_1(%arg0: i32) -> (i32, i32, i32) {
    %c0_i32 = arith.constant 0 : i32
    %c0_i32_0 = arith.constant 0 : i32
    %c0_i32_1 = arith.constant 0 : i32
    return %arg0, %c0_i32, %c0_i32_0 : i32, i32, i32
  }
  func.func @transform_2(%arg0: i32) -> i32 {
    %c0_i32 = arith.constant 0 : i32
    %c0_i32_0 = arith.constant 0 : i32
    return %c0_i32 : i32
  }
  func.func @transform_3(%arg0: i32) -> (i32, i32, i32) {
    %c0_i32 = arith.constant 0 : i32
    %c0_i32_0 = arith.constant 0 : i32
    %c0_i32_1 = arith.constant 0 : i32
    return %arg0, %c0_i32, %c0_i32_0 : i32, i32, i32
  }
}

module attributes {stable_mosaic.version = 11 : i64} {
  func.func @_conv_in_prelu_kernel(%arg0: i32, %arg1: memref<64x864xbf16, #tpu.memory_space<vmem>>, %arg2: memref<1x864x8xbf16, #tpu.memory_space<vmem>>, %arg3: memref<1xf32, #tpu.memory_space<smem>>, %arg4: memref<1x64x8xf32, #tpu.memory_space<vmem>>) attributes {dimension_semantics = [#tpu.dimension_semantics<parallel>], iteration_bounds = array<i64: 2>, scalar_prefetch = 0 : i64, scratch_operands = 0 : i64, tpu.core_type = #tpu.core_type<tc>, window_params = [{pipeline_mode = #tpu.pipeline_mode<synchronous>, transform_indices = @transform_0, window_bounds = array<i64: 64, 864>}, {transform_indices = @transform_1, window_bounds = array<i64: 1, 864, 8>}, {transform_indices = @transform_2, window_bounds = array<i64: 1>}, {transform_indices = @transform_3, window_bounds = array<i64: 1, 64, 8>}]} {
    %c0 = arith.constant 0 : index
    %c0_0 = arith.constant 0 : index
    %0 = vector.load %arg1[%c0, %c0_0] : memref<64x864xbf16, #tpu.memory_space<vmem>>, vector<64x864xbf16>
    %c0_1 = arith.constant 0 : index
    %c0_2 = arith.constant 0 : index
    %c0_3 = arith.constant 0 : index
    %1 = vector.load %arg2[%c0_1, %c0_2, %c0_3] : memref<1x864x8xbf16, #tpu.memory_space<vmem>>, vector<1x864x8xbf16>
    %2 = vector.shape_cast %1 : vector<1x864x8xbf16> to vector<864x8xbf16>
    %cst = arith.constant dense<0.000000e+00> : vector<64x8xf32>
    %3 = tpu.matmul %0, %2, %cst {dimension_numbers = #tpu.dot_dimension_numbers<[1], [0], [0], [1], [0, 0, 1, 1], [], []>} : vector<64x864xbf16>, vector<864x8xbf16>, vector<64x8xf32> -> vector<64x8xf32>
    %cst_4 = arith.constant dense<0.000000e+00> : vector<64xf32>
    %4 = vector.multi_reduction <add>, %3, %cst_4 [1] : vector<64x8xf32> to vector<64xf32>
    %5 = vector.shape_cast %4 : vector<64xf32> to vector<64x1xf32>
    %cst_5 = arith.constant 8.000000e+00 : f32
    %6 = vector.broadcast %cst_5 : f32 to vector<64x1xf32>
    %7 = arith.divf %5, %6 : vector<64x1xf32>
    %8 = vector.broadcast %7 : vector<64x1xf32> to vector<64x8xf32>
    %9 = arith.subf %3, %8 : vector<64x8xf32>
    %10 = arith.mulf %9, %9 : vector<64x8xf32>
    %cst_6 = arith.constant dense<0.000000e+00> : vector<64xf32>
    %11 = vector.multi_reduction <add>, %10, %cst_6 [1] : vector<64x8xf32> to vector<64xf32>
    %12 = vector.shape_cast %11 : vector<64xf32> to vector<64x1xf32>
    %cst_7 = arith.constant 8.000000e+00 : f32
    %13 = vector.broadcast %cst_7 : f32 to vector<64x1xf32>
    %14 = arith.divf %12, %13 : vector<64x1xf32>
    %cst_8 = arith.constant 9.99999974E-6 : f32
    %15 = vector.broadcast %cst_8 : f32 to vector<64x1xf32>
    %16 = arith.addf %14, %15 : vector<64x1xf32>
    %17 = math.rsqrt %16 : vector<64x1xf32>
    %18 = vector.broadcast %17 : vector<64x1xf32> to vector<64x8xf32>
    %19 = arith.mulf %9, %18 : vector<64x8xf32>
    %c0_9 = arith.constant 0 : index
    %20 = memref.load %arg3[%c0_9] : memref<1xf32, #tpu.memory_space<smem>>
    %cst_10 = arith.constant 0.000000e+00 : f32
    %21 = vector.broadcast %cst_10 : f32 to vector<64x8xf32>
    %22 = arith.cmpf ogt, %19, %21 : vector<64x8xf32>
    %23 = vector.broadcast %20 : f32 to vector<64x8xf32>
    %24 = arith.mulf %23, %19 : vector<64x8xf32>
    %25 = arith.select %22, %19, %24 : vector<64x8xi1>, vector<64x8xf32>
    %c0_11 = arith.constant 0 : index
    %c0_12 = arith.constant 0 : index
    %c0_13 = arith.constant 0 : index
    %26 = vector.load %arg4[%c0_11, %c0_12, %c0_13] : memref<1x64x8xf32, #tpu.memory_space<vmem>>, vector<1x64x8xf32>
    %27 = vector.shape_cast %26 : vector<1x64x8xf32> to vector<64x8xf32>
    %28 = vector.shape_cast %25 : vector<64x8xf32> to vector<1x64x8xf32>
    tpu.vector_store %arg4[%c0_11, %c0_12, %c0_13], %28 {strides = array<i32>} : memref<1x64x8xf32, #tpu.memory_space<vmem>>, vector<1x64x8xf32>,
    return
  }
  func.func @transform_0(%arg0: i32) -> (i32, i32) {
    %c0_i32 = arith.constant 0 : i32
    %c0_i32_0 = arith.constant 0 : i32
    %c0_i32_1 = arith.constant 0 : i32
    return %c0_i32, %c0_i32_0 : i32, i32
  }
  func.func @transform_1(%arg0: i32) -> (i32, i32, i32) {
    %c0_i32 = arith.constant 0 : i32
    %c0_i32_0 = arith.constant 0 : i32
    %c0_i32_1 = arith.constant 0 : i32
    return %arg0, %c0_i32, %c0_i32_0 : i32, i32, i32
  }
  func.func @transform_2(%arg0: i32) -> i32 {
    %c0_i32 = arith.constant 0 : i32
    %c0_i32_0 = arith.constant 0 : i32
    return %c0_i32 : i32
  }
  func.func @transform_3(%arg0: i32) -> (i32, i32, i32) {
    %c0_i32 = arith.constant 0 : i32
    %c0_i32_0 = arith.constant 0 : i32
    %c0_i32_1 = arith.constant 0 : i32
    return %arg0, %c0_i32, %c0_i32_0 : i32, i32, i32
  }
}

</mosaic_0001>

<llo_original>
// kernel: _lambda_.5
$region0: #{_lambda_.5}
  #allocation0 [shape = 'u32[]', space=smem, size = 0x4, offset = 0x4, fixed_abs, tag = 'smem constant byte address 0x4 - core index']
  #allocation1 [shape = 'u32[144,128]{1,0:T(1,128)}', space=vmem, size = 0x12000, scoped, tag = 'internal scratch']
  #allocation2 [shape = 'f32[1]{0:T(128)S(6)}', space=smem, size = 0x200, scoped, tag = 'scoped memory for _lambda_.5']
  %s0 = inlined_call_operand.vmem [shape: bf16[4,112], index: 0, kind: input, shape index: {}]
  %s1 = inlined_call_operand.vmem [shape: bf16[2,112,4096], index: 1, kind: input, shape index: {}]
  %s2 = inlined_call_operand.<no memory space> [shape: f32[1], index: 2, kind: input, shape index: {}]
  %s3 = inlined_call_operand.vmem [shape: f32[2,4,4096], index: 3, kind: output, shape index: {}]
  %s4 = sld [smem:[#allocation0]]
  $region45: #{_lambda_.5} parent=0
    _
  %s6 = ssub.s32 1, %s4
  %s7 = scalar_select 0, %s6, %s4
  %8 = sst [smem:[#allocation2]] %s2
  loop: start=0, step=1, limit=4
  $region2: #{_lambda_.5} parent=0 // loop_pre_header
    _
  $region3: #{_lambda_.5} parent=0 // loop_header
    %s10 = sphi 0, %s14
    %p11 = scmp.ge.s32.totalorder %s10, 4
    %s18 = sphi 0, %s18
    %s20 = sphi 0, %s18
    %s21 = sphi 0, %s20
    %s35 = sphi 0, %s21
    %s41 = sphi 0, %s43
    %s44 = sphi 0, %s41
    %s45 = sphi 0, %s44
    %s61 = sphi 0, %s45
    %s65 = sphi 0, %s65
    %s67 = sphi 0, %s65
    %s68 = sphi 0, %s67
    %s82 = sphi 0, %s68
    %s88 = sphi 0, %s90
    %s91 = sphi 0, %s88
    %s92 = sphi 0, %s91
    %s108 = sphi 0, %s92
  $region4: #{_lambda_.5} parent=0 // loop_header_branch
    %13 = sbr.rel (%p11) target = $region8
  $region5: #{_lambda_.5} parent=0 // loop_body
    %s15 = ssub.s32 %s10, 1
    %s16 = ssub.s32 %s10, 2
    %s17 = sadd.s32 %s10, 1
    %s19 = sadd.s32 %s18, 1
    %p22 = scmp.eq.s32.totalorder %s10, 1
    %p23 = scmp.ne.s32.totalorder %s18, %s20
    %p24 = scmp.eq.s32.totalorder %s10, 0
    %p25 = por %p23, %p24
    %p26 = scmp.ne.s32.totalorder %s18, %s20
    %p27 = scmp.eq.s32.totalorder %s15, 1
    %p28 = por %p26, %p27
    %p29 = scmp.ne.s32.totalorder %s20, %s21
    %p30 = scmp.eq.s32.totalorder %s15, 0
    %p31 = por %p29, %p30
    %p32 = scmp.ne.s32.totalorder %s20, %s21
    %p33 = scmp.eq.s32.totalorder %s16, 1
    %p34 = por %p32, %p33
    %p36 = scmp.ne.s32.totalorder %s21, %s35
    %p37 = scmp.eq.s32.totalorder %s16, 0
    %p38 = por %p36, %p37
    %s39 = ssub.s32 %s10, %s17
    %p40 = scmp.eq.s32.totalorder %s39, 0
    %s42 = sadd.s32 %s41, 1
    %s43 = scalar_select %p40, %s41, %s42
    %p46 = pneg %p40
    %p47 = scmp.eq.s32.totalorder %s10, 1
    %p48 = por %p46, %p47
    %p49 = scmp.ne.s32.totalorder %s41, %s44
    %p50 = scmp.eq.s32.totalorder %s10, 0
    %p51 = por %p49, %p50
    %p52 = scmp.ne.s32.totalorder %s41, %s44
    %p53 = scmp.eq.s32.totalorder %s15, 1
    %p54 = por %p52, %p53
    %p55 = scmp.ne.s32.totalorder %s44, %s45
    %p56 = scmp.eq.s32.totalorder %s15, 0
    %p57 = por %p55, %p56
    %p58 = scmp.ne.s32.totalorder %s44, %s45
    %p59 = scmp.eq.s32.totalorder %s16, 1
    %p60 = por %p58, %p59
    %p62 = scmp.ne.s32.totalorder %s45, %s61
    %p63 = scmp.eq.s32.totalorder %s16, 0
    %p64 = por %p62, %p63
    %s66 = sadd.s32 %s65, 1
    %p69 = scmp.eq.s32.totalorder %s10, 1
    %p70 = scmp.ne.s32.totalorder %s65, %s67
    %p71 = scmp.eq.s32.totalorder %s10, 0
    %p72 = por %p70, %p71
    %p73 = scmp.ne.s32.totalorder %s65, %s67
    %p74 = scmp.eq.s32.totalorder %s15, 1
    %p75 = por %p73, %p74
    %p76 = scmp.ne.s32.totalorder %s67, %s68
    %p77 = scmp.eq.s32.totalorder %s15, 0
    %p78 = por %p76, %p77
    %p79 = scmp.ne.s32.totalorder %s67, %s68
    %p80 = scmp.eq.s32.totalorder %s16, 1
    %p81 = por %p79, %p80
    %p83 = scmp.ne.s32.totalorder %s68, %s82
    %p84 = scmp.eq.s32.totalorder %s16, 0
    %p85 = por %p83, %p84
    %s86 = ssub.s32 %s10, %s17
    %p87 = scmp.eq.s32.totalorder %s86, 0
    %s89 = sadd.s32 %s88, 1
    %s90 = scalar_select %p87, %s88, %s89
    %p93 = pneg %p87
    %p94 = scmp.eq.s32.totalorder %s10, 1
    %p95 = por %p93, %p94
    %p96 = scmp.ne.s32.totalorder %s88, %s91
    %p97 = scmp.eq.s32.totalorder %s10, 0
    %p98 = por %p96, %p97
    %p99 = scmp.ne.s32.totalorder %s88, %s91
    %p100 = scmp.eq.s32.totalorder %s15, 1
    %p101 = por %p99, %p100
    %p102 = scmp.ne.s32.totalorder %s91, %s92
    %p103 = scmp.eq.s32.totalorder %s15, 0
    %p104 = por %p102, %p103
    %p105 = scmp.ne.s32.totalorder %s91, %s92
    %p106 = scmp.eq.s32.totalorder %s16, 1
    %p107 = por %p105, %p106
    %p109 = scmp.ne.s32.totalorder %s92, %s108
    %p110 = scmp.eq.s32.totalorder %s16, 0
    %p111 = por %p109, %p110
    %p112 = scmp.le.s32.totalorder 1, %s10
    %p113 = scmp.lt.s32.totalorder %s10, 3
    %p114 = pnand %p112, %p113
    %p115 = pneg %p114
    // Predicated region
    $region9: #{_lambda_.5} parent=5 // pred_check
      _
    $region10: #{_lambda_.5} parent=5 // pred_check_branch
      %117 = sbr.rel (%p114) target = $region12
    $region11: #{_lambda_.5} parent=5 // pred_region
      %s118 = ssub.s32 %s10, 1
      // Predicated region
      $region13: #{_lambda_.5} parent=11 // pred_check
        %p119 = pneg %p31
      $region14: #{_lambda_.5} parent=11 // pred_check_branch
        %121 = sbr.rel (%p119) target = $region16
      $region15: #{_lambda_.5} parent=11 // pred_region
        _
      $region16: #{_lambda_.5} parent=11 // pred_fallthru
        _
      // Predicated region
      $region17: #{_lambda_.5} parent=11 // pred_check
        %p122 = pneg %p78
      $region18: #{_lambda_.5} parent=11 // pred_check_branch
        %124 = sbr.rel (%p122) target = $region20
      $region19: #{_lambda_.5} parent=11 // pred_region
        _
      $region20: #{_lambda_.5} parent=11 // pred_fallthru
        _
    $region12: #{_lambda_.5} parent=5 // pred_fallthru
      _
    %p125 = scmp.lt.s32.totalorder %s10, 2
    // Predicated region
    $region21: #{_lambda_.5} parent=5 // pred_check
      %p126 = pneg %p125
    $region22: #{_lambda_.5} parent=5 // pred_check_branch
      %128 = sbr.rel (%p126) target = $region24
    $region23: #{_lambda_.5} parent=5 // pred_region
      // Predicated region
      $region25: #{_lambda_.5} parent=23 // pred_check
        %p129 = pneg %p51
      $region26: #{_lambda_.5} parent=23 // pred_check_branch
        %131 = sbr.rel (%p129) target = $region28
      $region27: #{_lambda_.5} parent=23 // pred_region
        %p132 = scmp.lt.s32.totalorder %s10, 1
        %s133 = scalar_select %p132, %s10, 1
        %s134 = smul.addr %s133, 448
        %s135 = smul.addr %s134, 4
        %s136 = scalar_lea.vmem %s1, %s135
      $region28: #{_lambda_.5} parent=23 // pred_fallthru
        _
    $region24: #{_lambda_.5} parent=5 // pred_fallthru
      _
    %p137 = scmp.le.s32.totalorder 1, %s10
    %p138 = scmp.lt.s32.totalorder %s10, 3
    %p139 = pnand %p137, %p138
    %p140 = pneg %p139
    // Predicated region
    $region29: #{_lambda_.5} parent=5 // pred_check
      _
    $region30: #{_lambda_.5} parent=5 // pred_check_branch
      %142 = sbr.rel (%p139) target = $region32
    $region31: #{_lambda_.5} parent=5 // pred_region
      %s143 = ssub.s32 %s10, 1
      %p144 = pneg %p31
      %p145 = pneg %p28
      %p146 = scmp.lt.s32.totalorder %s15, 1
      %s147 = scalar_select %p146, %s15, 1
      %s148 = smul.addr %s147, 448
      %s149 = smul.addr %s148, 4
      %s150 = scalar_lea.vmem %s1, %s149
      %p151 = pneg %p57
      %p152 = pneg %p54
      %p153 = pneg %p78
      %p154 = pneg %p75
      %p155 = pneg %p104
      %p156 = pneg %p101
      %p157 = scmp.lt.s32.totalorder %s15, 1
      %s158 = scalar_select %p157, %s15, 1
      %s159 = smul.addr %s158, 32
      %s160 = smul.addr %s159, 4
      %s161 = scalar_lea.vmem %s3, %s160
      %p162 = scmp.lt.s32.totalorder %s15, 1
      %s163 = scalar_select %p162, %s15, 1
      %s164 = smul.addr %s163, 448
      %s165 = smul.addr %s164, 4
      %s166 = scalar_lea.vmem %s1, %s165
      %p167 = scmp.lt.s32.totalorder %s15, 1
      %s168 = scalar_select %p167, %s15, 1
      %s169 = smul.addr %s168, 32
      %s170 = smul.addr %s169, 4
      %s171 = scalar_lea.vmem %s3, %s170
      %v173 = vld [vmem:[%s0] sm:$0x3]
      %v174 = vld [vmem:[%s166] sm:$0xff]
      %v175 = vld [vmem:[%s166 + $0x8] sm:$0xff]
      %v176 = vld [vmem:[%s166 + $0x10] sm:$0xff]
      %v177 = vld [vmem:[%s166 + $0x18] sm:$0xff]
      %v178 = vld [vmem:[%s166 + $0x20] sm:$0xff]
      %v179 = vld [vmem:[%s166 + $0x28] sm:$0xff]
      %v180 = vld [vmem:[%s166 + $0x30] sm:$0xff]
      %v181 = vld [vmem:[%s166 + $0x38] sm:$0xff]
      %v182 = vld [vmem:[%s166 + $0x40] sm:$0xff]
      %v183 = vld [vmem:[%s166 + $0x48] sm:$0xff]
      %v184 = vld [vmem:[%s166 + $0x50] sm:$0xff]
      %v185 = vld [vmem:[%s166 + $0x58] sm:$0xff]
      %v186 = vld [vmem:[%s166 + $0x60] sm:$0xff]
      %v187 = vld [vmem:[%s166 + $0x68] sm:$0xff]
      %v188 = vld [vmem:[%s166 + $0x70] sm:$0xff]
      %v189 = vld [vmem:[%s166 + $0x78] sm:$0xff]
      %v190 = vld [vmem:[%s166 + $0x80] sm:$0xff]
      %v191 = vld [vmem:[%s166 + $0x88] sm:$0xff]
      %v192 = vld [vmem:[%s166 + $0x90] sm:$0xff]
      %v193 = vld [vmem:[%s166 + $0x98] sm:$0xff]
      %v194 = vld [vmem:[%s166 + $0xa0] sm:$0xff]
      %v195 = vld [vmem:[%s166 + $0xa8] sm:$0xff]
      %v196 = vld [vmem:[%s166 + $0xb0] sm:$0xff]
      %v197 = vld [vmem:[%s166 + $0xb8] sm:$0xff]
      %v198 = vld [vmem:[%s166 + $0xc0] sm:$0xff]
      %v199 = vld [vmem:[%s166 + $0xc8] sm:$0xff]
      %v200 = vld [vmem:[%s166 + $0xd0] sm:$0xff]
      %v201 = vld [vmem:[%s166 + $0xd8] sm:$0xff]
      %v202 = vld [vmem:[%s166 + $0xe0] sm:$0xff]
      %v203 = vld [vmem:[%s166 + $0xe8] sm:$0xff]
      %v204 = vld [vmem:[%s166 + $0xf0] sm:$0xff]
      %v205 = vld [vmem:[%s166 + $0xf8] sm:$0xff]
      %v206 = vld [vmem:[%s166 + $0x100] sm:$0xff]
      %v207 = vld [vmem:[%s166 + $0x108] sm:$0xff]
      %v208 = vld [vmem:[%s166 + $0x110] sm:$0xff]
      %v209 = vld [vmem:[%s166 + $0x118] sm:$0xff]
      %v210 = vld [vmem:[%s166 + $0x120] sm:$0xff]
      %v211 = vld [vmem:[%s166 + $0x128] sm:$0xff]
      %v212 = vld [vmem:[%s166 + $0x130] sm:$0xff]
      %v213 = vld [vmem:[%s166 + $0x138] sm:$0xff]
      %v214 = vld [vmem:[%s166 + $0x140] sm:$0xff]
      %v215 = vld [vmem:[%s166 + $0x148] sm:$0xff]
      %v216 = vld [vmem:[%s166 + $0x150] sm:$0xff]
      %v217 = vld [vmem:[%s166 + $0x158] sm:$0xff]
      %v218 = vld [vmem:[%s166 + $0x160] sm:$0xff]
      %v219 = vld [vmem:[%s166 + $0x168] sm:$0xff]
      %v220 = vld [vmem:[%s166 + $0x170] sm:$0xff]
      %v221 = vld [vmem:[%s166 + $0x178] sm:$0xff]
      %v222 = vld [vmem:[%s166 + $0x180] sm:$0xff]
      %v223 = vld [vmem:[%s166 + $0x188] sm:$0xff]
      %v224 = vld [vmem:[%s166 + $0x190] sm:$0xff]
      %v225 = vld [vmem:[%s166 + $0x198] sm:$0xff]
      %v226 = vld [vmem:[%s166 + $0x1a0] sm:$0xff]
      %v227 = vld [vmem:[%s166 + $0x1a8] sm:$0xff]
      %v228 = vld [vmem:[%s166 + $0x1b0] sm:$0xff]
      %v229 = vld [vmem:[%s166 + $0x1b8] sm:$0xff]
      %v230 = vld [vmem:[%s166 + $0x1c0] sm:$0xff]
      %v231 = vld [vmem:[%s166 + $0x1c8] sm:$0xff]
      %v232 = vld [vmem:[%s166 + $0x1d0] sm:$0xff]
      %v233 = vld [vmem:[%s166 + $0x1d8] sm:$0xff]
      %v234 = vld [vmem:[%s166 + $0x1e0] sm:$0xff]
      %v235 = vld [vmem:[%s166 + $0x1e8] sm:$0xff]
      %v236 = vld [vmem:[%s166 + $0x1f0] sm:$0xff]
      %v237 = vld [vmem:[%s166 + $0x1f8] sm:$0xff]
      %v238 = vld [vmem:[%s166 + $0x200] sm:$0xff]
      %v239 = vld [vmem:[%s166 + $0x208] sm:$0xff]
      %v240 = vld [vmem:[%s166 + $0x210] sm:$0xff]
      %v241 = vld [vmem:[%s166 + $0x218] sm:$0xff]
      %v242 = vld [vmem:[%s166 + $0x220] sm:$0xff]
      %v243 = vld [vmem:[%s166 + $0x228] sm:$0xff]
      %v244 = vld [vmem:[%s166 + $0x230] sm:$0xff]
      %v245 = vld [vmem:[%s166 + $0x238] sm:$0xff]
      %v246 = vld [vmem:[%s166 + $0x240] sm:$0xff]
      %v247 = vld [vmem:[%s166 + $0x248] sm:$0xff]
      %v248 = vld [vmem:[%s166 + $0x250] sm:$0xff]
      %v249 = vld [vmem:[%s166 + $0x258] sm:$0xff]
      %v250 = vld [vmem:[%s166 + $0x260] sm:$0xff]
      %v251 = vld [vmem:[%s166 + $0x268] sm:$0xff]
      %v252 = vld [vmem:[%s166 + $0x270] sm:$0xff]
      %v253 = vld [vmem:[%s166 + $0x278] sm:$0xff]
      %v254 = vld [vmem:[%s166 + $0x280] sm:$0xff]
      %v255 = vld [vmem:[%s166 + $0x288] sm:$0xff]
      %v256 = vld [vmem:[%s166 + $0x290] sm:$0xff]
      %v257 = vld [vmem:[%s166 + $0x298] sm:$0xff]
      %v258 = vld [vmem:[%s166 + $0x2a0] sm:$0xff]
      %v259 = vld [vmem:[%s166 + $0x2a8] sm:$0xff]
      %v260 = vld [vmem:[%s166 + $0x2b0] sm:$0xff]
      %v261 = vld [vmem:[%s166 + $0x2b8] sm:$0xff]
      %v262 = vld [vmem:[%s166 + $0x2c0] sm:$0xff]
      %v263 = vld [vmem:[%s166 + $0x2c8] sm:$0xff]
      %v264 = vld [vmem:[%s166 + $0x2d0] sm:$0xff]
      %v265 = vld [vmem:[%s166 + $0x2d8] sm:$0xff]
      %v266 = vld [vmem:[%s166 + $0x2e0] sm:$0xff]
      %v267 = vld [vmem:[%s166 + $0x2e8] sm:$0xff]
      %v268 = vld [vmem:[%s166 + $0x2f0] sm:$0xff]
      %v269 = vld [vmem:[%s166 + $0x2f8] sm:$0xff]
      %v270 = vld [vmem:[%s166 + $0x300] sm:$0xff]
      %v271 = vld [vmem:[%s166 + $0x308] sm:$0xff]
      %v272 = vld [vmem:[%s166 + $0x310] sm:$0xff]
      %v273 = vld [vmem:[%s166 + $0x318] sm:$0xff]
      %v274 = vld [vmem:[%s166 + $0x320] sm:$0xff]
      %v275 = vld [vmem:[%s166 + $0x328] sm:$0xff]
      %v276 = vld [vmem:[%s166 + $0x330] sm:$0xff]
      %v277 = vld [vmem:[%s166 + $0x338] sm:$0xff]
      %v278 = vld [vmem:[%s166 + $0x340] sm:$0xff]
      %v279 = vld [vmem:[%s166 + $0x348] sm:$0xff]
      %v280 = vld [vmem:[%s166 + $0x350] sm:$0xff]
      %v281 = vld [vmem:[%s166 + $0x358] sm:$0xff]
      %v282 = vld [vmem:[%s166 + $0x360] sm:$0xff]
      %v283 = vld [vmem:[%s166 + $0x368] sm:$0xff]
      %v284 = vld [vmem:[%s166 + $0x370] sm:$0xff]
      %v285 = vld [vmem:[%s166 + $0x378] sm:$0xff]
      %v286 = vld [vmem:[%s166 + $0x380] sm:$0xff]
      %v287 = vld [vmem:[%s166 + $0x388] sm:$0xff]
      %v288 = vld [vmem:[%s166 + $0x390] sm:$0xff]
      %v289 = vld [vmem:[%s166 + $0x398] sm:$0xff]
      %v290 = vld [vmem:[%s166 + $0x3a0] sm:$0xff]
      %v291 = vld [vmem:[%s166 + $0x3a8] sm:$0xff]
      %v292 = vld [vmem:[%s166 + $0x3b0] sm:$0xff]
      %v293 = vld [vmem:[%s166 + $0x3b8] sm:$0xff]
      %v294 = vld [vmem:[%s166 + $0x3c0] sm:$0xff]
      %v295 = vld [vmem:[%s166 + $0x3c8] sm:$0xff]
      %v296 = vld [vmem:[%s166 + $0x3d0] sm:$0xff]
      %v297 = vld [vmem:[%s166 + $0x3d8] sm:$0xff]
      %v298 = vld [vmem:[%s166 + $0x3e0] sm:$0xff]
      %v299 = vld [vmem:[%s166 + $0x3e8] sm:$0xff]
      %v300 = vld [vmem:[%s166 + $0x3f0] sm:$0xff]
      %v301 = vld [vmem:[%s166 + $0x3f8] sm:$0xff]
      %v302 = vld [vmem:[%s166 + $0x400] sm:$0xff]
      %v303 = vld [vmem:[%s166 + $0x408] sm:$0xff]
      %v304 = vld [vmem:[%s166 + $0x410] sm:$0xff]
      %v305 = vld [vmem:[%s166 + $0x418] sm:$0xff]
      %v306 = vld [vmem:[%s166 + $0x420] sm:$0xff]
      %v307 = vld [vmem:[%s166 + $0x428] sm:$0xff]
      %v308 = vld [vmem:[%s166 + $0x430] sm:$0xff]
      %v309 = vld [vmem:[%s166 + $0x438] sm:$0xff]
      %v310 = vld [vmem:[%s166 + $0x440] sm:$0xff]
      %v311 = vld [vmem:[%s166 + $0x448] sm:$0xff]
      %v312 = vld [vmem:[%s166 + $0x450] sm:$0xff]
      %v313 = vld [vmem:[%s166 + $0x458] sm:$0xff]
      %v314 = vld [vmem:[%s166 + $0x460] sm:$0xff]
      %v315 = vld [vmem:[%s166 + $0x468] sm:$0xff]
      %v316 = vld [vmem:[%s166 + $0x470] sm:$0xff]
      %v317 = vld [vmem:[%s166 + $0x478] sm:$0xff]
      %v318 = vld [vmem:[%s166 + $0x480] sm:$0xff]
      %v319 = vld [vmem:[%s166 + $0x488] sm:$0xff]
      %v320 = vld [vmem:[%s166 + $0x490] sm:$0xff]
      %v321 = vld [vmem:[%s166 + $0x498] sm:$0xff]
      %v322 = vld [vmem:[%s166 + $0x4a0] sm:$0xff]
      %v323 = vld [vmem:[%s166 + $0x4a8] sm:$0xff]
      %v324 = vld [vmem:[%s166 + $0x4b0] sm:$0xff]
      %v325 = vld [vmem:[%s166 + $0x4b8] sm:$0xff]
      %v326 = vld [vmem:[%s166 + $0x4c0] sm:$0xff]
      %v327 = vld [vmem:[%s166 + $0x4c8] sm:$0xff]
      %v328 = vld [vmem:[%s166 + $0x4d0] sm:$0xff]
      %v329 = vld [vmem:[%s166 + $0x4d8] sm:$0xff]
      %v330 = vld [vmem:[%s166 + $0x4e0] sm:$0xff]
      %v331 = vld [vmem:[%s166 + $0x4e8] sm:$0xff]
      %v332 = vld [vmem:[%s166 + $0x4f0] sm:$0xff]
      %v333 = vld [vmem:[%s166 + $0x4f8] sm:$0xff]
      %v334 = vld [vmem:[%s166 + $0x500] sm:$0xff]
      %v335 = vld [vmem:[%s166 + $0x508] sm:$0xff]
      %v336 = vld [vmem:[%s166 + $0x510] sm:$0xff]
      %v337 = vld [vmem:[%s166 + $0x518] sm:$0xff]
      %v338 = vld [vmem:[%s166 + $0x520] sm:$0xff]
      %v339 = vld [vmem:[%s166 + $0x528] sm:$0xff]
      %v340 = vld [vmem:[%s166 + $0x530] sm:$0xff]
      %v341 = vld [vmem:[%s166 + $0x538] sm:$0xff]
      %v342 = vld [vmem:[%s166 + $0x540] sm:$0xff]
      %v343 = vld [vmem:[%s166 + $0x548] sm:$0xff]
      %v344 = vld [vmem:[%s166 + $0x550] sm:$0xff]
      %v345 = vld [vmem:[%s166 + $0x558] sm:$0xff]
      %v346 = vld [vmem:[%s166 + $0x560] sm:$0xff]
      %v347 = vld [vmem:[%s166 + $0x568] sm:$0xff]
      %v348 = vld [vmem:[%s166 + $0x570] sm:$0xff]
      %v349 = vld [vmem:[%s166 + $0x578] sm:$0xff]
      %v350 = vld [vmem:[%s166 + $0x580] sm:$0xff]
      %v351 = vld [vmem:[%s166 + $0x588] sm:$0xff]
      %v352 = vld [vmem:[%s166 + $0x590] sm:$0xff]
      %v353 = vld [vmem:[%s166 + $0x598] sm:$0xff]
      %v354 = vld [vmem:[%s166 + $0x5a0] sm:$0xff]
      %v355 = vld [vmem:[%s166 + $0x5a8] sm:$0xff]
      %v356 = vld [vmem:[%s166 + $0x5b0] sm:$0xff]
      %v357 = vld [vmem:[%s166 + $0x5b8] sm:$0xff]
      %v358 = vld [vmem:[%s166 + $0x5c0] sm:$0xff]
      %v359 = vld [vmem:[%s166 + $0x5c8] sm:$0xff]
      %v360 = vld [vmem:[%s166 + $0x5d0] sm:$0xff]
      %v361 = vld [vmem:[%s166 + $0x5d8] sm:$0xff]
      %v362 = vld [vmem:[%s166 + $0x5e0] sm:$0xff]
      %v363 = vld [vmem:[%s166 + $0x5e8] sm:$0xff]
      %v364 = vld [vmem:[%s166 + $0x5f0] sm:$0xff]
      %v365 = vld [vmem:[%s166 + $0x5f8] sm:$0xff]
      %v366 = vld [vmem:[%s166 + $0x600] sm:$0xff]
      %v367 = vld [vmem:[%s166 + $0x608] sm:$0xff]
      %v368 = vld [vmem:[%s166 + $0x610] sm:$0xff]
      %v369 = vld [vmem:[%s166 + $0x618] sm:$0xff]
      %v370 = vld [vmem:[%s166 + $0x620] sm:$0xff]
      %v371 = vld [vmem:[%s166 + $0x628] sm:$0xff]
      %v372 = vld [vmem:[%s166 + $0x630] sm:$0xff]
      %v373 = vld [vmem:[%s166 + $0x638] sm:$0xff]
      %v374 = vld [vmem:[%s166 + $0x640] sm:$0xff]
      %v375 = vld [vmem:[%s166 + $0x648] sm:$0xff]
      %v376 = vld [vmem:[%s166 + $0x650] sm:$0xff]
      %v377 = vld [vmem:[%s166 + $0x658] sm:$0xff]
      %v378 = vld [vmem:[%s166 + $0x660] sm:$0xff]
      %v379 = vld [vmem:[%s166 + $0x668] sm:$0xff]
      %v380 = vld [vmem:[%s166 + $0x670] sm:$0xff]
      %v381 = vld [vmem:[%s166 + $0x678] sm:$0xff]
      %v382 = vld [vmem:[%s166 + $0x680] sm:$0xff]
      %v383 = vld [vmem:[%s166 + $0x688] sm:$0xff]
      %v384 = vld [vmem:[%s166 + $0x690] sm:$0xff]
      %v385 = vld [vmem:[%s166 + $0x698] sm:$0xff]
      %v386 = vld [vmem:[%s166 + $0x6a0] sm:$0xff]
      %v387 = vld [vmem:[%s166 + $0x6a8] sm:$0xff]
      %v388 = vld [vmem:[%s166 + $0x6b0] sm:$0xff]
      %v389 = vld [vmem:[%s166 + $0x6b8] sm:$0xff]
      %v390 = vld [vmem:[%s166 + $0x6c0] sm:$0xff]
      %v391 = vld [vmem:[%s166 + $0x6c8] sm:$0xff]
      %v392 = vld [vmem:[%s166 + $0x6d0] sm:$0xff]
      %v393 = vld [vmem:[%s166 + $0x6d8] sm:$0xff]
      %v394 = vld [vmem:[%s166 + $0x6e0] sm:$0xff]
      %v395 = vld [vmem:[%s166 + $0x6e8] sm:$0xff]
      %v396 = vld [vmem:[%s166 + $0x6f0] sm:$0xff]
      %v397 = vld [vmem:[%s166 + $0x6f8] sm:$0xff]
      %v622 = vunpack.c.l.b16 %v174
      %v623 = vunpack.c.h.b16 %v174
      %v624 = vunpack.c.l.b16 %v175
      %v625 = vunpack.c.h.b16 %v175
      %v626 = vunpack.c.l.b16 %v176
      %v627 = vunpack.c.h.b16 %v176
      %v628 = vunpack.c.l.b16 %v177
      %v629 = vunpack.c.h.b16 %v177
      %v630 = vunpack.c.l.b16 %v178
      %v631 = vunpack.c.h.b16 %v178
      %v632 = vunpack.c.l.b16 %v179
      %v633 = vunpack.c.h.b16 %v179
      %v634 = vunpack.c.l.b16 %v180
      %v635 = vunpack.c.h.b16 %v180
      %v636 = vunpack.c.l.b16 %v181
      %v637 = vunpack.c.h.b16 %v181
      %v638 = vunpack.c.l.b16 %v182
      %v639 = vunpack.c.h.b16 %v182
      %v640 = vunpack.c.l.b16 %v183
      %v641 = vunpack.c.h.b16 %v183
      %v642 = vunpack.c.l.b16 %v184
      %v643 = vunpack.c.h.b16 %v184
      %v644 = vunpack.c.l.b16 %v185
      %v645 = vunpack.c.h.b16 %v185
      %v646 = vunpack.c.l.b16 %v186
      %v647 = vunpack.c.h.b16 %v186
      %v648 = vunpack.c.l.b16 %v187
      %v649 = vunpack.c.h.b16 %v187
      %v650 = vunpack.c.l.b16 %v188
      %v651 = vunpack.c.h.b16 %v188
      %v652 = vunpack.c.l.b16 %v189
      %v653 = vunpack.c.h.b16 %v189
      %v654 = vunpack.c.l.b16 %v190
      %v655 = vunpack.c.h.b16 %v190
      %v656 = vunpack.c.l.b16 %v191
      %v657 = vunpack.c.h.b16 %v191
      %v658 = vunpack.c.l.b16 %v192
      %v659 = vunpack.c.h.b16 %v192
      %v660 = vunpack.c.l.b16 %v193
      %v661 = vunpack.c.h.b16 %v193
      %v662 = vunpack.c.l.b16 %v194
      %v663 = vunpack.c.h.b16 %v194
      %v664 = vunpack.c.l.b16 %v195
      %v665 = vunpack.c.h.b16 %v195
      %v666 = vunpack.c.l.b16 %v196
      %v667 = vunpack.c.h.b16 %v196
      %v668 = vunpack.c.l.b16 %v197
      %v669 = vunpack.c.h.b16 %v197
      %v670 = vunpack.c.l.b16 %v198
      %v671 = vunpack.c.h.b16 %v198
      %v672 = vunpack.c.l.b16 %v199
      %v673 = vunpack.c.h.b16 %v199
      %v674 = vunpack.c.l.b16 %v200
      %v675 = vunpack.c.h.b16 %v200
      %v676 = vunpack.c.l.b16 %v201
      %v677 = vunpack.c.h.b16 %v201
      %v678 = vunpack.c.l.b16 %v202
      %v679 = vunpack.c.h.b16 %v202
      %v680 = vunpack.c.l.b16 %v203
      %v681 = vunpack.c.h.b16 %v203
      %v682 = vunpack.c.l.b16 %v204
      %v683 = vunpack.c.h.b16 %v204
      %v684 = vunpack.c.l.b16 %v205
      %v685 = vunpack.c.h.b16 %v205
      %v686 = vunpack.c.l.b16 %v206
      %v687 = vunpack.c.h.b16 %v206
      %v688 = vunpack.c.l.b16 %v207
      %v689 = vunpack.c.h.b16 %v207
      %v690 = vunpack.c.l.b16 %v208
      %v691 = vunpack.c.h.b16 %v208
      %v692 = vunpack.c.l.b16 %v209
      %v693 = vunpack.c.h.b16 %v209
      %v694 = vunpack.c.l.b16 %v210
      %v695 = vunpack.c.h.b16 %v210
      %v696 = vunpack.c.l.b16 %v211
      %v697 = vunpack.c.h.b16 %v211
      %v698 = vunpack.c.l.b16 %v212
      %v699 = vunpack.c.h.b16 %v212
      %v700 = vunpack.c.l.b16 %v213
      %v701 = vunpack.c.h.b16 %v213
      %v702 = vunpack.c.l.b16 %v214
      %v703 = vunpack.c.h.b16 %v214
      %v704 = vunpack.c.l.b16 %v215
      %v705 = vunpack.c.h.b16 %v215
      %v706 = vunpack.c.l.b16 %v216
      %v707 = vunpack.c.h.b16 %v216
      %v708 = vunpack.c.l.b16 %v217
      %v709 = vunpack.c.h.b16 %v217
      %v710 = vunpack.c.l.b16 %v218
      %v711 = vunpack.c.h.b16 %v218
      %v712 = vunpack.c.l.b16 %v219
      %v713 = vunpack.c.h.b16 %v219
      %v714 = vunpack.c.l.b16 %v220
      %v715 = vunpack.c.h.b16 %v220
      %v716 = vunpack.c.l.b16 %v221
      %v717 = vunpack.c.h.b16 %v221
      %v718 = vunpack.c.l.b16 %v222
      %v719 = vunpack.c.h.b16 %v222
      %v720 = vunpack.c.l.b16 %v223
      %v721 = vunpack.c.h.b16 %v223
      %v722 = vunpack.c.l.b16 %v224
      %v723 = vunpack.c.h.b16 %v224
      %v724 = vunpack.c.l.b16 %v225
      %v725 = vunpack.c.h.b16 %v225
      %v726 = vunpack.c.l.b16 %v226
      %v727 = vunpack.c.h.b16 %v226
      %v728 = vunpack.c.l.b16 %v227
      %v729 = vunpack.c.h.b16 %v227
      %v730 = vunpack.c.l.b16 %v228
      %v731 = vunpack.c.h.b16 %v228
      %v732 = vunpack.c.l.b16 %v229
      %v733 = vunpack.c.h.b16 %v229
      %v734 = vunpack.c.l.b16 %v230
      %v735 = vunpack.c.h.b16 %v230
      %v736 = vunpack.c.l.b16 %v231
      %v737 = vunpack.c.h.b16 %v231
      %v738 = vunpack.c.l.b16 %v232
      %v739 = vunpack.c.h.b16 %v232
      %v740 = vunpack.c.l.b16 %v233
      %v741 = vunpack.c.h.b16 %v233
      %v742 = vunpack.c.l.b16 %v234
      %v743 = vunpack.c.h.b16 %v234
      %v744 = vunpack.c.l.b16 %v235
      %v745 = vunpack.c.h.b16 %v235
      %v746 = vunpack.c.l.b16 %v236
      %v747 = vunpack.c.h.b16 %v236
      %v748 = vunpack.c.l.b16 %v237
      %v749 = vunpack.c.h.b16 %v237
      %v750 = vunpack.c.l.b16 %v238
      %v751 = vunpack.c.h.b16 %v238
      %v752 = vunpack.c.l.b16 %v239
      %v753 = vunpack.c.h.b16 %v239
      %v754 = vunpack.c.l.b16 %v240
      %v755 = vunpack.c.h.b16 %v240
      %v756 = vunpack.c.l.b16 %v241
      %v757 = vunpack.c.h.b16 %v241
      %v758 = vunpack.c.l.b16 %v242
      %v759 = vunpack.c.h.b16 %v242
      %v760 = vunpack.c.l.b16 %v243
      %v761 = vunpack.c.h.b16 %v243
      %v762 = vunpack.c.l.b16 %v244
      %v763 = vunpack.c.h.b16 %v244
      %v764 = vunpack.c.l.b16 %v245
      %v765 = vunpack.c.h.b16 %v245
      %v766 = vunpack.c.l.b16 %v246
      %v767 = vunpack.c.h.b16 %v246
      %v768 = vunpack.c.l.b16 %v247
      %v769 = vunpack.c.h.b16 %v247
      %v770 = vunpack.c.l.b16 %v248
      %v771 = vunpack.c.h.b16 %v248
      %v772 = vunpack.c.l.b16 %v249
      %v773 = vunpack.c.h.b16 %v249
      %v774 = vunpack.c.l.b16 %v250
      %v775 = vunpack.c.h.b16 %v250
      %v776 = vunpack.c.l.b16 %v251
      %v777 = vunpack.c.h.b16 %v251
      %v778 = vunpack.c.l.b16 %v252
      %v779 = vunpack.c.h.b16 %v252
      %v780 = vunpack.c.l.b16 %v253
      %v781 = vunpack.c.h.b16 %v253
      %v782 = vunpack.c.l.b16 %v254
      %v783 = vunpack.c.h.b16 %v254
      %v784 = vunpack.c.l.b16 %v255
      %v785 = vunpack.c.h.b16 %v255
      %v786 = vunpack.c.l.b16 %v256
      %v787 = vunpack.c.h.b16 %v256
      %v788 = vunpack.c.l.b16 %v257
      %v789 = vunpack.c.h.b16 %v257
      %v790 = vunpack.c.l.b16 %v258
      %v791 = vunpack.c.h.b16 %v258
      %v792 = vunpack.c.l.b16 %v259
      %v793 = vunpack.c.h.b16 %v259
      %v794 = vunpack.c.l.b16 %v260
      %v795 = vunpack.c.h.b16 %v260
      %v796 = vunpack.c.l.b16 %v261
      %v797 = vunpack.c.h.b16 %v261
      %v798 = vunpack.c.l.b16 %v262
      %v799 = vunpack.c.h.b16 %v262
      %v800 = vunpack.c.l.b16 %v263
      %v801 = vunpack.c.h.b16 %v263
      %v802 = vunpack.c.l.b16 %v264
      %v803 = vunpack.c.h.b16 %v264
      %v804 = vunpack.c.l.b16 %v265
      %v805 = vunpack.c.h.b16 %v265
      %v806 = vunpack.c.l.b16 %v266
      %v807 = vunpack.c.h.b16 %v266
      %v808 = vunpack.c.l.b16 %v267
      %v809 = vunpack.c.h.b16 %v267
      %v810 = vunpack.c.l.b16 %v268
      %v811 = vunpack.c.h.b16 %v268
      %v812 = vunpack.c.l.b16 %v269
      %v813 = vunpack.c.h.b16 %v269
      %v814 = vunpack.c.l.b16 %v270
      %v815 = vunpack.c.h.b16 %v270
      %v816 = vunpack.c.l.b16 %v271
      %v817 = vunpack.c.h.b16 %v271
      %v818 = vunpack.c.l.b16 %v272
      %v819 = vunpack.c.h.b16 %v272
      %v820 = vunpack.c.l.b16 %v273
      %v821 = vunpack.c.h.b16 %v273
      %v822 = vunpack.c.l.b16 %v274
      %v823 = vunpack.c.h.b16 %v274
      %v824 = vunpack.c.l.b16 %v275
      %v825 = vunpack.c.h.b16 %v275
      %v826 = vunpack.c.l.b16 %v276
      %v827 = vunpack.c.h.b16 %v276
      %v828 = vunpack.c.l.b16 %v277
      %v829 = vunpack.c.h.b16 %v277
      %v830 = vunpack.c.l.b16 %v278
      %v831 = vunpack.c.h.b16 %v278
      %v832 = vunpack.c.l.b16 %v279
      %v833 = vunpack.c.h.b16 %v279
      %v834 = vunpack.c.l.b16 %v280
      %v835 = vunpack.c.h.b16 %v280
      %v836 = vunpack.c.l.b16 %v281
      %v837 = vunpack.c.h.b16 %v281
      %v838 = vunpack.c.l.b16 %v282
      %v839 = vunpack.c.h.b16 %v282
      %v840 = vunpack.c.l.b16 %v283
      %v841 = vunpack.c.h.b16 %v283
      %v842 = vunpack.c.l.b16 %v284
      %v843 = vunpack.c.h.b16 %v284
      %v844 = vunpack.c.l.b16 %v285
      %v845 = vunpack.c.h.b16 %v285
      %v846 = vunpack.c.l.b16 %v286
      %v847 = vunpack.c.h.b16 %v286
      %v848 = vunpack.c.l.b16 %v287
      %v849 = vunpack.c.h.b16 %v287
      %v850 = vunpack.c.l.b16 %v288
      %v851 = vunpack.c.h.b16 %v288
      %v852 = vunpack.c.l.b16 %v289
      %v853 = vunpack.c.h.b16 %v289
      %v854 = vunpack.c.l.b16 %v290
      %v855 = vunpack.c.h.b16 %v290
      %v856 = vunpack.c.l.b16 %v291
      %v857 = vunpack.c.h.b16 %v291
      %v858 = vunpack.c.l.b16 %v292
      %v859 = vunpack.c.h.b16 %v292
      %v860 = vunpack.c.l.b16 %v293
      %v861 = vunpack.c.h.b16 %v293
      %v862 = vunpack.c.l.b16 %v294
      %v863 = vunpack.c.h.b16 %v294
      %v864 = vunpack.c.l.b16 %v295
      %v865 = vunpack.c.h.b16 %v295
      %v866 = vunpack.c.l.b16 %v296
      %v867 = vunpack.c.h.b16 %v296
      %v868 = vunpack.c.l.b16 %v297
      %v869 = vunpack.c.h.b16 %v297
      %v870 = vunpack.c.l.b16 %v298
      %v871 = vunpack.c.h.b16 %v298
      %v872 = vunpack.c.l.b16 %v299
      %v873 = vunpack.c.h.b16 %v299
      %v874 = vunpack.c.l.b16 %v300
      %v875 = vunpack.c.h.b16 %v300
      %v876 = vunpack.c.l.b16 %v301
      %v877 = vunpack.c.h.b16 %v301
      %v878 = vunpack.c.l.b16 %v302
      %v879 = vunpack.c.h.b16 %v302
      %v880 = vunpack.c.l.b16 %v303
      %v881 = vunpack.c.h.b16 %v303
      %v882 = vunpack.c.l.b16 %v304
      %v883 = vunpack.c.h.b16 %v304
      %v884 = vunpack.c.l.b16 %v305
      %v885 = vunpack.c.h.b16 %v305
      %v886 = vunpack.c.l.b16 %v306
      %v887 = vunpack.c.h.b16 %v306
      %v888 = vunpack.c.l.b16 %v307
      %v889 = vunpack.c.h.b16 %v307
      %v890 = vunpack.c.l.b16 %v308
      %v891 = vunpack.c.h.b16 %v308
      %v892 = vunpack.c.l.b16 %v309
      %v893 = vunpack.c.h.b16 %v309
      %v894 = vunpack.c.l.b16 %v310
      %v895 = vunpack.c.h.b16 %v310
      %v896 = vunpack.c.l.b16 %v311
      %v897 = vunpack.c.h.b16 %v311
      %v898 = vunpack.c.l.b16 %v312
      %v899 = vunpack.c.h.b16 %v312
      %v900 = vunpack.c.l.b16 %v313
      %v901 = vunpack.c.h.b16 %v313
      %v902 = vunpack.c.l.b16 %v314
      %v903 = vunpack.c.h.b16 %v314
      %v904 = vunpack.c.l.b16 %v315
      %v905 = vunpack.c.h.b16 %v315
      %v906 = vunpack.c.l.b16 %v316
      %v907 = vunpack.c.h.b16 %v316
      %v908 = vunpack.c.l.b16 %v317
      %v909 = vunpack.c.h.b16 %v317
      %v910 = vunpack.c.l.b16 %v318
      %v911 = vunpack.c.h.b16 %v318
      %v912 = vunpack.c.l.b16 %v319
      %v913 = vunpack.c.h.b16 %v319
      %v914 = vunpack.c.l.b16 %v320
      %v915 = vunpack.c.h.b16 %v320
      %v916 = vunpack.c.l.b16 %v321
      %v917 = vunpack.c.h.b16 %v321
      %v918 = vunpack.c.l.b16 %v322
      %v919 = vunpack.c.h.b16 %v322
      %v920 = vunpack.c.l.b16 %v323
      %v921 = vunpack.c.h.b16 %v323
      %v922 = vunpack.c.l.b16 %v324
      %v923 = vunpack.c.h.b16 %v324
      %v924 = vunpack.c.l.b16 %v325
      %v925 = vunpack.c.h.b16 %v325
      %v926 = vunpack.c.l.b16 %v326
      %v927 = vunpack.c.h.b16 %v326
      %v928 = vunpack.c.l.b16 %v327
      %v929 = vunpack.c.h.b16 %v327
      %v930 = vunpack.c.l.b16 %v328
      %v931 = vunpack.c.h.b16 %v328
      %v932 = vunpack.c.l.b16 %v329
      %v933 = vunpack.c.h.b16 %v329
      %v934 = vunpack.c.l.b16 %v330
      %v935 = vunpack.c.h.b16 %v330
      %v936 = vunpack.c.l.b16 %v331
      %v937 = vunpack.c.h.b16 %v331
      %v938 = vunpack.c.l.b16 %v332
      %v939 = vunpack.c.h.b16 %v332
      %v940 = vunpack.c.l.b16 %v333
      %v941 = vunpack.c.h.b16 %v333
      %v942 = vunpack.c.l.b16 %v334
      %v943 = vunpack.c.h.b16 %v334
      %v944 = vunpack.c.l.b16 %v335
      %v945 = vunpack.c.h.b16 %v335
      %v946 = vunpack.c.l.b16 %v336
      %v947 = vunpack.c.h.b16 %v336
      %v948 = vunpack.c.l.b16 %v337
      %v949 = vunpack.c.h.b16 %v337
      %v950 = vunpack.c.l.b16 %v338
      %v951 = vunpack.c.h.b16 %v338
      %v952 = vunpack.c.l.b16 %v339
      %v953 = vunpack.c.h.b16 %v339
      %v954 = vunpack.c.l.b16 %v340
      %v955 = vunpack.c.h.b16 %v340
      %v956 = vunpack.c.l.b16 %v341
      %v957 = vunpack.c.h.b16 %v341
      %v958 = vunpack.c.l.b16 %v342
      %v959 = vunpack.c.h.b16 %v342
      %v960 = vunpack.c.l.b16 %v343
      %v961 = vunpack.c.h.b16 %v343
      %v962 = vunpack.c.l.b16 %v344
      %v963 = vunpack.c.h.b16 %v344
      %v964 = vunpack.c.l.b16 %v345
      %v965 = vunpack.c.h.b16 %v345
      %v966 = vunpack.c.l.b16 %v346
      %v967 = vunpack.c.h.b16 %v346
      %v968 = vunpack.c.l.b16 %v347
      %v969 = vunpack.c.h.b16 %v347
      %v970 = vunpack.c.l.b16 %v348
      %v971 = vunpack.c.h.b16 %v348
      %v972 = vunpack.c.l.b16 %v349
      %v973 = vunpack.c.h.b16 %v349
      %v974 = vunpack.c.l.b16 %v350
      %v975 = vunpack.c.h.b16 %v350
      %v976 = vunpack.c.l.b16 %v351
      %v977 = vunpack.c.h.b16 %v351
      %v978 = vunpack.c.l.b16 %v352
      %v979 = vunpack.c.h.b16 %v352
      %v980 = vunpack.c.l.b16 %v353
      %v981 = vunpack.c.h.b16 %v353
      %v982 = vunpack.c.l.b16 %v354
      %v983 = vunpack.c.h.b16 %v354
      %v984 = vunpack.c.l.b16 %v355
      %v985 = vunpack.c.h.b16 %v355
      %v986 = vunpack.c.l.b16 %v356
      %v987 = vunpack.c.h.b16 %v356
      %v988 = vunpack.c.l.b16 %v357
      %v989 = vunpack.c.h.b16 %v357
      %v990 = vunpack.c.l.b16 %v358
      %v991 = vunpack.c.h.b16 %v358
      %v992 = vunpack.c.l.b16 %v359
      %v993 = vunpack.c.h.b16 %v359
      %v994 = vunpack.c.l.b16 %v360
      %v995 = vunpack.c.h.b16 %v360
      %v996 = vunpack.c.l.b16 %v361
      %v997 = vunpack.c.h.b16 %v361
      %v998 = vunpack.c.l.b16 %v362
      %v999 = vunpack.c.h.b16 %v362
      %v1000 = vunpack.c.l.b16 %v363
      %v1001 = vunpack.c.h.b16 %v363
      %v1002 = vunpack.c.l.b16 %v364
      %v1003 = vunpack.c.h.b16 %v364
      %v1004 = vunpack.c.l.b16 %v365
      %v1005 = vunpack.c.h.b16 %v365
      %v1006 = vunpack.c.l.b16 %v366
      %v1007 = vunpack.c.h.b16 %v366
      %v1008 = vunpack.c.l.b16 %v367
      %v1009 = vunpack.c.h.b16 %v367
      %v1010 = vunpack.c.l.b16 %v368
      %v1011 = vunpack.c.h.b16 %v368
      %v1012 = vunpack.c.l.b16 %v369
      %v1013 = vunpack.c.h.b16 %v369
      %v1014 = vunpack.c.l.b16 %v370
      %v1015 = vunpack.c.h.b16 %v370
      %v1016 = vunpack.c.l.b16 %v371
      %v1017 = vunpack.c.h.b16 %v371
      %v1018 = vunpack.c.l.b16 %v372
      %v1019 = vunpack.c.h.b16 %v372
      %v1020 = vunpack.c.l.b16 %v373
      %v1021 = vunpack.c.h.b16 %v373
      %v1022 = vunpack.c.l.b16 %v374
      %v1023 = vunpack.c.h.b16 %v374
      %v1024 = vunpack.c.l.b16 %v375
      %v1025 = vunpack.c.h.b16 %v375
      %v1026 = vunpack.c.l.b16 %v376
      %v1027 = vunpack.c.h.b16 %v376
      %v1028 = vunpack.c.l.b16 %v377
      %v1029 = vunpack.c.h.b16 %v377
      %v1030 = vunpack.c.l.b16 %v378
      %v1031 = vunpack.c.h.b16 %v378
      %v1032 = vunpack.c.l.b16 %v379
      %v1033 = vunpack.c.h.b16 %v379
      %v1034 = vunpack.c.l.b16 %v380
      %v1035 = vunpack.c.h.b16 %v380
      %v1036 = vunpack.c.l.b16 %v381
      %v1037 = vunpack.c.h.b16 %v381
      %v1038 = vunpack.c.l.b16 %v382
      %v1039 = vunpack.c.h.b16 %v382
      %v1040 = vunpack.c.l.b16 %v383
      %v1041 = vunpack.c.h.b16 %v383
      %v1042 = vunpack.c.l.b16 %v384
      %v1043 = vunpack.c.h.b16 %v384
      %v1044 = vunpack.c.l.b16 %v385
      %v1045 = vunpack.c.h.b16 %v385
      %v1046 = vunpack.c.l.b16 %v386
      %v1047 = vunpack.c.h.b16 %v386
      %v1048 = vunpack.c.l.b16 %v387
      %v1049 = vunpack.c.h.b16 %v387
      %v1050 = vunpack.c.l.b16 %v388
      %v1051 = vunpack.c.h.b16 %v388
      %v1052 = vunpack.c.l.b16 %v389
      %v1053 = vunpack.c.h.b16 %v389
      %v1054 = vunpack.c.l.b16 %v390
      %v1055 = vunpack.c.h.b16 %v390
      %v1056 = vunpack.c.l.b16 %v391
      %v1057 = vunpack.c.h.b16 %v391
      %v1058 = vunpack.c.l.b16 %v392
      %v1059 = vunpack.c.h.b16 %v392
      %v1060 = vunpack.c.l.b16 %v393
      %v1061 = vunpack.c.h.b16 %v393
      %v1062 = vunpack.c.l.b16 %v394
      %v1063 = vunpack.c.h.b16 %v394
      %v1064 = vunpack.c.l.b16 %v395
      %v1065 = vunpack.c.h.b16 %v395
      %v1066 = vunpack.c.l.b16 %v396
      %v1067 = vunpack.c.h.b16 %v396
      %v1068 = vunpack.c.l.b16 %v397
      %v1069 = vunpack.c.h.b16 %v397
      %v1070 = vpack.c.b16 %v654, %v622
      %v1071 = vpack.c.b16 %v655, %v623
      %v1072 = vpack.c.b16 %v656, %v624
      %v1073 = vpack.c.b16 %v657, %v625
      %v1074 = vpack.c.b16 %v658, %v626
      %v1075 = vpack.c.b16 %v659, %v627
      %v1076 = vpack.c.b16 %v660, %v628
      %v1077 = vpack.c.b16 %v661, %v629
      %v1078 = vpack.c.b16 %v662, %v630
      %v1079 = vpack.c.b16 %v663, %v631
      %v1080 = vpack.c.b16 %v664, %v632
      %v1081 = vpack.c.b16 %v665, %v633
      %v1082 = vpack.c.b16 %v666, %v634
      %v1083 = vpack.c.b16 %v667, %v635
      %v1084 = vpack.c.b16 %v668, %v636
      %v1085 = vpack.c.b16 %v669, %v637
      %v1086 = vpack.c.b16 %v670, %v638
      %v1087 = vpack.c.b16 %v671, %v639
      %v1088 = vpack.c.b16 %v672, %v640
      %v1089 = vpack.c.b16 %v673, %v641
      %v1090 = vpack.c.b16 %v674, %v642
      %v1091 = vpack.c.b16 %v675, %v643
      %v1092 = vpack.c.b16 %v676, %v644
      %v1093 = vpack.c.b16 %v677, %v645
      %v1094 = vpack.c.b16 %v678, %v646
      %v1095 = vpack.c.b16 %v679, %v647
      %v1096 = vpack.c.b16 %v680, %v648
      %v1097 = vpack.c.b16 %v681, %v649
      %v1098 = vpack.c.b16 %v682, %v650
      %v1099 = vpack.c.b16 %v683, %v651
      %v1100 = vpack.c.b16 %v684, %v652
      %v1101 = vpack.c.b16 %v685, %v653
      %v1102 = vpack.c.b16 %v718, %v686
      %v1103 = vpack.c.b16 %v719, %v687
      %v1104 = vpack.c.b16 %v720, %v688
      %v1105 = vpack.c.b16 %v721, %v689
      %v1106 = vpack.c.b16 %v722, %v690
      %v1107 = vpack.c.b16 %v723, %v691
      %v1108 = vpack.c.b16 %v724, %v692
      %v1109 = vpack.c.b16 %v725, %v693
      %v1110 = vpack.c.b16 %v726, %v694
      %v1111 = vpack.c.b16 %v727, %v695
      %v1112 = vpack.c.b16 %v728, %v696
      %v1113 = vpack.c.b16 %v729, %v697
      %v1114 = vpack.c.b16 %v730, %v698
      %v1115 = vpack.c.b16 %v731, %v699
      %v1116 = vpack.c.b16 %v732, %v700
      %v1117 = vpack.c.b16 %v733, %v701
      %v1118 = vpack.c.b16 %v734, %v702
      %v1119 = vpack.c.b16 %v735, %v703
      %v1120 = vpack.c.b16 %v736, %v704
      %v1121 = vpack.c.b16 %v737, %v705
      %v1122 = vpack.c.b16 %v738, %v706
      %v1123 = vpack.c.b16 %v739, %v707
      %v1124 = vpack.c.b16 %v740, %v708
      %v1125 = vpack.c.b16 %v741, %v709
      %v1126 = vpack.c.b16 %v742, %v710
      %v1127 = vpack.c.b16 %v743, %v711
      %v1128 = vpack.c.b16 %v744, %v712
      %v1129 = vpack.c.b16 %v745, %v713
      %v1130 = vpack.c.b16 %v746, %v714
      %v1131 = vpack.c.b16 %v747, %v715
      %v1132 = vpack.c.b16 %v748, %v716
      %v1133 = vpack.c.b16 %v749, %v717
      %v1134 = vpack.c.b16 %v782, %v750
      %v1135 = vpack.c.b16 %v783, %v751
      %v1136 = vpack.c.b16 %v784, %v752
      %v1137 = vpack.c.b16 %v785, %v753
      %v1138 = vpack.c.b16 %v786, %v754
      %v1139 = vpack.c.b16 %v787, %v755
      %v1140 = vpack.c.b16 %v788, %v756
      %v1141 = vpack.c.b16 %v789, %v757
      %v1142 = vpack.c.b16 %v790, %v758
      %v1143 = vpack.c.b16 %v791, %v759
      %v1144 = vpack.c.b16 %v792, %v760
      %v1145 = vpack.c.b16 %v793, %v761
      %v1146 = vpack.c.b16 %v794, %v762
      %v1147 = vpack.c.b16 %v795, %v763
      %v1148 = vpack.c.b16 %v796, %v764
      %v1149 = vpack.c.b16 %v797, %v765
      %v1150 = vpack.c.b16 %v798, %v766
      %v1151 = vpack.c.b16 %v799, %v767
      %v1152 = vpack.c.b16 %v800, %v768
      %v1153 = vpack.c.b16 %v801, %v769
      %v1154 = vpack.c.b16 %v802, %v770
      %v1155 = vpack.c.b16 %v803, %v771
      %v1156 = vpack.c.b16 %v804, %v772
      %v1157 = vpack.c.b16 %v805, %v773
      %v1158 = vpack.c.b16 %v806, %v774
      %v1159 = vpack.c.b16 %v807, %v775
      %v1160 = vpack.c.b16 %v808, %v776
      %v1161 = vpack.c.b16 %v809, %v777
      %v1162 = vpack.c.b16 %v810, %v778
      %v1163 = vpack.c.b16 %v811, %v779
      %v1164 = vpack.c.b16 %v812, %v780
      %v1165 = vpack.c.b16 %v813, %v781
      %v1166 = vpack.c.b16 %v846, %v814
      %v1167 = vpack.c.b16 %v847, %v815
      %v1168 = vpack.c.b16 %v848, %v816
      %v1169 = vpack.c.b16 %v849, %v817
      %v1170 = vpack.c.b16 %v850, %v818
      %v1171 = vpack.c.b16 %v851, %v819
      %v1172 = vpack.c.b16 %v852, %v820
      %v1173 = vpack.c.b16 %v853, %v821
      %v1174 = vpack.c.b16 %v854, %v822
      %v1175 = vpack.c.b16 %v855, %v823
      %v1176 = vpack.c.b16 %v856, %v824
      %v1177 = vpack.c.b16 %v857, %v825
      %v1178 = vpack.c.b16 %v858, %v826
      %v1179 = vpack.c.b16 %v859, %v827
      %v1180 = vpack.c.b16 %v860, %v828
      %v1181 = vpack.c.b16 %v861, %v829
      %v1182 = vpack.c.b16 %v862, %v830
      %v1183 = vpack.c.b16 %v863, %v831
      %v1184 = vpack.c.b16 %v864, %v832
      %v1185 = vpack.c.b16 %v865, %v833
      %v1186 = vpack.c.b16 %v866, %v834
      %v1187 = vpack.c.b16 %v867, %v835
      %v1188 = vpack.c.b16 %v868, %v836
      %v1189 = vpack.c.b16 %v869, %v837
      %v1190 = vpack.c.b16 %v870, %v838
      %v1191 = vpack.c.b16 %v871, %v839
      %v1192 = vpack.c.b16 %v872, %v840
      %v1193 = vpack.c.b16 %v873, %v841
      %v1194 = vpack.c.b16 %v874, %v842
      %v1195 = vpack.c.b16 %v875, %v843
      %v1196 = vpack.c.b16 %v876, %v844
      %v1197 = vpack.c.b16 %v877, %v845
      %v1198 = vpack.c.b16 %v910, %v878
      %v1199 = vpack.c.b16 %v911, %v879
      %v1200 = vpack.c.b16 %v912, %v880
      %v1201 = vpack.c.b16 %v913, %v881
      %v1202 = vpack.c.b16 %v914, %v882
      %v1203 = vpack.c.b16 %v915, %v883
      %v1204 = vpack.c.b16 %v916, %v884
      %v1205 = vpack.c.b16 %v917, %v885
      %v1206 = vpack.c.b16 %v918, %v886
      %v1207 = vpack.c.b16 %v919, %v887
      %v1208 = vpack.c.b16 %v920, %v888
      %v1209 = vpack.c.b16 %v921, %v889
      %v1210 = vpack.c.b16 %v922, %v890
      %v1211 = vpack.c.b16 %v923, %v891
      %v1212 = vpack.c.b16 %v924, %v892
      %v1213 = vpack.c.b16 %v925, %v893
      %v1214 = vpack.c.b16 %v926, %v894
      %v1215 = vpack.c.b16 %v927, %v895
      %v1216 = vpack.c.b16 %v928, %v896
      %v1217 = vpack.c.b16 %v929, %v897
      %v1218 = vpack.c.b16 %v930, %v898
      %v1219 = vpack.c.b16 %v931, %v899
      %v1220 = vpack.c.b16 %v932, %v900
      %v1221 = vpack.c.b16 %v933, %v901
      %v1222 = vpack.c.b16 %v934, %v902
      %v1223 = vpack.c.b16 %v935, %v903
      %v1224 = vpack.c.b16 %v936, %v904
      %v1225 = vpack.c.b16 %v937, %v905
      %v1226 = vpack.c.b16 %v938, %v906
      %v1227 = vpack.c.b16 %v939, %v907
      %v1228 = vpack.c.b16 %v940, %v908
      %v1229 = vpack.c.b16 %v941, %v909
      %v1230 = vpack.c.b16 %v974, %v942
      %v1231 = vpack.c.b16 %v975, %v943
      %v1232 = vpack.c.b16 %v976, %v944
      %v1233 = vpack.c.b16 %v977, %v945
      %v1234 = vpack.c.b16 %v978, %v946
      %v1235 = vpack.c.b16 %v979, %v947
      %v1236 = vpack.c.b16 %v980, %v948
      %v1237 = vpack.c.b16 %v981, %v949
      %v1238 = vpack.c.b16 %v982, %v950
      %v1239 = vpack.c.b16 %v983, %v951
      %v1240 = vpack.c.b16 %v984, %v952
      %v1241 = vpack.c.b16 %v985, %v953
      %v1242 = vpack.c.b16 %v986, %v954
      %v1243 = vpack.c.b16 %v987, %v955
      %v1244 = vpack.c.b16 %v988, %v956
      %v1245 = vpack.c.b16 %v989, %v957
      %v1246 = vpack.c.b16 %v990, %v958
      %v1247 = vpack.c.b16 %v991, %v959
      %v1248 = vpack.c.b16 %v992, %v960
      %v1249 = vpack.c.b16 %v993, %v961
      %v1250 = vpack.c.b16 %v994, %v962
      %v1251 = vpack.c.b16 %v995, %v963
      %v1252 = vpack.c.b16 %v996, %v964
      %v1253 = vpack.c.b16 %v997, %v965
      %v1254 = vpack.c.b16 %v998, %v966
      %v1255 = vpack.c.b16 %v999, %v967
      %v1256 = vpack.c.b16 %v1000, %v968
      %v1257 = vpack.c.b16 %v1001, %v969
      %v1258 = vpack.c.b16 %v1002, %v970
      %v1259 = vpack.c.b16 %v1003, %v971
      %v1260 = vpack.c.b16 %v1004, %v972
      %v1261 = vpack.c.b16 %v1005, %v973
      %v1262 = vpack.c.b16 %v1038, %v1006
      %v1263 = vpack.c.b16 %v1039, %v1007
      %v1264 = vpack.c.b16 %v1040, %v1008
      %v1265 = vpack.c.b16 %v1041, %v1009
      %v1266 = vpack.c.b16 %v1042, %v1010
      %v1267 = vpack.c.b16 %v1043, %v1011
      %v1268 = vpack.c.b16 %v1044, %v1012
      %v1269 = vpack.c.b16 %v1045, %v1013
      %v1270 = vpack.c.b16 %v1046, %v1014
      %v1271 = vpack.c.b16 %v1047, %v1015
      %v1272 = vpack.c.b16 %v1048, %v1016
      %v1273 = vpack.c.b16 %v1049, %v1017
      %v1274 = vpack.c.b16 %v1050, %v1018
      %v1275 = vpack.c.b16 %v1051, %v1019
      %v1276 = vpack.c.b16 %v1052, %v1020
      %v1277 = vpack.c.b16 %v1053, %v1021
      %v1278 = vpack.c.b16 %v1054, %v1022
      %v1279 = vpack.c.b16 %v1055, %v1023
      %v1280 = vpack.c.b16 %v1056, %v1024
      %v1281 = vpack.c.b16 %v1057, %v1025
      %v1282 = vpack.c.b16 %v1058, %v1026
      %v1283 = vpack.c.b16 %v1059, %v1027
      %v1284 = vpack.c.b16 %v1060, %v1028
      %v1285 = vpack.c.b16 %v1061, %v1029
      %v1286 = vpack.c.b16 %v1062, %v1030
      %v1287 = vpack.c.b16 %v1063, %v1031
      %v1288 = vpack.c.b16 %v1064, %v1032
      %v1289 = vpack.c.b16 %v1065, %v1033
      %v1290 = vpack.c.b16 %v1066, %v1034
      %v1291 = vpack.c.b16 %v1067, %v1035
      %v1292 = vpack.c.b16 %v1068, %v1036
      %v1293 = vpack.c.b16 %v1069, %v1037
      %vm1518 = vcmask 916480
      %v1520 = vsel %vm1518, %v173, 0
      %1522 = vmatprep.subr.bf16.mxu0 0
      %1523 = vmatpush1.bf16.msra.mxu0 0
      %1524 = vmatprep.subr.bf16.mxu0 %v1263
      %1525 = vmatpush1.bf16.msra.mxu0 %v1262
      %1526 = vmatprep.subr.bf16.mxu0 %v1231
      %1527 = vmatpush1.bf16.msra.mxu0 %v1230
      %1528 = vmatprep.subr.bf16.mxu0 %v1199
      %1529 = vmatpush1.bf16.msra.mxu0 %v1198
      %1530 = vmatprep.subr.bf16.mxu0 %v1167
      %1531 = vmatpush1.bf16.msra.mxu0 %v1166
      %1532 = vmatprep.subr.bf16.mxu0 %v1135
      %1533 = vmatpush1.bf16.msra.mxu0 %v1134
      %1534 = vmatprep.subr.bf16.mxu0 %v1103
      %1535 = vmatpush1.bf16.msra.mxu0 %v1102
      %1536 = vmatprep.subr.bf16.mxu0 %v1071
      %1537 = vmatpush1.bf16.msra.mxu0 %v1070
      %1538 = vmatprep.subr.bf16.mxu0 0
      %1539 = vmatpush2.bf16.msra.mxu0 0
      %1540 = vmatprep.subr.bf16.mxu0 0
      %1541 = vmatpush2.bf16.msra.mxu0 0
      %1542 = vmatprep.subr.bf16.mxu0 0
      %1543 = vmatpush2.bf16.msra.mxu0 0
      %1544 = vmatprep.subr.bf16.mxu0 0
      %1545 = vmatpush2.bf16.msra.mxu0 0
      %1546 = vmatprep.subr.bf16.mxu0 0
      %1547 = vmatpush2.bf16.msra.mxu0 0
      %1548 = vmatprep.subr.bf16.mxu0 0
      %1549 = vmatpush2.bf16.msra.mxu0 0
      %1550 = vmatprep.subr.bf16.mxu0 0
      %1551 = vmatpush2.bf16.msra.mxu0 0
      %1552 = vmatprep.subr.bf16.mxu0 0
      %1553 = vmatpush2.bf16.msra.mxu0 0
      %1554 = vmatprep.mubr.bf16.mxu0 0
      %1555 = vmatmul.mubr.bf16.gmra.mxu0 %v1520
      %v1556 = vpop.f32.mrf.mxu0
      %v1557 = vadd.f32 0.0, %v1556
      %v1558 = vpop.f32.mrf.mxu0
      %v1559 = vadd.f32 0.0, %v1558
      %v1560 = vpop.f32.mrf.mxu0
      %v1561 = vpop.f32.mrf.mxu0
      %1562 = vdwg.mxu0
      %1563 = vmatprep.subr.bf16.mxu0 0
      %1564 = vmatpush1.bf16.msra.mxu0 0
      %1565 = vmatprep.subr.bf16.mxu0 %v1265
      %1566 = vmatpush1.bf16.msra.mxu0 %v1264
      %1567 = vmatprep.subr.bf16.mxu0 %v1233
      %1568 = vmatpush1.bf16.msra.mxu0 %v1232
      %1569 = vmatprep.subr.bf16.mxu0 %v1201
      %1570 = vmatpush1.bf16.msra.mxu0 %v1200
      %1571 = vmatprep.subr.bf16.mxu0 %v1169
      %1572 = vmatpush1.bf16.msra.mxu0 %v1168
      %1573 = vmatprep.subr.bf16.mxu0 %v1137
      %1574 = vmatpush1.bf16.msra.mxu0 %v1136
      %1575 = vmatprep.subr.bf16.mxu0 %v1105
      %1576 = vmatpush1.bf16.msra.mxu0 %v1104
      %1577 = vmatprep.subr.bf16.mxu0 %v1073
      %1578 = vmatpush1.bf16.msra.mxu0 %v1072
      %1579 = vmatprep.subr.bf16.mxu0 0
      %1580 = vmatpush2.bf16.msra.mxu0 0
      %1581 = vmatprep.subr.bf16.mxu0 0
      %1582 = vmatpush2.bf16.msra.mxu0 0
      %1583 = vmatprep.subr.bf16.mxu0 0
      %1584 = vmatpush2.bf16.msra.mxu0 0
      %1585 = vmatprep.subr.bf16.mxu0 0
      %1586 = vmatpush2.bf16.msra.mxu0 0
      %1587 = vmatprep.subr.bf16.mxu0 0
      %1588 = vmatpush2.bf16.msra.mxu0 0
      %1589 = vmatprep.subr.bf16.mxu0 0
      %1590 = vmatpush2.bf16.msra.mxu0 0
      %1591 = vmatprep.subr.bf16.mxu0 0
      %1592 = vmatpush2.bf16.msra.mxu0 0
      %1593 = vmatprep.subr.bf16.mxu0 0
      %1594 = vmatpush2.bf16.msra.mxu0 0
      %1595 = vmatprep.mubr.bf16.mxu0 0
      %1596 = vmatmul.mubr.bf16.gmra.mxu0 %v1520
      %v1597 = vpop.f32.mrf.mxu0
      %v1598 = vadd.f32 0.0, %v1597
      %v1599 = vpop.f32.mrf.mxu0
      %v1600 = vadd.f32 0.0, %v1599
      %v1601 = vpop.f32.mrf.mxu0
      %v1602 = vpop.f32.mrf.mxu0
      %1603 = vdwg.mxu0
      %1604 = vmatprep.subr.bf16.mxu0 0
      %1605 = vmatpush1.bf16.msra.mxu0 0
      %1606 = vmatprep.subr.bf16.mxu0 %v1267
      %1607 = vmatpush1.bf16.msra.mxu0 %v1266
      %1608 = vmatprep.subr.bf16.mxu0 %v1235
      %1609 = vmatpush1.bf16.msra.mxu0 %v1234
      %1610 = vmatprep.subr.bf16.mxu0 %v1203
      %1611 = vmatpush1.bf16.msra.mxu0 %v1202
      %1612 = vmatprep.subr.bf16.mxu0 %v1171
      %1613 = vmatpush1.bf16.msra.mxu0 %v1170
      %1614 = vmatprep.subr.bf16.mxu0 %v1139
      %1615 = vmatpush1.bf16.msra.mxu0 %v1138
      %1616 = vmatprep.subr.bf16.mxu0 %v1107
      %1617 = vmatpush1.bf16.msra.mxu0 %v1106
      %1618 = vmatprep.subr.bf16.mxu0 %v1075
      %1619 = vmatpush1.bf16.msra.mxu0 %v1074
      %1620 = vmatprep.subr.bf16.mxu0 0
      %1621 = vmatpush2.bf16.msra.mxu0 0
      %1622 = vmatprep.subr.bf16.mxu0 0
      %1623 = vmatpush2.bf16.msra.mxu0 0
      %1624 = vmatprep.subr.bf16.mxu0 0
      %1625 = vmatpush2.bf16.msra.mxu0 0
      %1626 = vmatprep.subr.bf16.mxu0 0
      %1627 = vmatpush2.bf16.msra.mxu0 0
      %1628 = vmatprep.subr.bf16.mxu0 0
      %1629 = vmatpush2.bf16.msra.mxu0 0
      %1630 = vmatprep.subr.bf16.mxu0 0
      %1631 = vmatpush2.bf16.msra.mxu0 0
      %1632 = vmatprep.subr.bf16.mxu0 0
      %1633 = vmatpush2.bf16.msra.mxu0 0
      %1634 = vmatprep.subr.bf16.mxu0 0
      %1635 = vmatpush2.bf16.msra.mxu0 0
      %1636 = vmatprep.mubr.bf16.mxu0 0
      %1637 = vmatmul.mubr.bf16.gmra.mxu0 %v1520
      %v1638 = vpop.f32.mrf.mxu0
      %v1639 = vadd.f32 0.0, %v1638
      %v1640 = vpop.f32.mrf.mxu0
      %v1641 = vadd.f32 0.0, %v1640
      %v1642 = vpop.f32.mrf.mxu0
      %v1643 = vpop.f32.mrf.mxu0
      %1644 = vdwg.mxu0
      %1645 = vmatprep.subr.bf16.mxu0 0
      %1646 = vmatpush1.bf16.msra.mxu0 0
      %1647 = vmatprep.subr.bf16.mxu0 %v1269
      %1648 = vmatpush1.bf16.msra.mxu0 %v1268
      %1649 = vmatprep.subr.bf16.mxu0 %v1237
      %1650 = vmatpush1.bf16.msra.mxu0 %v1236
      %1651 = vmatprep.subr.bf16.mxu0 %v1205
      %1652 = vmatpush1.bf16.msra.mxu0 %v1204
      %1653 = vmatprep.subr.bf16.mxu0 %v1173
      %1654 = vmatpush1.bf16.msra.mxu0 %v1172
      %1655 = vmatprep.subr.bf16.mxu0 %v1141
      %1656 = vmatpush1.bf16.msra.mxu0 %v1140
      %1657 = vmatprep.subr.bf16.mxu0 %v1109
      %1658 = vmatpush1.bf16.msra.mxu0 %v1108
      %1659 = vmatprep.subr.bf16.mxu0 %v1077
      %1660 = vmatpush1.bf16.msra.mxu0 %v1076
      %1661 = vmatprep.subr.bf16.mxu0 0
      %1662 = vmatpush2.bf16.msra.mxu0 0
      %1663 = vmatprep.subr.bf16.mxu0 0
      %1664 = vmatpush2.bf16.msra.mxu0 0
      %1665 = vmatprep.subr.bf16.mxu0 0
      %1666 = vmatpush2.bf16.msra.mxu0 0
      %1667 = vmatprep.subr.bf16.mxu0 0
      %1668 = vmatpush2.bf16.msra.mxu0 0
      %1669 = vmatprep.subr.bf16.mxu0 0
      %1670 = vmatpush2.bf16.msra.mxu0 0
      %1671 = vmatprep.subr.bf16.mxu0 0
      %1672 = vmatpush2.bf16.msra.mxu0 0
      %1673 = vmatprep.subr.bf16.mxu0 0
      %1674 = vmatpush2.bf16.msra.mxu0 0
      %1675 = vmatprep.subr.bf16.mxu0 0
      %1676 = vmatpush2.bf16.msra.mxu0 0
      %1677 = vmatprep.mubr.bf16.mxu0 0
      %1678 = vmatmul.mubr.bf16.gmra.mxu0 %v1520
      %v1679 = vpop.f32.mrf.mxu0
      %v1680 = vadd.f32 0.0, %v1679
      %v1681 = vpop.f32.mrf.mxu0
      %v1682 = vadd.f32 0.0, %v1681
      %v1683 = vpop.f32.mrf.mxu0
      %v1684 = vpop.f32.mrf.mxu0
      %1685 = vdwg.mxu0
      %1686 = vmatprep.subr.bf16.mxu0 0
      %1687 = vmatpush1.bf16.msra.mxu0 0
      %1688 = vmatprep.subr.bf16.mxu0 %v1271
      %1689 = vmatpush1.bf16.msra.mxu0 %v1270
      %1690 = vmatprep.subr.bf16.mxu0 %v1239
      %1691 = vmatpush1.bf16.msra.mxu0 %v1238
      %1692 = vmatprep.subr.bf16.mxu0 %v1207
      %1693 = vmatpush1.bf16.msra.mxu0 %v1206
      %1694 = vmatprep.subr.bf16.mxu0 %v1175
      %1695 = vmatpush1.bf16.msra.mxu0 %v1174
      %1696 = vmatprep.subr.bf16.mxu0 %v1143
      %1697 = vmatpush1.bf16.msra.mxu0 %v1142
      %1698 = vmatprep.subr.bf16.mxu0 %v1111
      %1699 = vmatpush1.bf16.msra.mxu0 %v1110
      %1700 = vmatprep.subr.bf16.mxu0 %v1079
      %1701 = vmatpush1.bf16.msra.mxu0 %v1078
      %1702 = vmatprep.subr.bf16.mxu0 0
      %1703 = vmatpush2.bf16.msra.mxu0 0
      %1704 = vmatprep.subr.bf16.mxu0 0
      %1705 = vmatpush2.bf16.msra.mxu0 0
      %1706 = vmatprep.subr.bf16.mxu0 0
      %1707 = vmatpush2.bf16.msra.mxu0 0
      %1708 = vmatprep.subr.bf16.mxu0 0
      %1709 = vmatpush2.bf16.msra.mxu0 0
      %1710 = vmatprep.subr.bf16.mxu0 0
      %1711 = vmatpush2.bf16.msra.mxu0 0
      %1712 = vmatprep.subr.bf16.mxu0 0
      %1713 = vmatpush2.bf16.msra.mxu0 0
      %1714 = vmatprep.subr.bf16.mxu0 0
      %1715 = vmatpush2.bf16.msra.mxu0 0
      %1716 = vmatprep.subr.bf16.mxu0 0
      %1717 = vmatpush2.bf16.msra.mxu0 0
      %1718 = vmatprep.mubr.bf16.mxu0 0
      %1719 = vmatmul.mubr.bf16.gmra.mxu0 %v1520
      %v1720 = vpop.f32.mrf.mxu0
      %v1721 = vadd.f32 0.0, %v1720
      %v1722 = vpop.f32.mrf.mxu0
      %v1723 = vadd.f32 0.0, %v1722
      %v1724 = vpop.f32.mrf.mxu0
      %v1725 = vpop.f32.mrf.mxu0
      %1726 = vdwg.mxu0
      %1727 = vmatprep.subr.bf16.mxu0 0
      %1728 = vmatpush1.bf16.msra.mxu0 0
      %1729 = vmatprep.subr.bf16.mxu0 %v1273
      %1730 = vmatpush1.bf16.msra.mxu0 %v1272
      %1731 = vmatprep.subr.bf16.mxu0 %v1241
      %1732 = vmatpush1.bf16.msra.mxu0 %v1240
      %1733 = vmatprep.subr.bf16.mxu0 %v1209
      %1734 = vmatpush1.bf16.msra.mxu0 %v1208
      %1735 = vmatprep.subr.bf16.mxu0 %v1177
      %1736 = vmatpush1.bf16.msra.mxu0 %v1176
      %1737 = vmatprep.subr.bf16.mxu0 %v1145
      %1738 = vmatpush1.bf16.msra.mxu0 %v1144
      %1739 = vmatprep.subr.bf16.mxu0 %v1113
      %1740 = vmatpush1.bf16.msra.mxu0 %v1112
      %1741 = vmatprep.subr.bf16.mxu0 %v1081
      %1742 = vmatpush1.bf16.msra.mxu0 %v1080
      %1743 = vmatprep.subr.bf16.mxu0 0
      %1744 = vmatpush2.bf16.msra.mxu0 0
      %1745 = vmatprep.subr.bf16.mxu0 0
      %1746 = vmatpush2.bf16.msra.mxu0 0
      %1747 = vmatprep.subr.bf16.mxu0 0
      %1748 = vmatpush2.bf16.msra.mxu0 0
      %1749 = vmatprep.subr.bf16.mxu0 0
      %1750 = vmatpush2.bf16.msra.mxu0 0
      %1751 = vmatprep.subr.bf16.mxu0 0
      %1752 = vmatpush2.bf16.msra.mxu0 0
      %1753 = vmatprep.subr.bf16.mxu0 0
      %1754 = vmatpush2.bf16.msra.mxu0 0
      %1755 = vmatprep.subr.bf16.mxu0 0
      %1756 = vmatpush2.bf16.msra.mxu0 0
      %1757 = vmatprep.subr.bf16.mxu0 0
      %1758 = vmatpush2.bf16.msra.mxu0 0
      %1759 = vmatprep.mubr.bf16.mxu0 0
      %1760 = vmatmul.mubr.bf16.gmra.mxu0 %v1520
      %v1761 = vpop.f32.mrf.mxu0
      %v1762 = vadd.f32 0.0, %v1761
      %v1763 = vpop.f32.mrf.mxu0
      %v1764 = vadd.f32 0.0, %v1763
      %v1765 = vpop.f32.mrf.mxu0
      %v1766 = vpop.f32.mrf.mxu0
      %1767 = vdwg.mxu0
      %1768 = vmatprep.subr.bf16.mxu0 0
      %1769 = vmatpush1.bf16.msra.mxu0 0
      %1770 = vmatprep.subr.bf16.mxu0 %v1275
      %1771 = vmatpush1.bf16.msra.mxu0 %v1274
      %1772 = vmatprep.subr.bf16.mxu0 %v1243
      %1773 = vmatpush1.bf16.msra.mxu0 %v1242
      %1774 = vmatprep.subr.bf16.mxu0 %v1211
      %1775 = vmatpush1.bf16.msra.mxu0 %v1210
      %1776 = vmatprep.subr.bf16.mxu0 %v1179
      %1777 = vmatpush1.bf16.msra.mxu0 %v1178
      %1778 = vmatprep.subr.bf16.mxu0 %v1147
      %1779 = vmatpush1.bf16.msra.mxu0 %v1146
      %1780 = vmatprep.subr.bf16.mxu0 %v1115
      %1781 = vmatpush1.bf16.msra.mxu0 %v1114
      %1782 = vmatprep.subr.bf16.mxu0 %v1083
      %1783 = vmatpush1.bf16.msra.mxu0 %v1082
      %1784 = vmatprep.subr.bf16.mxu0 0
      %1785 = vmatpush2.bf16.msra.mxu0 0
      %1786 = vmatprep.subr.bf16.mxu0 0
      %1787 = vmatpush2.bf16.msra.mxu0 0
      %1788 = vmatprep.subr.bf16.mxu0 0
      %1789 = vmatpush2.bf16.msra.mxu0 0
      %1790 = vmatprep.subr.bf16.mxu0 0
      %1791 = vmatpush2.bf16.msra.mxu0 0
      %1792 = vmatprep.subr.bf16.mxu0 0
      %1793 = vmatpush2.bf16.msra.mxu0 0
      %1794 = vmatprep.subr.bf16.mxu0 0
      %1795 = vmatpush2.bf16.msra.mxu0 0
      %1796 = vmatprep.subr.bf16.mxu0 0
      %1797 = vmatpush2.bf16.msra.mxu0 0
      %1798 = vmatprep.subr.bf16.mxu0 0
      %1799 = vmatpush2.bf16.msra.mxu0 0
      %1800 = vmatprep.mubr.bf16.mxu0 0
      %1801 = vmatmul.mubr.bf16.gmra.mxu0 %v1520
      %v1802 = vpop.f32.mrf.mxu0
      %v1803 = vadd.f32 0.0, %v1802
      %v1804 = vpop.f32.mrf.mxu0
      %v1805 = vadd.f32 0.0, %v1804
      %v1806 = vpop.f32.mrf.mxu0
      %v1807 = vpop.f32.mrf.mxu0
      %1808 = vdwg.mxu0
      %1809 = vmatprep.subr.bf16.mxu0 0
      %1810 = vmatpush1.bf16.msra.mxu0 0
      %1811 = vmatprep.subr.bf16.mxu0 %v1277
      %1812 = vmatpush1.bf16.msra.mxu0 %v1276
      %1813 = vmatprep.subr.bf16.mxu0 %v1245
      %1814 = vmatpush1.bf16.msra.mxu0 %v1244
      %1815 = vmatprep.subr.bf16.mxu0 %v1213
      %1816 = vmatpush1.bf16.msra.mxu0 %v1212
      %1817 = vmatprep.subr.bf16.mxu0 %v1181
      %1818 = vmatpush1.bf16.msra.mxu0 %v1180
      %1819 = vmatprep.subr.bf16.mxu0 %v1149
      %1820 = vmatpush1.bf16.msra.mxu0 %v1148
      %1821 = vmatprep.subr.bf16.mxu0 %v1117
      %1822 = vmatpush1.bf16.msra.mxu0 %v1116
      %1823 = vmatprep.subr.bf16.mxu0 %v1085
      %1824 = vmatpush1.bf16.msra.mxu0 %v1084
      %1825 = vmatprep.subr.bf16.mxu0 0
      %1826 = vmatpush2.bf16.msra.mxu0 0
      %1827 = vmatprep.subr.bf16.mxu0 0
      %1828 = vmatpush2.bf16.msra.mxu0 0
      %1829 = vmatprep.subr.bf16.mxu0 0
      %1830 = vmatpush2.bf16.msra.mxu0 0
      %1831 = vmatprep.subr.bf16.mxu0 0
      %1832 = vmatpush2.bf16.msra.mxu0 0
      %1833 = vmatprep.subr.bf16.mxu0 0
      %1834 = vmatpush2.bf16.msra.mxu0 0
      %1835 = vmatprep.subr.bf16.mxu0 0
      %1836 = vmatpush2.bf16.msra.mxu0 0
      %1837 = vmatprep.subr.bf16.mxu0 0
      %1838 = vmatpush2.bf16.msra.mxu0 0
      %1839 = vmatprep.subr.bf16.mxu0 0
      %1840 = vmatpush2.bf16.msra.mxu0 0
      %1841 = vmatprep.mubr.bf16.mxu0 0
      %1842 = vmatmul.mubr.bf16.gmra.mxu0 %v1520
      %v1843 = vpop.f32.mrf.mxu0
      %v1844 = vadd.f32 0.0, %v1843
      %v1845 = vpop.f32.mrf.mxu0
      %v1846 = vadd.f32 0.0, %v1845
      %v1847 = vpop.f32.mrf.mxu0
      %v1848 = vpop.f32.mrf.mxu0
      %1849 = vdwg.mxu0
      %1850 = vmatprep.subr.bf16.mxu0 0
      %1851 = vmatpush1.bf16.msra.mxu0 0
      %1852 = vmatprep.subr.bf16.mxu0 %v1279
      %1853 = vmatpush1.bf16.msra.mxu0 %v1278
      %1854 = vmatprep.subr.bf16.mxu0 %v1247
      %1855 = vmatpush1.bf16.msra.mxu0 %v1246
      %1856 = vmatprep.subr.bf16.mxu0 %v1215
      %1857 = vmatpush1.bf16.msra.mxu0 %v1214
      %1858 = vmatprep.subr.bf16.mxu0 %v1183
      %1859 = vmatpush1.bf16.msra.mxu0 %v1182
      %1860 = vmatprep.subr.bf16.mxu0 %v1151
      %1861 = vmatpush1.bf16.msra.mxu0 %v1150
      %1862 = vmatprep.subr.bf16.mxu0 %v1119
      %1863 = vmatpush1.bf16.msra.mxu0 %v1118
      %1864 = vmatprep.subr.bf16.mxu0 %v1087
      %1865 = vmatpush1.bf16.msra.mxu0 %v1086
      %1866 = vmatprep.subr.bf16.mxu0 0
      %1867 = vmatpush2.bf16.msra.mxu0 0
      %1868 = vmatprep.subr.bf16.mxu0 0
      %1869 = vmatpush2.bf16.msra.mxu0 0
      %1870 = vmatprep.subr.bf16.mxu0 0
      %1871 = vmatpush2.bf16.msra.mxu0 0
      %1872 = vmatprep.subr.bf16.mxu0 0
      %1873 = vmatpush2.bf16.msra.mxu0 0
      %1874 = vmatprep.subr.bf16.mxu0 0
      %1875 = vmatpush2.bf16.msra.mxu0 0
      %1876 = vmatprep.subr.bf16.mxu0 0
      %1877 = vmatpush2.bf16.msra.mxu0 0
      %1878 = vmatprep.subr.bf16.mxu0 0
      %1879 = vmatpush2.bf16.msra.mxu0 0
      %1880 = vmatprep.subr.bf16.mxu0 0
      %1881 = vmatpush2.bf16.msra.mxu0 0
      %1882 = vmatprep.mubr.bf16.mxu0 0
      %1883 = vmatmul.mubr.bf16.gmra.mxu0 %v1520
      %v1884 = vpop.f32.mrf.mxu0
      %v1885 = vadd.f32 0.0, %v1884
      %v1886 = vpop.f32.mrf.mxu0
      %v1887 = vadd.f32 0.0, %v1886
      %v1888 = vpop.f32.mrf.mxu0
      %v1889 = vpop.f32.mrf.mxu0
      %1890 = vdwg.mxu0
      %1891 = vmatprep.subr.bf16.mxu0 0
      %1892 = vmatpush1.bf16.msra.mxu0 0
      %1893 = vmatprep.subr.bf16.mxu0 %v1281
      %1894 = vmatpush1.bf16.msra.mxu0 %v1280
      %1895 = vmatprep.subr.bf16.mxu0 %v1249
      %1896 = vmatpush1.bf16.msra.mxu0 %v1248
      %1897 = vmatprep.subr.bf16.mxu0 %v1217
      %1898 = vmatpush1.bf16.msra.mxu0 %v1216
      %1899 = vmatprep.subr.bf16.mxu0 %v1185
      %1900 = vmatpush1.bf16.msra.mxu0 %v1184
      %1901 = vmatprep.subr.bf16.mxu0 %v1153
      %1902 = vmatpush1.bf16.msra.mxu0 %v1152
      %1903 = vmatprep.subr.bf16.mxu0 %v1121
      %1904 = vmatpush1.bf16.msra.mxu0 %v1120
      %1905 = vmatprep.subr.bf16.mxu0 %v1089
      %1906 = vmatpush1.bf16.msra.mxu0 %v1088
      %1907 = vmatprep.subr.bf16.mxu0 0
      %1908 = vmatpush2.bf16.msra.mxu0 0
      %1909 = vmatprep.subr.bf16.mxu0 0
      %1910 = vmatpush2.bf16.msra.mxu0 0
      %1911 = vmatprep.subr.bf16.mxu0 0
      %1912 = vmatpush2.bf16.msra.mxu0 0
      %1913 = vmatprep.subr.bf16.mxu0 0
      %1914 = vmatpush2.bf16.msra.mxu0 0
      %1915 = vmatprep.subr.bf16.mxu0 0
      %1916 = vmatpush2.bf16.msra.mxu0 0
      %1917 = vmatprep.subr.bf16.mxu0 0
      %1918 = vmatpush2.bf16.msra.mxu0 0
      %1919 = vmatprep.subr.bf16.mxu0 0
      %1920 = vmatpush2.bf16.msra.mxu0 0
      %1921 = vmatprep.subr.bf16.mxu0 0
      %1922 = vmatpush2.bf16.msra.mxu0 0
      %1923 = vmatprep.mubr.bf16.mxu0 0
      %1924 = vmatmul.mubr.bf16.gmra.mxu0 %v1520
      %v1925 = vpop.f32.mrf.mxu0
      %v1926 = vadd.f32 0.0, %v1925
      %v1927 = vpop.f32.mrf.mxu0
      %v1928 = vadd.f32 0.0, %v1927
      %v1929 = vpop.f32.mrf.mxu0
      %v1930 = vpop.f32.mrf.mxu0
      %1931 = vdwg.mxu0
      %1932 = vmatprep.subr.bf16.mxu0 0
      %1933 = vmatpush1.bf16.msra.mxu0 0
      %1934 = vmatprep.subr.bf16.mxu0 %v1283
      %1935 = vmatpush1.bf16.msra.mxu0 %v1282
      %1936 = vmatprep.subr.bf16.mxu0 %v1251
      %1937 = vmatpush1.bf16.msra.mxu0 %v1250
      %1938 = vmatprep.subr.bf16.mxu0 %v1219
      %1939 = vmatpush1.bf16.msra.mxu0 %v1218
      %1940 = vmatprep.subr.bf16.mxu0 %v1187
      %1941 = vmatpush1.bf16.msra.mxu0 %v1186
      %1942 = vmatprep.subr.bf16.mxu0 %v1155
      %1943 = vmatpush1.bf16.msra.mxu0 %v1154
      %1944 = vmatprep.subr.bf16.mxu0 %v1123
      %1945 = vmatpush1.bf16.msra.mxu0 %v1122
      %1946 = vmatprep.subr.bf16.mxu0 %v1091
      %1947 = vmatpush1.bf16.msra.mxu0 %v1090
      %1948 = vmatprep.subr.bf16.mxu0 0
      %1949 = vmatpush2.bf16.msra.mxu0 0
      %1950 = vmatprep.subr.bf16.mxu0 0
      %1951 = vmatpush2.bf16.msra.mxu0 0
      %1952 = vmatprep.subr.bf16.mxu0 0
      %1953 = vmatpush2.bf16.msra.mxu0 0
      %1954 = vmatprep.subr.bf16.mxu0 0
      %1955 = vmatpush2.bf16.msra.mxu0 0
      %1956 = vmatprep.subr.bf16.mxu0 0
      %1957 = vmatpush2.bf16.msra.mxu0 0
      %1958 = vmatprep.subr.bf16.mxu0 0
      %1959 = vmatpush2.bf16.msra.mxu0 0
      %1960 = vmatprep.subr.bf16.mxu0 0
      %1961 = vmatpush2.bf16.msra.mxu0 0
      %1962 = vmatprep.subr.bf16.mxu0 0
      %1963 = vmatpush2.bf16.msra.mxu0 0
      %1964 = vmatprep.mubr.bf16.mxu0 0
      %1965 = vmatmul.mubr.bf16.gmra.mxu0 %v1520
      %v1966 = vpop.f32.mrf.mxu0
      %v1967 = vadd.f32 0.0, %v1966
      %v1968 = vpop.f32.mrf.mxu0
      %v1969 = vadd.f32 0.0, %v1968
      %v1970 = vpop.f32.mrf.mxu0
      %v1971 = vpop.f32.mrf.mxu0
      %1972 = vdwg.mxu0
      %1973 = vmatprep.subr.bf16.mxu0 0
      %1974 = vmatpush1.bf16.msra.mxu0 0
      %1975 = vmatprep.subr.bf16.mxu0 %v1285
      %1976 = vmatpush1.bf16.msra.mxu0 %v1284
      %1977 = vmatprep.subr.bf16.mxu0 %v1253
      %1978 = vmatpush1.bf16.msra.mxu0 %v1252
      %1979 = vmatprep.subr.bf16.mxu0 %v1221
      %1980 = vmatpush1.bf16.msra.mxu0 %v1220
      %1981 = vmatprep.subr.bf16.mxu0 %v1189
      %1982 = vmatpush1.bf16.msra.mxu0 %v1188
      %1983 = vmatprep.subr.bf16.mxu0 %v1157
      %1984 = vmatpush1.bf16.msra.mxu0 %v1156
      %1985 = vmatprep.subr.bf16.mxu0 %v1125
      %1986 = vmatpush1.bf16.msra.mxu0 %v1124
      %1987 = vmatprep.subr.bf16.mxu0 %v1093
      %1988 = vmatpush1.bf16.msra.mxu0 %v1092
      %1989 = vmatprep.subr.bf16.mxu0 0
      %1990 = vmatpush2.bf16.msra.mxu0 0
      %1991 = vmatprep.subr.bf16.mxu0 0
      %1992 = vmatpush2.bf16.msra.mxu0 0
      %1993 = vmatprep.subr.bf16.mxu0 0
      %1994 = vmatpush2.bf16.msra.mxu0 0
      %1995 = vmatprep.subr.bf16.mxu0 0
      %1996 = vmatpush2.bf16.msra.mxu0 0
      %1997 = vmatprep.subr.bf16.mxu0 0
      %1998 = vmatpush2.bf16.msra.mxu0 0
      %1999 = vmatprep.subr.bf16.mxu0 0
      %2000 = vmatpush2.bf16.msra.mxu0 0
      %2001 = vmatprep.subr.bf16.mxu0 0
      %2002 = vmatpush2.bf16.msra.mxu0 0
      %2003 = vmatprep.subr.bf16.mxu0 0
      %2004 = vmatpush2.bf16.msra.mxu0 0
      %2005 = vmatprep.mubr.bf16.mxu0 0
      %2006 = vmatmul.mubr.bf16.gmra.mxu0 %v1520
      %v2007 = vpop.f32.mrf.mxu0
      %v2008 = vadd.f32 0.0, %v2007
      %v2009 = vpop.f32.mrf.mxu0
      %v2010 = vadd.f32 0.0, %v2009
      %v2011 = vpop.f32.mrf.mxu0
      %v2012 = vpop.f32.mrf.mxu0
      %2013 = vdwg.mxu0
      %2014 = vmatprep.subr.bf16.mxu0 0
      %2015 = vmatpush1.bf16.msra.mxu0 0
      %2016 = vmatprep.subr.bf16.mxu0 %v1287
      %2017 = vmatpush1.bf16.msra.mxu0 %v1286
      %2018 = vmatprep.subr.bf16.mxu0 %v1255
      %2019 = vmatpush1.bf16.msra.mxu0 %v1254
      %2020 = vmatprep.subr.bf16.mxu0 %v1223
      %2021 = vmatpush1.bf16.msra.mxu0 %v1222
      %2022 = vmatprep.subr.bf16.mxu0 %v1191
      %2023 = vmatpush1.bf16.msra.mxu0 %v1190
      %2024 = vmatprep.subr.bf16.mxu0 %v1159
      %2025 = vmatpush1.bf16.msra.mxu0 %v1158
      %2026 = vmatprep.subr.bf16.mxu0 %v1127
      %2027 = vmatpush1.bf16.msra.mxu0 %v1126
      %2028 = vmatprep.subr.bf16.mxu0 %v1095
      %2029 = vmatpush1.bf16.msra.mxu0 %v1094
      %2030 = vmatprep.subr.bf16.mxu0 0
      %2031 = vmatpush2.bf16.msra.mxu0 0
      %2032 = vmatprep.subr.bf16.mxu0 0
      %2033 = vmatpush2.bf16.msra.mxu0 0
      %2034 = vmatprep.subr.bf16.mxu0 0
      %2035 = vmatpush2.bf16.msra.mxu0 0
      %2036 = vmatprep.subr.bf16.mxu0 0
      %2037 = vmatpush2.bf16.msra.mxu0 0
      %2038 = vmatprep.subr.bf16.mxu0 0
      %2039 = vmatpush2.bf16.msra.mxu0 0
      %2040 = vmatprep.subr.bf16.mxu0 0
      %2041 = vmatpush2.bf16.msra.mxu0 0
      %2042 = vmatprep.subr.bf16.mxu0 0
      %2043 = vmatpush2.bf16.msra.mxu0 0
      %2044 = vmatprep.subr.bf16.mxu0 0
      %2045 = vmatpush2.bf16.msra.mxu0 0
      %2046 = vmatprep.mubr.bf16.mxu0 0
      %2047 = vmatmul.mubr.bf16.gmra.mxu0 %v1520
      %v2048 = vpop.f32.mrf.mxu0
      %v2049 = vadd.f32 0.0, %v2048
      %v2050 = vpop.f32.mrf.mxu0
      %v2051 = vadd.f32 0.0, %v2050
      %v2052 = vpop.f32.mrf.mxu0
      %v2053 = vpop.f32.mrf.mxu0
      %2054 = vdwg.mxu0
      %2055 = vmatprep.subr.bf16.mxu0 0
      %2056 = vmatpush1.bf16.msra.mxu0 0
      %2057 = vmatprep.subr.bf16.mxu0 %v1289
      %2058 = vmatpush1.bf16.msra.mxu0 %v1288
      %2059 = vmatprep.subr.bf16.mxu0 %v1257
      %2060 = vmatpush1.bf16.msra.mxu0 %v1256
      %2061 = vmatprep.subr.bf16.mxu0 %v1225
      %2062 = vmatpush1.bf16.msra.mxu0 %v1224
      %2063 = vmatprep.subr.bf16.mxu0 %v1193
      %2064 = vmatpush1.bf16.msra.mxu0 %v1192
      %2065 = vmatprep.subr.bf16.mxu0 %v1161
      %2066 = vmatpush1.bf16.msra.mxu0 %v1160
      %2067 = vmatprep.subr.bf16.mxu0 %v1129
      %2068 = vmatpush1.bf16.msra.mxu0 %v1128
      %2069 = vmatprep.subr.bf16.mxu0 %v1097
      %2070 = vmatpush1.bf16.msra.mxu0 %v1096
      %2071 = vmatprep.subr.bf16.mxu0 0
      %2072 = vmatpush2.bf16.msra.mxu0 0
      %2073 = vmatprep.subr.bf16.mxu0 0
      %2074 = vmatpush2.bf16.msra.mxu0 0
      %2075 = vmatprep.subr.bf16.mxu0 0
      %2076 = vmatpush2.bf16.msra.mxu0 0
      %2077 = vmatprep.subr.bf16.mxu0 0
      %2078 = vmatpush2.bf16.msra.mxu0 0
      %2079 = vmatprep.subr.bf16.mxu0 0
      %2080 = vmatpush2.bf16.msra.mxu0 0
      %2081 = vmatprep.subr.bf16.mxu0 0
      %2082 = vmatpush2.bf16.msra.mxu0 0
      %2083 = vmatprep.subr.bf16.mxu0 0
      %2084 = vmatpush2.bf16.msra.mxu0 0
      %2085 = vmatprep.subr.bf16.mxu0 0
      %2086 = vmatpush2.bf16.msra.mxu0 0
      %2087 = vmatprep.mubr.bf16.mxu0 0
      %2088 = vmatmul.mubr.bf16.gmra.mxu0 %v1520
      %v2089 = vpop.f32.mrf.mxu0
      %v2090 = vadd.f32 0.0, %v2089
      %v2091 = vpop.f32.mrf.mxu0
      %v2092 = vadd.f32 0.0, %v2091
      %v2093 = vpop.f32.mrf.mxu0
      %v2094 = vpop.f32.mrf.mxu0
      %2095 = vdwg.mxu0
      %2096 = vmatprep.subr.bf16.mxu0 0
      %2097 = vmatpush1.bf16.msra.mxu0 0
      %2098 = vmatprep.subr.bf16.mxu0 %v1291
      %2099 = vmatpush1.bf16.msra.mxu0 %v1290
      %2100 = vmatprep.subr.bf16.mxu0 %v1259
      %2101 = vmatpush1.bf16.msra.mxu0 %v1258
      %2102 = vmatprep.subr.bf16.mxu0 %v1227
      %2103 = vmatpush1.bf16.msra.mxu0 %v1226
      %2104 = vmatprep.subr.bf16.mxu0 %v1195
      %2105 = vmatpush1.bf16.msra.mxu0 %v1194
      %2106 = vmatprep.subr.bf16.mxu0 %v1163
      %2107 = vmatpush1.bf16.msra.mxu0 %v1162
      %2108 = vmatprep.subr.bf16.mxu0 %v1131
      %2109 = vmatpush1.bf16.msra.mxu0 %v1130
      %2110 = vmatprep.subr.bf16.mxu0 %v1099
      %2111 = vmatpush1.bf16.msra.mxu0 %v1098
      %2112 = vmatprep.subr.bf16.mxu0 0
      %2113 = vmatpush2.bf16.msra.mxu0 0
      %2114 = vmatprep.subr.bf16.mxu0 0
      %2115 = vmatpush2.bf16.msra.mxu0 0
      %2116 = vmatprep.subr.bf16.mxu0 0
      %2117 = vmatpush2.bf16.msra.mxu0 0
      %2118 = vmatprep.subr.bf16.mxu0 0
      %2119 = vmatpush2.bf16.msra.mxu0 0
      %2120 = vmatprep.subr.bf16.mxu0 0
      %2121 = vmatpush2.bf16.msra.mxu0 0
      %2122 = vmatprep.subr.bf16.mxu0 0
      %2123 = vmatpush2.bf16.msra.mxu0 0
      %2124 = vmatprep.subr.bf16.mxu0 0
      %2125 = vmatpush2.bf16.msra.mxu0 0
      %2126 = vmatprep.subr.bf16.mxu0 0
      %2127 = vmatpush2.bf16.msra.mxu0 0
      %2128 = vmatprep.mubr.bf16.mxu0 0
      %2129 = vmatmul.mubr.bf16.gmra.mxu0 %v1520
      %v2130 = vpop.f32.mrf.mxu0
      %v2131 = vadd.f32 0.0, %v2130
      %v2132 = vpop.f32.mrf.mxu0
      %v2133 = vadd.f32 0.0, %v2132
      %v2134 = vpop.f32.mrf.mxu0
      %v2135 = vpop.f32.mrf.mxu0
      %2136 = vdwg.mxu0
      %2137 = vmatprep.subr.bf16.mxu0 0
      %2138 = vmatpush1.bf16.msra.mxu0 0
      %2139 = vmatprep.subr.bf16.mxu0 %v1293
      %2140 = vmatpush1.bf16.msra.mxu0 %v1292
      %2141 = vmatprep.subr.bf16.mxu0 %v1261
      %2142 = vmatpush1.bf16.msra.mxu0 %v1260
      %2143 = vmatprep.subr.bf16.mxu0 %v1229
      %2144 = vmatpush1.bf16.msra.mxu0 %v1228
      %2145 = vmatprep.subr.bf16.mxu0 %v1197
      %2146 = vmatpush1.bf16.msra.mxu0 %v1196
      %2147 = vmatprep.subr.bf16.mxu0 %v1165
      %2148 = vmatpush1.bf16.msra.mxu0 %v1164
      %2149 = vmatprep.subr.bf16.mxu0 %v1133
      %2150 = vmatpush1.bf16.msra.mxu0 %v1132
      %2151 = vmatprep.subr.bf16.mxu0 %v1101
      %2152 = vmatpush1.bf16.msra.mxu0 %v1100
      %2153 = vmatprep.subr.bf16.mxu0 0
      %2154 = vmatpush2.bf16.msra.mxu0 0
      %2155 = vmatprep.subr.bf16.mxu0 0
      %2156 = vmatpush2.bf16.msra.mxu0 0
      %2157 = vmatprep.subr.bf16.mxu0 0
      %2158 = vmatpush2.bf16.msra.mxu0 0
      %2159 = vmatprep.subr.bf16.mxu0 0
      %2160 = vmatpush2.bf16.msra.mxu0 0
      %2161 = vmatprep.subr.bf16.mxu0 0
      %2162 = vmatpush2.bf16.msra.mxu0 0
      %2163 = vmatprep.subr.bf16.mxu0 0
      %2164 = vmatpush2.bf16.msra.mxu0 0
      %2165 = vmatprep.subr.bf16.mxu0 0
      %2166 = vmatpush2.bf16.msra.mxu0 0
      %2167 = vmatprep.subr.bf16.mxu0 0
      %2168 = vmatpush2.bf16.msra.mxu0 0
      %2169 = vmatprep.mubr.bf16.mxu0 0
      %2170 = vmatmul.mubr.bf16.gmra.mxu0 %v1520
      %v2171 = vpop.f32.mrf.mxu0
      %v2172 = vadd.f32 0.0, %v2171
      %v2173 = vpop.f32.mrf.mxu0
      %v2174 = vadd.f32 0.0, %v2173
      %v2175 = vpop.f32.mrf.mxu0
      %v2176 = vpop.f32.mrf.mxu0
      %2177 = vdwg.mxu0
      %vm2178 = vcmask 1043456
      %v2179 = vsel %vm2178, %v1557, 0.0
      %v2180 = vsel %vm2178, %v1559, 0.0
      %v2181 = vadd.f32 %v2179, %v2180
      %v2182 = vsel %vm2178, %v1598, 0.0
      %v2183 = vadd.f32 %v2181, %v2182
      %v2184 = vsel %vm2178, %v1600, 0.0
      %v2185 = vadd.f32 %v2183, %v2184
      %v2186 = vsel %vm2178, %v1639, 0.0
      %v2187 = vadd.f32 %v2185, %v2186
      %v2188 = vsel %vm2178, %v1641, 0.0
      %v2189 = vadd.f32 %v2187, %v2188
      %v2190 = vsel %vm2178, %v1680, 0.0
      %v2191 = vadd.f32 %v2189, %v2190
      %v2192 = vsel %vm2178, %v1682, 0.0
      %v2193 = vadd.f32 %v2191, %v2192
      %v2194 = vsel %vm2178, %v1721, 0.0
      %v2195 = vadd.f32 %v2193, %v2194
      %v2196 = vsel %vm2178, %v1723, 0.0
      %v2197 = vadd.f32 %v2195, %v2196
      %v2198 = vsel %vm2178, %v1762, 0.0
      %v2199 = vadd.f32 %v2197, %v2198
      %v2200 = vsel %vm2178, %v1764, 0.0
      %v2201 = vadd.f32 %v2199, %v2200
      %v2202 = vsel %vm2178, %v1803, 0.0
      %v2203 = vadd.f32 %v2201, %v2202
      %v2204 = vsel %vm2178, %v1805, 0.0
      %v2205 = vadd.f32 %v2203, %v2204
      %v2206 = vsel %vm2178, %v1844, 0.0
      %v2207 = vadd.f32 %v2205, %v2206
      %v2208 = vsel %vm2178, %v1846, 0.0
      %v2209 = vadd.f32 %v2207, %v2208
      %v2210 = vsel %vm2178, %v1885, 0.0
      %v2211 = vadd.f32 %v2209, %v2210
      %v2212 = vsel %vm2178, %v1887, 0.0
      %v2213 = vadd.f32 %v2211, %v2212
      %v2214 = vsel %vm2178, %v1926, 0.0
      %v2215 = vadd.f32 %v2213, %v2214
      %v2216 = vsel %vm2178, %v1928, 0.0
      %v2217 = vadd.f32 %v2215, %v2216
      %v2218 = vsel %vm2178, %v1967, 0.0
      %v2219 = vadd.f32 %v2217, %v2218
      %v2220 = vsel %vm2178, %v1969, 0.0
      %v2221 = vadd.f32 %v2219, %v2220
      %v2222 = vsel %vm2178, %v2008, 0.0
      %v2223 = vadd.f32 %v2221, %v2222
      %v2224 = vsel %vm2178, %v2010, 0.0
      %v2225 = vadd.f32 %v2223, %v2224
      %v2226 = vsel %vm2178, %v2049, 0.0
      %v2227 = vadd.f32 %v2225, %v2226
      %v2228 = vsel %vm2178, %v2051, 0.0
      %v2229 = vadd.f32 %v2227, %v2228
      %v2230 = vsel %vm2178, %v2090, 0.0
      %v2231 = vadd.f32 %v2229, %v2230
      %v2232 = vsel %vm2178, %v2092, 0.0
      %v2233 = vadd.f32 %v2231, %v2232
      %v2234 = vsel %vm2178, %v2131, 0.0
      %v2235 = vadd.f32 %v2233, %v2234
      %v2236 = vsel %vm2178, %v2133, 0.0
      %v2237 = vadd.f32 %v2235, %v2236
      %v2238 = vsel %vm2178, %v2172, 0.0
      %v2239 = vadd.f32 %v2237, %v2238
      %v2240 = vsel %vm2178, %v2174, 0.0
      %v2241 = vadd.f32 %v2239, %v2240
      %2242 = vadd.xlane.f32.xlu0 %v2241
      %v2243 = vpop.xlane.xlu0 %2242
      %v2244 = vrcp.pop 4096.0
      %v2245 = vmul.f32 %v2243, %v2244
      %v2246 = vsub.f32 %v1557, %v2245
      %v2247 = vsub.f32 %v1559, %v2245
      %v2248 = vsub.f32 %v1598, %v2245
      %v2249 = vsub.f32 %v1600, %v2245
      %v2250 = vsub.f32 %v1639, %v2245
      %v2251 = vsub.f32 %v1641, %v2245
      %v2252 = vsub.f32 %v1680, %v2245
      %v2253 = vsub.f32 %v1682, %v2245
      %v2254 = vsub.f32 %v1721, %v2245
      %v2255 = vsub.f32 %v1723, %v2245
      %v2256 = vsub.f32 %v1762, %v2245
      %v2257 = vsub.f32 %v1764, %v2245
      %v2258 = vsub.f32 %v1803, %v2245
      %v2259 = vsub.f32 %v1805, %v2245
      %v2260 = vsub.f32 %v1844, %v2245
      %v2261 = vsub.f32 %v1846, %v2245
      %v2262 = vsub.f32 %v1885, %v2245
      %v2263 = vsub.f32 %v1887, %v2245
      %v2264 = vsub.f32 %v1926, %v2245
      %v2265 = vsub.f32 %v1928, %v2245
      %v2266 = vsub.f32 %v1967, %v2245
      %v2267 = vsub.f32 %v1969, %v2245
      %v2268 = vsub.f32 %v2008, %v2245
      %v2269 = vsub.f32 %v2010, %v2245
      %v2270 = vsub.f32 %v2049, %v2245
      %v2271 = vsub.f32 %v2051, %v2245
      %v2272 = vsub.f32 %v2090, %v2245
      %v2273 = vsub.f32 %v2092, %v2245
      %v2274 = vsub.f32 %v2131, %v2245
      %v2275 = vsub.f32 %v2133, %v2245
      %v2276 = vsub.f32 %v2172, %v2245
      %v2277 = vsub.f32 %v2174, %v2245
      %v2278 = vmul.f32 %v2246, %v2246
      %v2279 = vmul.f32 %v2247, %v2247
      %v2280 = vmul.f32 %v2248, %v2248
      %v2281 = vmul.f32 %v2249, %v2249
      %v2282 = vmul.f32 %v2250, %v2250
      %v2283 = vmul.f32 %v2251, %v2251
      %v2284 = vmul.f32 %v2252, %v2252
      %v2285 = vmul.f32 %v2253, %v2253
      %v2286 = vmul.f32 %v2254, %v2254
      %v2287 = vmul.f32 %v2255, %v2255
      %v2288 = vmul.f32 %v2256, %v2256
      %v2289 = vmul.f32 %v2257, %v2257
      %v2290 = vmul.f32 %v2258, %v2258
      %v2291 = vmul.f32 %v2259, %v2259
      %v2292 = vmul.f32 %v2260, %v2260
      %v2293 = vmul.f32 %v2261, %v2261
      %v2294 = vmul.f32 %v2262, %v2262
      %v2295 = vmul.f32 %v2263, %v2263
      %v2296 = vmul.f32 %v2264, %v2264
      %v2297 = vmul.f32 %v2265, %v2265
      %v2298 = vmul.f32 %v2266, %v2266
      %v2299 = vmul.f32 %v2267, %v2267
      %v2300 = vmul.f32 %v2268, %v2268
      %v2301 = vmul.f32 %v2269, %v2269
      %v2302 = vmul.f32 %v2270, %v2270
      %v2303 = vmul.f32 %v2271, %v2271
      %v2304 = vmul.f32 %v2272, %v2272
      %v2305 = vmul.f32 %v2273, %v2273
      %v2306 = vmul.f32 %v2274, %v2274
      %v2307 = vmul.f32 %v2275, %v2275
      %v2308 = vmul.f32 %v2276, %v2276
      %v2309 = vmul.f32 %v2277, %v2277
      %v2310 = vsel %vm2178, %v2278, 0.0
      %v2311 = vsel %vm2178, %v2279, 0.0
      %v2312 = vadd.f32 %v2310, %v2311
      %v2313 = vsel %vm2178, %v2280, 0.0
      %v2314 = vadd.f32 %v2312, %v2313
      %v2315 = vsel %vm2178, %v2281, 0.0
      %v2316 = vadd.f32 %v2314, %v2315
      %v2317 = vsel %vm2178, %v2282, 0.0
      %v2318 = vadd.f32 %v2316, %v2317
      %v2319 = vsel %vm2178, %v2283, 0.0
      %v2320 = vadd.f32 %v2318, %v2319
      %v2321 = vsel %vm2178, %v2284, 0.0
      %v2322 = vadd.f32 %v2320, %v2321
      %v2323 = vsel %vm2178, %v2285, 0.0
      %v2324 = vadd.f32 %v2322, %v2323
      %v2325 = vsel %vm2178, %v2286, 0.0
      %v2326 = vadd.f32 %v2324, %v2325
      %v2327 = vsel %vm2178, %v2287, 0.0
      %v2328 = vadd.f32 %v2326, %v2327
      %v2329 = vsel %vm2178, %v2288, 0.0
      %v2330 = vadd.f32 %v2328, %v2329
      %v2331 = vsel %vm2178, %v2289, 0.0
      %v2332 = vadd.f32 %v2330, %v2331
      %v2333 = vsel %vm2178, %v2290, 0.0
      %v2334 = vadd.f32 %v2332, %v2333
      %v2335 = vsel %vm2178, %v2291, 0.0
      %v2336 = vadd.f32 %v2334, %v2335
      %v2337 = vsel %vm2178, %v2292, 0.0
      %v2338 = vadd.f32 %v2336, %v2337
      %v2339 = vsel %vm2178, %v2293, 0.0
      %v2340 = vadd.f32 %v2338, %v2339
      %v2341 = vsel %vm2178, %v2294, 0.0
      %v2342 = vadd.f32 %v2340, %v2341
      %v2343 = vsel %vm2178, %v2295, 0.0
      %v2344 = vadd.f32 %v2342, %v2343
      %v2345 = vsel %vm2178, %v2296, 0.0
      %v2346 = vadd.f32 %v2344, %v2345
      %v2347 = vsel %vm2178, %v2297, 0.0
      %v2348 = vadd.f32 %v2346, %v2347
      %v2349 = vsel %vm2178, %v2298, 0.0
      %v2350 = vadd.f32 %v2348, %v2349
      %v2351 = vsel %vm2178, %v2299, 0.0
      %v2352 = vadd.f32 %v2350, %v2351
      %v2353 = vsel %vm2178, %v2300, 0.0
      %v2354 = vadd.f32 %v2352, %v2353
      %v2355 = vsel %vm2178, %v2301, 0.0
      %v2356 = vadd.f32 %v2354, %v2355
      %v2357 = vsel %vm2178, %v2302, 0.0
      %v2358 = vadd.f32 %v2356, %v2357
      %v2359 = vsel %vm2178, %v2303, 0.0
      %v2360 = vadd.f32 %v2358, %v2359
      %v2361 = vsel %vm2178, %v2304, 0.0
      %v2362 = vadd.f32 %v2360, %v2361
      %v2363 = vsel %vm2178, %v2305, 0.0
      %v2364 = vadd.f32 %v2362, %v2363
      %v2365 = vsel %vm2178, %v2306, 0.0
      %v2366 = vadd.f32 %v2364, %v2365
      %v2367 = vsel %vm2178, %v2307, 0.0
      %v2368 = vadd.f32 %v2366, %v2367
      %v2369 = vsel %vm2178, %v2308, 0.0
      %v2370 = vadd.f32 %v2368, %v2369
      %v2371 = vsel %vm2178, %v2309, 0.0
      %v2372 = vadd.f32 %v2370, %v2371
      %2373 = vadd.xlane.f32.xlu0 %v2372
      %v2374 = vpop.xlane.xlu0 %2373
      %v2375 = vmul.f32 %v2374, %v2244
      %v2376 = vadd.f32 %v2375, 1e-05
      %v2377 = vrsqrt.pop %v2376
      %v2378 = vmul.f32 %v2246, %v2377
      %v2379 = vmul.f32 %v2247, %v2377
      %v2380 = vmul.f32 %v2248, %v2377
      %v2381 = vmul.f32 %v2249, %v2377
      %v2382 = vmul.f32 %v2250, %v2377
      %v2383 = vmul.f32 %v2251, %v2377
      %v2384 = vmul.f32 %v2252, %v2377
      %v2385 = vmul.f32 %v2253, %v2377
      %v2386 = vmul.f32 %v2254, %v2377
      %v2387 = vmul.f32 %v2255, %v2377
      %v2388 = vmul.f32 %v2256, %v2377
      %v2389 = vmul.f32 %v2257, %v2377
      %v2390 = vmul.f32 %v2258, %v2377
      %v2391 = vmul.f32 %v2259, %v2377
      %v2392 = vmul.f32 %v2260, %v2377
      %v2393 = vmul.f32 %v2261, %v2377
      %v2394 = vmul.f32 %v2262, %v2377
      %v2395 = vmul.f32 %v2263, %v2377
      %v2396 = vmul.f32 %v2264, %v2377
      %v2397 = vmul.f32 %v2265, %v2377
      %v2398 = vmul.f32 %v2266, %v2377
      %v2399 = vmul.f32 %v2267, %v2377
      %v2400 = vmul.f32 %v2268, %v2377
      %v2401 = vmul.f32 %v2269, %v2377
      %v2402 = vmul.f32 %v2270, %v2377
      %v2403 = vmul.f32 %v2271, %v2377
      %v2404 = vmul.f32 %v2272, %v2377
      %v2405 = vmul.f32 %v2273, %v2377
      %v2406 = vmul.f32 %v2274, %v2377
      %v2407 = vmul.f32 %v2275, %v2377
      %v2408 = vmul.f32 %v2276, %v2377
      %v2409 = vmul.f32 %v2277, %v2377
      %s2410 = sld [smem:[#allocation2]]
      %vm2411 = vcmp.gt.f32.partialorder %v2378, 0.0
      %vm2412 = vcmp.gt.f32.partialorder %v2379, 0.0
      %vm2413 = vcmp.gt.f32.partialorder %v2380, 0.0
      %vm2414 = vcmp.gt.f32.partialorder %v2381, 0.0
      %vm2415 = vcmp.gt.f32.partialorder %v2382, 0.0
      %vm2416 = vcmp.gt.f32.partialorder %v2383, 0.0
      %vm2417 = vcmp.gt.f32.partialorder %v2384, 0.0
      %vm2418 = vcmp.gt.f32.partialorder %v2385, 0.0
      %vm2419 = vcmp.gt.f32.partialorder %v2386, 0.0
      %vm2420 = vcmp.gt.f32.partialorder %v2387, 0.0
      %vm2421 = vcmp.gt.f32.partialorder %v2388, 0.0
      %vm2422 = vcmp.gt.f32.partialorder %v2389, 0.0
      %vm2423 = vcmp.gt.f32.partialorder %v2390, 0.0
      %vm2424 = vcmp.gt.f32.partialorder %v2391, 0.0
      %vm2425 = vcmp.gt.f32.partialorder %v2392, 0.0
      %vm2426 = vcmp.gt.f32.partialorder %v2393, 0.0
      %vm2427 = vcmp.gt.f32.partialorder %v2394, 0.0
      %vm2428 = vcmp.gt.f32.partialorder %v2395, 0.0
      %vm2429 = vcmp.gt.f32.partialorder %v2396, 0.0
      %vm2430 = vcmp.gt.f32.partialorder %v2397, 0.0
      %vm2431 = vcmp.gt.f32.partialorder %v2398, 0.0
      %vm2432 = vcmp.gt.f32.partialorder %v2399, 0.0
      %vm2433 = vcmp.gt.f32.partialorder %v2400, 0.0
      %vm2434 = vcmp.gt.f32.partialorder %v2401, 0.0
      %vm2435 = vcmp.gt.f32.partialorder %v2402, 0.0
      %vm2436 = vcmp.gt.f32.partialorder %v2403, 0.0
      %vm2437 = vcmp.gt.f32.partialorder %v2404, 0.0
      %vm2438 = vcmp.gt.f32.partialorder %v2405, 0.0
      %vm2439 = vcmp.gt.f32.partialorder %v2406, 0.0
      %vm2440 = vcmp.gt.f32.partialorder %v2407, 0.0
      %vm2441 = vcmp.gt.f32.partialorder %v2408, 0.0
      %vm2442 = vcmp.gt.f32.partialorder %v2409, 0.0
      %v2443 = vstv %s2410
      %v2444 = vmul.f32 %v2443, %v2378
      %v2445 = vmul.f32 %v2443, %v2379
      %v2446 = vmul.f32 %v2443, %v2380
      %v2447 = vmul.f32 %v2443, %v2381
      %v2448 = vmul.f32 %v2443, %v2382
      %v2449 = vmul.f32 %v2443, %v2383
      %v2450 = vmul.f32 %v2443, %v2384
      %v2451 = vmul.f32 %v2443, %v2385
      %v2452 = vmul.f32 %v2443, %v2386
      %v2453 = vmul.f32 %v2443, %v2387
      %v2454 = vmul.f32 %v2443, %v2388
      %v2455 = vmul.f32 %v2443, %v2389
      %v2456 = vmul.f32 %v2443, %v2390
      %v2457 = vmul.f32 %v2443, %v2391
      %v2458 = vmul.f32 %v2443, %v2392
      %v2459 = vmul.f32 %v2443, %v2393
      %v2460 = vmul.f32 %v2443, %v2394
      %v2461 = vmul.f32 %v2443, %v2395
      %v2462 = vmul.f32 %v2443, %v2396
      %v2463 = vmul.f32 %v2443, %v2397
      %v2464 = vmul.f32 %v2443, %v2398
      %v2465 = vmul.f32 %v2443, %v2399
      %v2466 = vmul.f32 %v2443, %v2400
      %v2467 = vmul.f32 %v2443, %v2401
      %v2468 = vmul.f32 %v2443, %v2402
      %v2469 = vmul.f32 %v2443, %v2403
      %v2470 = vmul.f32 %v2443, %v2404
      %v2471 = vmul.f32 %v2443, %v2405
      %v2472 = vmul.f32 %v2443, %v2406
      %v2473 = vmul.f32 %v2443, %v2407
      %v2474 = vmul.f32 %v2443, %v2408
      %v2475 = vmul.f32 %v2443, %v2409
      %v2476 = vsel %vm2411, %v2378, %v2444
      %v2477 = vsel %vm2412, %v2379, %v2445
      %v2478 = vsel %vm2413, %v2380, %v2446
      %v2479 = vsel %vm2414, %v2381, %v2447
      %v2480 = vsel %vm2415, %v2382, %v2448
      %v2481 = vsel %vm2416, %v2383, %v2449
      %v2482 = vsel %vm2417, %v2384, %v2450
      %v2483 = vsel %vm2418, %v2385, %v2451
      %v2484 = vsel %vm2419, %v2386, %v2452
      %v2485 = vsel %vm2420, %v2387, %v2453
      %v2486 = vsel %vm2421, %v2388, %v2454
      %v2487 = vsel %vm2422, %v2389, %v2455
      %v2488 = vsel %vm2423, %v2390, %v2456
      %v2489 = vsel %vm2424, %v2391, %v2457
      %v2490 = vsel %vm2425, %v2392, %v2458
      %v2491 = vsel %vm2426, %v2393, %v2459
      %v2492 = vsel %vm2427, %v2394, %v2460
      %v2493 = vsel %vm2428, %v2395, %v2461
      %v2494 = vsel %vm2429, %v2396, %v2462
      %v2495 = vsel %vm2430, %v2397, %v2463
      %v2496 = vsel %vm2431, %v2398, %v2464
      %v2497 = vsel %vm2432, %v2399, %v2465
      %v2498 = vsel %vm2433, %v2400, %v2466
      %v2499 = vsel %vm2434, %v2401, %v2467
      %v2500 = vsel %vm2435, %v2402, %v2468
      %v2501 = vsel %vm2436, %v2403, %v2469
      %v2502 = vsel %vm2437, %v2404, %v2470
      %v2503 = vsel %vm2438, %v2405, %v2471
      %v2504 = vsel %vm2439, %v2406, %v2472
      %v2505 = vsel %vm2440, %v2407, %v2473
      %v2506 = vsel %vm2441, %v2408, %v2474
      %v2507 = vsel %vm2442, %v2409, %v2475
      %v2540 = vcombine.low %v2476, %v2477
      %v2541 = vcombine.low %v2478, %v2479
      %v2542 = vcombine.low %v2480, %v2481
      %v2543 = vcombine.low %v2482, %v2483
      %v2544 = vcombine.low %v2484, %v2485
      %v2545 = vcombine.low %v2486, %v2487
      %v2546 = vcombine.low %v2488, %v2489
      %v2547 = vcombine.low %v2490, %v2491
      %v2548 = vcombine.low %v2492, %v2493
      %v2549 = vcombine.low %v2494, %v2495
      %v2550 = vcombine.low %v2496, %v2497
      %v2551 = vcombine.low %v2498, %v2499
      %v2552 = vcombine.low %v2500, %v2501
      %v2553 = vcombine.low %v2502, %v2503
      %v2554 = vcombine.low %v2504, %v2505
      %v2555 = vcombine.low %v2506, %v2507
      %2572 = vst [vmem:[%s171] sm:$0xff] %v2540
      %2573 = vst [vmem:[%s171 + $0x8] sm:$0xff] %v2541
      %2574 = vst [vmem:[%s171 + $0x10] sm:$0xff] %v2542
      %2575 = vst [vmem:[%s171 + $0x18] sm:$0xff] %v2543
      %2576 = vst [vmem:[%s171 + $0x20] sm:$0xff] %v2544
      %2577 = vst [vmem:[%s171 + $0x28] sm:$0xff] %v2545
      %2578 = vst [vmem:[%s171 + $0x30] sm:$0xff] %v2546
      %2579 = vst [vmem:[%s171 + $0x38] sm:$0xff] %v2547
      %2580 = vst [vmem:[%s171 + $0x40] sm:$0xff] %v2548
      %2581 = vst [vmem:[%s171 + $0x48] sm:$0xff] %v2549
      %2582 = vst [vmem:[%s171 + $0x50] sm:$0xff] %v2550
      %2583 = vst [vmem:[%s171 + $0x58] sm:$0xff] %v2551
      %2584 = vst [vmem:[%s171 + $0x60] sm:$0xff] %v2552
      %2585 = vst [vmem:[%s171 + $0x68] sm:$0xff] %v2553
      %2586 = vst [vmem:[%s171 + $0x70] sm:$0xff] %v2554
      %2587 = vst [vmem:[%s171 + $0x78] sm:$0xff] %v2555
      %p2588 = scmp.lt.s32.totalorder %s15, 1
      %s2589 = scalar_select %p2588, %s15, 1
      %s2590 = smul.addr %s2589, 32
      %s2591 = smul.addr %s2590, 4
      %s2592 = scalar_lea.vmem %s3, %s2591
      // Predicated region
      $region33: #{_lambda_.5} parent=31 // pred_check
        %p2593 = pneg %p101
      $region34: #{_lambda_.5} parent=31 // pred_check_branch
        %2595 = sbr.rel (%p2593) target = $region36
      $region35: #{_lambda_.5} parent=31 // pred_region
        _
      $region36: #{_lambda_.5} parent=31 // pred_fallthru
        _
    $region32: #{_lambda_.5} parent=5 // pred_fallthru
      _
    %p2596 = scmp.le.s32.totalorder 2, %s10
    // Predicated region
    $region37: #{_lambda_.5} parent=5 // pred_check
      %p2597 = pneg %p2596
    $region38: #{_lambda_.5} parent=5 // pred_check_branch
      %2599 = sbr.rel (%p2597) target = $region40
    $region39: #{_lambda_.5} parent=5 // pred_region
      %s2600 = ssub.s32 %s10, 2
      // Predicated region
      $region41: #{_lambda_.5} parent=39 // pred_check
        %p2601 = pneg %p107
      $region42: #{_lambda_.5} parent=39 // pred_check_branch
        %2603 = sbr.rel (%p2601) target = $region44
      $region43: #{_lambda_.5} parent=39 // pred_region
        %p2604 = scmp.lt.s32.totalorder %s16, 1
        %s2605 = scalar_select %p2604, %s16, 1
        %s2606 = smul.addr %s2605, 32
        %s2607 = smul.addr %s2606, 4
        %s2608 = scalar_lea.vmem %s3, %s2607
      $region44: #{_lambda_.5} parent=39 // pred_fallthru
        _
    $region40: #{_lambda_.5} parent=5 // pred_fallthru
      _
  $region6: #{_lambda_.5} parent=0 // loop_footer
    %s14 = sadd.s32 1, %s10
  $region7: #{_lambda_.5} parent=0 // loop_footer_branch
    %9 = sbr.rel target = $region3
  $region8: #{_lambda_.5} parent=0 // loop_exit
    _

// kernel: _lambda_.6
$region0: #{_lambda_.6}
  #allocation0 [shape = 'u32[]', space=smem, size = 0x4, offset = 0x4, fixed_abs, tag = 'smem constant byte address 0x4 - core index']
  #allocation1 [shape = 'u32[144,128]{1,0:T(1,128)}', space=vmem, size = 0x12000, scoped, tag = 'internal scratch']
  #allocation2 [shape = 'f32[1]{0:T(128)S(6)}', space=smem, size = 0x200, scoped, tag = 'scoped memory for _lambda_.6']
  %s0 = inlined_call_operand.vmem [shape: bf16[8,112], index: 0, kind: input, shape index: {}]
  %s1 = inlined_call_operand.vmem [shape: bf16[2,112,512], index: 1, kind: input, shape index: {}]
  %s2 = inlined_call_operand.<no memory space> [shape: f32[1], index: 2, kind: input, shape index: {}]
  %s3 = inlined_call_operand.vmem [shape: f32[2,8,512], index: 3, kind: output, shape index: {}]
  %s4 = sld [smem:[#allocation0]]
  $region45: #{_lambda_.6} parent=0
    _
  %s6 = ssub.s32 1, %s4
  %s7 = scalar_select 0, %s6, %s4
  %8 = sst [smem:[#allocation2]] %s2
  loop: start=0, step=1, limit=4
  $region2: #{_lambda_.6} parent=0 // loop_pre_header
    _
  $region3: #{_lambda_.6} parent=0 // loop_header
    %s10 = sphi 0, %s14
    %p11 = scmp.ge.s32.totalorder %s10, 4
    %s18 = sphi 0, %s18
    %s20 = sphi 0, %s18
    %s21 = sphi 0, %s20
    %s35 = sphi 0, %s21
    %s41 = sphi 0, %s43
    %s44 = sphi 0, %s41
    %s45 = sphi 0, %s44
    %s61 = sphi 0, %s45
    %s65 = sphi 0, %s65
    %s67 = sphi 0, %s65
    %s68 = sphi 0, %s67
    %s82 = sphi 0, %s68
    %s88 = sphi 0, %s90
    %s91 = sphi 0, %s88
    %s92 = sphi 0, %s91
    %s108 = sphi 0, %s92
  $region4: #{_lambda_.6} parent=0 // loop_header_branch
    %13 = sbr.rel (%p11) target = $region8
  $region5: #{_lambda_.6} parent=0 // loop_body
    %s15 = ssub.s32 %s10, 1
    %s16 = ssub.s32 %s10, 2
    %s17 = sadd.s32 %s10, 1
    %s19 = sadd.s32 %s18, 1
    %p22 = scmp.eq.s32.totalorder %s10, 1
    %p23 = scmp.ne.s32.totalorder %s18, %s20
    %p24 = scmp.eq.s32.totalorder %s10, 0
    %p25 = por %p23, %p24
    %p26 = scmp.ne.s32.totalorder %s18, %s20
    %p27 = scmp.eq.s32.totalorder %s15, 1
    %p28 = por %p26, %p27
    %p29 = scmp.ne.s32.totalorder %s20, %s21
    %p30 = scmp.eq.s32.totalorder %s15, 0
    %p31 = por %p29, %p30
    %p32 = scmp.ne.s32.totalorder %s20, %s21
    %p33 = scmp.eq.s32.totalorder %s16, 1
    %p34 = por %p32, %p33
    %p36 = scmp.ne.s32.totalorder %s21, %s35
    %p37 = scmp.eq.s32.totalorder %s16, 0
    %p38 = por %p36, %p37
    %s39 = ssub.s32 %s10, %s17
    %p40 = scmp.eq.s32.totalorder %s39, 0
    %s42 = sadd.s32 %s41, 1
    %s43 = scalar_select %p40, %s41, %s42
    %p46 = pneg %p40
    %p47 = scmp.eq.s32.totalorder %s10, 1
    %p48 = por %p46, %p47
    %p49 = scmp.ne.s32.totalorder %s41, %s44
    %p50 = scmp.eq.s32.totalorder %s10, 0
    %p51 = por %p49, %p50
    %p52 = scmp.ne.s32.totalorder %s41, %s44
    %p53 = scmp.eq.s32.totalorder %s15, 1
    %p54 = por %p52, %p53
    %p55 = scmp.ne.s32.totalorder %s44, %s45
    %p56 = scmp.eq.s32.totalorder %s15, 0
    %p57 = por %p55, %p56
    %p58 = scmp.ne.s32.totalorder %s44, %s45
    %p59 = scmp.eq.s32.totalorder %s16, 1
    %p60 = por %p58, %p59
    %p62 = scmp.ne.s32.totalorder %s45, %s61
    %p63 = scmp.eq.s32.totalorder %s16, 0
    %p64 = por %p62, %p63
    %s66 = sadd.s32 %s65, 1
    %p69 = scmp.eq.s32.totalorder %s10, 1
    %p70 = scmp.ne.s32.totalorder %s65, %s67
    %p71 = scmp.eq.s32.totalorder %s10, 0
    %p72 = por %p70, %p71
    %p73 = scmp.ne.s32.totalorder %s65, %s67
    %p74 = scmp.eq.s32.totalorder %s15, 1
    %p75 = por %p73, %p74
    %p76 = scmp.ne.s32.totalorder %s67, %s68
    %p77 = scmp.eq.s32.totalorder %s15, 0
    %p78 = por %p76, %p77
    %p79 = scmp.ne.s32.totalorder %s67, %s68
    %p80 = scmp.eq.s32.totalorder %s16, 1
    %p81 = por %p79, %p80
    %p83 = scmp.ne.s32.totalorder %s68, %s82
    %p84 = scmp.eq.s32.totalorder %s16, 0
    %p85 = por %p83, %p84
    %s86 = ssub.s32 %s10, %s17
    %p87 = scmp.eq.s32.totalorder %s86, 0
    %s89 = sadd.s32 %s88, 1
    %s90 = scalar_select %p87, %s88, %s89
    %p93 = pneg %p87
    %p94 = scmp.eq.s32.totalorder %s10, 1
    %p95 = por %p93, %p94
    %p96 = scmp.ne.s32.totalorder %s88, %s91
    %p97 = scmp.eq.s32.totalorder %s10, 0
    %p98 = por %p96, %p97
    %p99 = scmp.ne.s32.totalorder %s88, %s91
    %p100 = scmp.eq.s32.totalorder %s15, 1
    %p101 = por %p99, %p100
    %p102 = scmp.ne.s32.totalorder %s91, %s92
    %p103 = scmp.eq.s32.totalorder %s15, 0
    %p104 = por %p102, %p103
    %p105 = scmp.ne.s32.totalorder %s91, %s92
    %p106 = scmp.eq.s32.totalorder %s16, 1
    %p107 = por %p105, %p106
    %p109 = scmp.ne.s32.totalorder %s92, %s108
    %p110 = scmp.eq.s32.totalorder %s16, 0
    %p111 = por %p109, %p110
    %p112 = scmp.le.s32.totalorder 1, %s10
    %p113 = scmp.lt.s32.totalorder %s10, 3
    %p114 = pnand %p112, %p113
    %p115 = pneg %p114
    // Predicated region
    $region9: #{_lambda_.6} parent=5 // pred_check
      _
    $region10: #{_lambda_.6} parent=5 // pred_check_branch
      %117 = sbr.rel (%p114) target = $region12
    $region11: #{_lambda_.6} parent=5 // pred_region
      %s118 = ssub.s32 %s10, 1
      // Predicated region
      $region13: #{_lambda_.6} parent=11 // pred_check
        %p119 = pneg %p31
      $region14: #{_lambda_.6} parent=11 // pred_check_branch
        %121 = sbr.rel (%p119) target = $region16
      $region15: #{_lambda_.6} parent=11 // pred_region
        _
      $region16: #{_lambda_.6} parent=11 // pred_fallthru
        _
      // Predicated region
      $region17: #{_lambda_.6} parent=11 // pred_check
        %p122 = pneg %p78
      $region18: #{_lambda_.6} parent=11 // pred_check_branch
        %124 = sbr.rel (%p122) target = $region20
      $region19: #{_lambda_.6} parent=11 // pred_region
        _
      $region20: #{_lambda_.6} parent=11 // pred_fallthru
        _
    $region12: #{_lambda_.6} parent=5 // pred_fallthru
      _
    %p125 = scmp.lt.s32.totalorder %s10, 2
    // Predicated region
    $region21: #{_lambda_.6} parent=5 // pred_check
      %p126 = pneg %p125
    $region22: #{_lambda_.6} parent=5 // pred_check_branch
      %128 = sbr.rel (%p126) target = $region24
    $region23: #{_lambda_.6} parent=5 // pred_region
      // Predicated region
      $region25: #{_lambda_.6} parent=23 // pred_check
        %p129 = pneg %p51
      $region26: #{_lambda_.6} parent=23 // pred_check_branch
        %131 = sbr.rel (%p129) target = $region28
      $region27: #{_lambda_.6} parent=23 // pred_region
        %p132 = scmp.lt.s32.totalorder %s10, 1
        %s133 = scalar_select %p132, %s10, 1
        %s134 = smul.addr %s133, 56
        %s135 = smul.addr %s134, 4
        %s136 = scalar_lea.vmem %s1, %s135
      $region28: #{_lambda_.6} parent=23 // pred_fallthru
        _
    $region24: #{_lambda_.6} parent=5 // pred_fallthru
      _
    %p137 = scmp.le.s32.totalorder 1, %s10
    %p138 = scmp.lt.s32.totalorder %s10, 3
    %p139 = pnand %p137, %p138
    %p140 = pneg %p139
    // Predicated region
    $region29: #{_lambda_.6} parent=5 // pred_check
      _
    $region30: #{_lambda_.6} parent=5 // pred_check_branch
      %142 = sbr.rel (%p139) target = $region32
    $region31: #{_lambda_.6} parent=5 // pred_region
      %s143 = ssub.s32 %s10, 1
      %p144 = pneg %p31
      %p145 = pneg %p28
      %p146 = scmp.lt.s32.totalorder %s15, 1
      %s147 = scalar_select %p146, %s15, 1
      %s148 = smul.addr %s147, 56
      %s149 = smul.addr %s148, 4
      %s150 = scalar_lea.vmem %s1, %s149
      %p151 = pneg %p57
      %p152 = pneg %p54
      %p153 = pneg %p78
      %p154 = pneg %p75
      %p155 = pneg %p104
      %p156 = pneg %p101
      %p157 = scmp.lt.s32.totalorder %s15, 1
      %s158 = scalar_select %p157, %s15, 1
      %s159 = smul.addr %s158, 4
      %s160 = smul.addr %s159, 8
      %s161 = scalar_lea.vmem %s3, %s160
      %p162 = scmp.lt.s32.totalorder %s15, 1
      %s163 = scalar_select %p162, %s15, 1
      %s164 = smul.addr %s163, 56
      %s165 = smul.addr %s164, 4
      %s166 = scalar_lea.vmem %s1, %s165
      %p167 = scmp.lt.s32.totalorder %s15, 1
      %s168 = scalar_select %p167, %s15, 1
      %s169 = smul.addr %s168, 4
      %s170 = smul.addr %s169, 8
      %s171 = scalar_lea.vmem %s3, %s170
      %v173 = vld [vmem:[%s0] sm:$0xf]
      %v174 = vld [vmem:[%s166] sm:$0xff]
      %v175 = vld [vmem:[%s166 + $0x8] sm:$0xff]
      %v176 = vld [vmem:[%s166 + $0x10] sm:$0xff]
      %v177 = vld [vmem:[%s166 + $0x18] sm:$0xff]
      %v178 = vld [vmem:[%s166 + $0x20] sm:$0xff]
      %v179 = vld [vmem:[%s166 + $0x28] sm:$0xff]
      %v180 = vld [vmem:[%s166 + $0x30] sm:$0xff]
      %v181 = vld [vmem:[%s166 + $0x38] sm:$0xff]
      %v182 = vld [vmem:[%s166 + $0x40] sm:$0xff]
      %v183 = vld [vmem:[%s166 + $0x48] sm:$0xff]
      %v184 = vld [vmem:[%s166 + $0x50] sm:$0xff]
      %v185 = vld [vmem:[%s166 + $0x58] sm:$0xff]
      %v186 = vld [vmem:[%s166 + $0x60] sm:$0xff]
      %v187 = vld [vmem:[%s166 + $0x68] sm:$0xff]
      %v188 = vld [vmem:[%s166 + $0x70] sm:$0xff]
      %v189 = vld [vmem:[%s166 + $0x78] sm:$0xff]
      %v190 = vld [vmem:[%s166 + $0x80] sm:$0xff]
      %v191 = vld [vmem:[%s166 + $0x88] sm:$0xff]
      %v192 = vld [vmem:[%s166 + $0x90] sm:$0xff]
      %v193 = vld [vmem:[%s166 + $0x98] sm:$0xff]
      %v194 = vld [vmem:[%s166 + $0xa0] sm:$0xff]
      %v195 = vld [vmem:[%s166 + $0xa8] sm:$0xff]
      %v196 = vld [vmem:[%s166 + $0xb0] sm:$0xff]
      %v197 = vld [vmem:[%s166 + $0xb8] sm:$0xff]
      %v198 = vld [vmem:[%s166 + $0xc0] sm:$0xff]
      %v199 = vld [vmem:[%s166 + $0xc8] sm:$0xff]
      %v200 = vld [vmem:[%s166 + $0xd0] sm:$0xff]
      %v201 = vld [vmem:[%s166 + $0xd8] sm:$0xff]
      %v230 = vunpack.c.l.b16 %v174
      %v231 = vunpack.c.h.b16 %v174
      %v232 = vunpack.c.l.b16 %v175
      %v233 = vunpack.c.h.b16 %v175
      %v234 = vunpack.c.l.b16 %v176
      %v235 = vunpack.c.h.b16 %v176
      %v236 = vunpack.c.l.b16 %v177
      %v237 = vunpack.c.h.b16 %v177
      %v238 = vunpack.c.l.b16 %v178
      %v239 = vunpack.c.h.b16 %v178
      %v240 = vunpack.c.l.b16 %v179
      %v241 = vunpack.c.h.b16 %v179
      %v242 = vunpack.c.l.b16 %v180
      %v243 = vunpack.c.h.b16 %v180
      %v244 = vunpack.c.l.b16 %v181
      %v245 = vunpack.c.h.b16 %v181
      %v246 = vunpack.c.l.b16 %v182
      %v247 = vunpack.c.h.b16 %v182
      %v248 = vunpack.c.l.b16 %v183
      %v249 = vunpack.c.h.b16 %v183
      %v250 = vunpack.c.l.b16 %v184
      %v251 = vunpack.c.h.b16 %v184
      %v252 = vunpack.c.l.b16 %v185
      %v253 = vunpack.c.h.b16 %v185
      %v254 = vunpack.c.l.b16 %v186
      %v255 = vunpack.c.h.b16 %v186
      %v256 = vunpack.c.l.b16 %v187
      %v257 = vunpack.c.h.b16 %v187
      %v258 = vunpack.c.l.b16 %v188
      %v259 = vunpack.c.h.b16 %v188
      %v260 = vunpack.c.l.b16 %v189
      %v261 = vunpack.c.h.b16 %v189
      %v262 = vunpack.c.l.b16 %v190
      %v263 = vunpack.c.h.b16 %v190
      %v264 = vunpack.c.l.b16 %v191
      %v265 = vunpack.c.h.b16 %v191
      %v266 = vunpack.c.l.b16 %v192
      %v267 = vunpack.c.h.b16 %v192
      %v268 = vunpack.c.l.b16 %v193
      %v269 = vunpack.c.h.b16 %v193
      %v270 = vunpack.c.l.b16 %v194
      %v271 = vunpack.c.h.b16 %v194
      %v272 = vunpack.c.l.b16 %v195
      %v273 = vunpack.c.h.b16 %v195
      %v274 = vunpack.c.l.b16 %v196
      %v275 = vunpack.c.h.b16 %v196
      %v276 = vunpack.c.l.b16 %v197
      %v277 = vunpack.c.h.b16 %v197
      %v278 = vunpack.c.l.b16 %v198
      %v279 = vunpack.c.h.b16 %v198
      %v280 = vunpack.c.l.b16 %v199
      %v281 = vunpack.c.h.b16 %v199
      %v282 = vunpack.c.l.b16 %v200
      %v283 = vunpack.c.h.b16 %v200
      %v284 = vunpack.c.l.b16 %v201
      %v285 = vunpack.c.h.b16 %v201
      %v286 = vpack.c.b16 %v234, %v230
      %v287 = vpack.c.b16 %v235, %v231
      %v288 = vpack.c.b16 %v236, %v232
      %v289 = vpack.c.b16 %v237, %v233
      %v290 = vpack.c.b16 %v242, %v238
      %v291 = vpack.c.b16 %v243, %v239
      %v292 = vpack.c.b16 %v244, %v240
      %v293 = vpack.c.b16 %v245, %v241
      %v294 = vpack.c.b16 %v250, %v246
      %v295 = vpack.c.b16 %v251, %v247
      %v296 = vpack.c.b16 %v252, %v248
      %v297 = vpack.c.b16 %v253, %v249
      %v298 = vpack.c.b16 %v258, %v254
      %v299 = vpack.c.b16 %v259, %v255
      %v300 = vpack.c.b16 %v260, %v256
      %v301 = vpack.c.b16 %v261, %v257
      %v302 = vpack.c.b16 %v266, %v262
      %v303 = vpack.c.b16 %v267, %v263
      %v304 = vpack.c.b16 %v268, %v264
      %v305 = vpack.c.b16 %v269, %v265
      %v306 = vpack.c.b16 %v274, %v270
      %v307 = vpack.c.b16 %v275, %v271
      %v308 = vpack.c.b16 %v276, %v272
      %v309 = vpack.c.b16 %v277, %v273
      %v310 = vpack.c.b16 %v282, %v278
      %v311 = vpack.c.b16 %v283, %v279
      %v312 = vpack.c.b16 %v284, %v280
      %v313 = vpack.c.b16 %v285, %v281
      %vm342 = vcmask 916480
      %v344 = vsel %vm342, %v173, 0
      %346 = vmatprep.subr.bf16.mxu0 0
      %347 = vmatpush1.bf16.msra.mxu0 0
      %348 = vmatprep.subr.bf16.mxu0 %v311
      %349 = vmatpush1.bf16.msra.mxu0 %v310
      %350 = vmatprep.subr.bf16.mxu0 %v307
      %351 = vmatpush1.bf16.msra.mxu0 %v306
      %352 = vmatprep.subr.bf16.mxu0 %v303
      %353 = vmatpush1.bf16.msra.mxu0 %v302
      %354 = vmatprep.subr.bf16.mxu0 %v299
      %355 = vmatpush1.bf16.msra.mxu0 %v298
      %356 = vmatprep.subr.bf16.mxu0 %v295
      %357 = vmatpush1.bf16.msra.mxu0 %v294
      %358 = vmatprep.subr.bf16.mxu0 %v291
      %359 = vmatpush1.bf16.msra.mxu0 %v290
      %360 = vmatprep.subr.bf16.mxu0 %v287
      %361 = vmatpush1.bf16.msra.mxu0 %v286
      %362 = vmatprep.subr.bf16.mxu0 0
      %363 = vmatpush2.bf16.msra.mxu0 0
      %364 = vmatprep.subr.bf16.mxu0 0
      %365 = vmatpush2.bf16.msra.mxu0 0
      %366 = vmatprep.subr.bf16.mxu0 0
      %367 = vmatpush2.bf16.msra.mxu0 0
      %368 = vmatprep.subr.bf16.mxu0 0
      %369 = vmatpush2.bf16.msra.mxu0 0
      %370 = vmatprep.subr.bf16.mxu0 0
      %371 = vmatpush2.bf16.msra.mxu0 0
      %372 = vmatprep.subr.bf16.mxu0 0
      %373 = vmatpush2.bf16.msra.mxu0 0
      %374 = vmatprep.subr.bf16.mxu0 0
      %375 = vmatpush2.bf16.msra.mxu0 0
      %376 = vmatprep.subr.bf16.mxu0 0
      %377 = vmatpush2.bf16.msra.mxu0 0
      %378 = vmatprep.mubr.bf16.mxu0 0
      %379 = vmatmul.mubr.bf16.gmra.mxu0 %v344
      %v380 = vpop.f32.mrf.mxu0
      %v381 = vadd.f32 0.0, %v380
      %v382 = vpop.f32.mrf.mxu0
      %v383 = vadd.f32 0.0, %v382
      %v384 = vpop.f32.mrf.mxu0
      %v385 = vpop.f32.mrf.mxu0
      %386 = vdwg.mxu0
      %387 = vmatprep.subr.bf16.mxu0 0
      %388 = vmatpush1.bf16.msra.mxu0 0
      %389 = vmatprep.subr.bf16.mxu0 %v313
      %390 = vmatpush1.bf16.msra.mxu0 %v312
      %391 = vmatprep.subr.bf16.mxu0 %v309
      %392 = vmatpush1.bf16.msra.mxu0 %v308
      %393 = vmatprep.subr.bf16.mxu0 %v305
      %394 = vmatpush1.bf16.msra.mxu0 %v304
      %395 = vmatprep.subr.bf16.mxu0 %v301
      %396 = vmatpush1.bf16.msra.mxu0 %v300
      %397 = vmatprep.subr.bf16.mxu0 %v297
      %398 = vmatpush1.bf16.msra.mxu0 %v296
      %399 = vmatprep.subr.bf16.mxu0 %v293
      %400 = vmatpush1.bf16.msra.mxu0 %v292
      %401 = vmatprep.subr.bf16.mxu0 %v289
      %402 = vmatpush1.bf16.msra.mxu0 %v288
      %403 = vmatprep.subr.bf16.mxu0 0
      %404 = vmatpush2.bf16.msra.mxu0 0
      %405 = vmatprep.subr.bf16.mxu0 0
      %406 = vmatpush2.bf16.msra.mxu0 0
      %407 = vmatprep.subr.bf16.mxu0 0
      %408 = vmatpush2.bf16.msra.mxu0 0
      %409 = vmatprep.subr.bf16.mxu0 0
      %410 = vmatpush2.bf16.msra.mxu0 0
      %411 = vmatprep.subr.bf16.mxu0 0
      %412 = vmatpush2.bf16.msra.mxu0 0
      %413 = vmatprep.subr.bf16.mxu0 0
      %414 = vmatpush2.bf16.msra.mxu0 0
      %415 = vmatprep.subr.bf16.mxu0 0
      %416 = vmatpush2.bf16.msra.mxu0 0
      %417 = vmatprep.subr.bf16.mxu0 0
      %418 = vmatpush2.bf16.msra.mxu0 0
      %419 = vmatprep.mubr.bf16.mxu0 0
      %420 = vmatmul.mubr.bf16.gmra.mxu0 %v344
      %v421 = vpop.f32.mrf.mxu0
      %v422 = vadd.f32 0.0, %v421
      %v423 = vpop.f32.mrf.mxu0
      %v424 = vadd.f32 0.0, %v423
      %v425 = vpop.f32.mrf.mxu0
      %v426 = vpop.f32.mrf.mxu0
      %427 = vdwg.mxu0
      %v428 = vadd.f32 %v381, %v383
      %v429 = vadd.f32 %v428, %v422
      %v430 = vadd.f32 %v429, %v424
      %431 = vadd.xlane.f32.xlu0 %v430
      %v432 = vpop.xlane.xlu0 %431
      %v433 = vrcp.pop 512.0
      %v434 = vmul.f32 %v432, %v433
      %v435 = vsub.f32 %v381, %v434
      %v436 = vsub.f32 %v383, %v434
      %v437 = vsub.f32 %v422, %v434
      %v438 = vsub.f32 %v424, %v434
      %v439 = vmul.f32 %v435, %v435
      %v440 = vmul.f32 %v436, %v436
      %v441 = vmul.f32 %v437, %v437
      %v442 = vmul.f32 %v438, %v438
      %v443 = vadd.f32 %v439, %v440
      %v444 = vadd.f32 %v443, %v441
      %v445 = vadd.f32 %v444, %v442
      %446 = vadd.xlane.f32.xlu0 %v445
      %v447 = vpop.xlane.xlu0 %446
      %v448 = vmul.f32 %v447, %v433
      %v449 = vadd.f32 %v448, 1e-05
      %v450 = vrsqrt.pop %v449
      %v451 = vmul.f32 %v435, %v450
      %v452 = vmul.f32 %v436, %v450
      %v453 = vmul.f32 %v437, %v450
      %v454 = vmul.f32 %v438, %v450
      %s455 = sld [smem:[#allocation2]]
      %vm456 = vcmp.gt.f32.partialorder %v451, 0.0
      %vm457 = vcmp.gt.f32.partialorder %v452, 0.0
      %vm458 = vcmp.gt.f32.partialorder %v453, 0.0
      %vm459 = vcmp.gt.f32.partialorder %v454, 0.0
      %v460 = vstv %s455
      %v461 = vmul.f32 %v460, %v451
      %v462 = vmul.f32 %v460, %v452
      %v463 = vmul.f32 %v460, %v453
      %v464 = vmul.f32 %v460, %v454
      %v465 = vsel %vm456, %v451, %v461
      %v466 = vsel %vm457, %v452, %v462
      %v467 = vsel %vm458, %v453, %v463
      %v468 = vsel %vm459, %v454, %v464
      %469 = vst [vmem:[%s171] sm:$0xff] %v465
      %470 = vst [vmem:[%s171 + $0x8] sm:$0xff] %v466
      %471 = vst [vmem:[%s171 + $0x10] sm:$0xff] %v467
      %472 = vst [vmem:[%s171 + $0x18] sm:$0xff] %v468
      %p473 = scmp.lt.s32.totalorder %s15, 1
      %s474 = scalar_select %p473, %s15, 1
      %s475 = smul.addr %s474, 4
      %s476 = smul.addr %s475, 8
      %s477 = scalar_lea.vmem %s3, %s476
      // Predicated region
      $region33: #{_lambda_.6} parent=31 // pred_check
        %p478 = pneg %p101
      $region34: #{_lambda_.6} parent=31 // pred_check_branch
        %480 = sbr.rel (%p478) target = $region36
      $region35: #{_lambda_.6} parent=31 // pred_region
        _
      $region36: #{_lambda_.6} parent=31 // pred_fallthru
        _
    $region32: #{_lambda_.6} parent=5 // pred_fallthru
      _
    %p481 = scmp.le.s32.totalorder 2, %s10
    // Predicated region
    $region37: #{_lambda_.6} parent=5 // pred_check
      %p482 = pneg %p481
    $region38: #{_lambda_.6} parent=5 // pred_check_branch
      %484 = sbr.rel (%p482) target = $region40
    $region39: #{_lambda_.6} parent=5 // pred_region
      %s485 = ssub.s32 %s10, 2
      // Predicated region
      $region41: #{_lambda_.6} parent=39 // pred_check
        %p486 = pneg %p107
      $region42: #{_lambda_.6} parent=39 // pred_check_branch
        %488 = sbr.rel (%p486) target = $region44
      $region43: #{_lambda_.6} parent=39 // pred_region
        %p489 = scmp.lt.s32.totalorder %s16, 1
        %s490 = scalar_select %p489, %s16, 1
        %s491 = smul.addr %s490, 4
        %s492 = smul.addr %s491, 8
        %s493 = scalar_lea.vmem %s3, %s492
      $region44: #{_lambda_.6} parent=39 // pred_fallthru
        _
    $region40: #{_lambda_.6} parent=5 // pred_fallthru
      _
  $region6: #{_lambda_.6} parent=0 // loop_footer
    %s14 = sadd.s32 1, %s10
  $region7: #{_lambda_.6} parent=0 // loop_footer_branch
    %9 = sbr.rel target = $region3
  $region8: #{_lambda_.6} parent=0 // loop_exit
    _

// kernel: _lambda_.7
$region0: #{_lambda_.7}
  #allocation0 [shape = 'u32[]', space=smem, size = 0x4, offset = 0x4, fixed_abs, tag = 'smem constant byte address 0x4 - core index']
  #allocation1 [shape = 'u32[144,128]{1,0:T(1,128)}', space=vmem, size = 0x12000, scoped, tag = 'internal scratch']
  #allocation2 [shape = 'f32[1]{0:T(128)S(6)}', space=smem, size = 0x200, scoped, tag = 'scoped memory for _lambda_.7']
  %s0 = inlined_call_operand.vmem [shape: bf16[16,224], index: 0, kind: input, shape index: {}]
  %s1 = inlined_call_operand.vmem [shape: bf16[2,224,64], index: 1, kind: input, shape index: {}]
  %s2 = inlined_call_operand.<no memory space> [shape: f32[1], index: 2, kind: input, shape index: {}]
  %s3 = inlined_call_operand.vmem [shape: f32[2,16,64], index: 3, kind: output, shape index: {}]
  %s4 = sld [smem:[#allocation0]]
  $region45: #{_lambda_.7} parent=0
    _
  %s6 = ssub.s32 1, %s4
  %s7 = scalar_select 0, %s6, %s4
  %8 = sst [smem:[#allocation2]] %s2
  loop: start=0, step=1, limit=4
  $region2: #{_lambda_.7} parent=0 // loop_pre_header
    _
  $region3: #{_lambda_.7} parent=0 // loop_header
    %s10 = sphi 0, %s14
    %p11 = scmp.ge.s32.totalorder %s10, 4
    %s18 = sphi 0, %s18
    %s20 = sphi 0, %s18
    %s21 = sphi 0, %s20
    %s35 = sphi 0, %s21
    %s41 = sphi 0, %s43
    %s44 = sphi 0, %s41
    %s45 = sphi 0, %s44
    %s61 = sphi 0, %s45
    %s65 = sphi 0, %s65
    %s67 = sphi 0, %s65
    %s68 = sphi 0, %s67
    %s82 = sphi 0, %s68
    %s88 = sphi 0, %s90
    %s91 = sphi 0, %s88
    %s92 = sphi 0, %s91
    %s108 = sphi 0, %s92
  $region4: #{_lambda_.7} parent=0 // loop_header_branch
    %13 = sbr.rel (%p11) target = $region8
  $region5: #{_lambda_.7} parent=0 // loop_body
    %s15 = ssub.s32 %s10, 1
    %s16 = ssub.s32 %s10, 2
    %s17 = sadd.s32 %s10, 1
    %s19 = sadd.s32 %s18, 1
    %p22 = scmp.eq.s32.totalorder %s10, 1
    %p23 = scmp.ne.s32.totalorder %s18, %s20
    %p24 = scmp.eq.s32.totalorder %s10, 0
    %p25 = por %p23, %p24
    %p26 = scmp.ne.s32.totalorder %s18, %s20
    %p27 = scmp.eq.s32.totalorder %s15, 1
    %p28 = por %p26, %p27
    %p29 = scmp.ne.s32.totalorder %s20, %s21
    %p30 = scmp.eq.s32.totalorder %s15, 0
    %p31 = por %p29, %p30
    %p32 = scmp.ne.s32.totalorder %s20, %s21
    %p33 = scmp.eq.s32.totalorder %s16, 1
    %p34 = por %p32, %p33
    %p36 = scmp.ne.s32.totalorder %s21, %s35
    %p37 = scmp.eq.s32.totalorder %s16, 0
    %p38 = por %p36, %p37
    %s39 = ssub.s32 %s10, %s17
    %p40 = scmp.eq.s32.totalorder %s39, 0
    %s42 = sadd.s32 %s41, 1
    %s43 = scalar_select %p40, %s41, %s42
    %p46 = pneg %p40
    %p47 = scmp.eq.s32.totalorder %s10, 1
    %p48 = por %p46, %p47
    %p49 = scmp.ne.s32.totalorder %s41, %s44
    %p50 = scmp.eq.s32.totalorder %s10, 0
    %p51 = por %p49, %p50
    %p52 = scmp.ne.s32.totalorder %s41, %s44
    %p53 = scmp.eq.s32.totalorder %s15, 1
    %p54 = por %p52, %p53
    %p55 = scmp.ne.s32.totalorder %s44, %s45
    %p56 = scmp.eq.s32.totalorder %s15, 0
    %p57 = por %p55, %p56
    %p58 = scmp.ne.s32.totalorder %s44, %s45
    %p59 = scmp.eq.s32.totalorder %s16, 1
    %p60 = por %p58, %p59
    %p62 = scmp.ne.s32.totalorder %s45, %s61
    %p63 = scmp.eq.s32.totalorder %s16, 0
    %p64 = por %p62, %p63
    %s66 = sadd.s32 %s65, 1
    %p69 = scmp.eq.s32.totalorder %s10, 1
    %p70 = scmp.ne.s32.totalorder %s65, %s67
    %p71 = scmp.eq.s32.totalorder %s10, 0
    %p72 = por %p70, %p71
    %p73 = scmp.ne.s32.totalorder %s65, %s67
    %p74 = scmp.eq.s32.totalorder %s15, 1
    %p75 = por %p73, %p74
    %p76 = scmp.ne.s32.totalorder %s67, %s68
    %p77 = scmp.eq.s32.totalorder %s15, 0
    %p78 = por %p76, %p77
    %p79 = scmp.ne.s32.totalorder %s67, %s68
    %p80 = scmp.eq.s32.totalorder %s16, 1
    %p81 = por %p79, %p80
    %p83 = scmp.ne.s32.totalorder %s68, %s82
    %p84 = scmp.eq.s32.totalorder %s16, 0
    %p85 = por %p83, %p84
    %s86 = ssub.s32 %s10, %s17
    %p87 = scmp.eq.s32.totalorder %s86, 0
    %s89 = sadd.s32 %s88, 1
    %s90 = scalar_select %p87, %s88, %s89
    %p93 = pneg %p87
    %p94 = scmp.eq.s32.totalorder %s10, 1
    %p95 = por %p93, %p94
    %p96 = scmp.ne.s32.totalorder %s88, %s91
    %p97 = scmp.eq.s32.totalorder %s10, 0
    %p98 = por %p96, %p97
    %p99 = scmp.ne.s32.totalorder %s88, %s91
    %p100 = scmp.eq.s32.totalorder %s15, 1
    %p101 = por %p99, %p100
    %p102 = scmp.ne.s32.totalorder %s91, %s92
    %p103 = scmp.eq.s32.totalorder %s15, 0
    %p104 = por %p102, %p103
    %p105 = scmp.ne.s32.totalorder %s91, %s92
    %p106 = scmp.eq.s32.totalorder %s16, 1
    %p107 = por %p105, %p106
    %p109 = scmp.ne.s32.totalorder %s92, %s108
    %p110 = scmp.eq.s32.totalorder %s16, 0
    %p111 = por %p109, %p110
    %p112 = scmp.le.s32.totalorder 1, %s10
    %p113 = scmp.lt.s32.totalorder %s10, 3
    %p114 = pnand %p112, %p113
    %p115 = pneg %p114
    // Predicated region
    $region9: #{_lambda_.7} parent=5 // pred_check
      _
    $region10: #{_lambda_.7} parent=5 // pred_check_branch
      %117 = sbr.rel (%p114) target = $region12
    $region11: #{_lambda_.7} parent=5 // pred_region
      %s118 = ssub.s32 %s10, 1
      // Predicated region
      $region13: #{_lambda_.7} parent=11 // pred_check
        %p119 = pneg %p31
      $region14: #{_lambda_.7} parent=11 // pred_check_branch
        %121 = sbr.rel (%p119) target = $region16
      $region15: #{_lambda_.7} parent=11 // pred_region
        _
      $region16: #{_lambda_.7} parent=11 // pred_fallthru
        _
      // Predicated region
      $region17: #{_lambda_.7} parent=11 // pred_check
        %p122 = pneg %p78
      $region18: #{_lambda_.7} parent=11 // pred_check_branch
        %124 = sbr.rel (%p122) target = $region20
      $region19: #{_lambda_.7} parent=11 // pred_region
        _
      $region20: #{_lambda_.7} parent=11 // pred_fallthru
        _
    $region12: #{_lambda_.7} parent=5 // pred_fallthru
      _
    %p125 = scmp.lt.s32.totalorder %s10, 2
    // Predicated region
    $region21: #{_lambda_.7} parent=5 // pred_check
      %p126 = pneg %p125
    $region22: #{_lambda_.7} parent=5 // pred_check_branch
      %128 = sbr.rel (%p126) target = $region24
    $region23: #{_lambda_.7} parent=5 // pred_region
      // Predicated region
      $region25: #{_lambda_.7} parent=23 // pred_check
        %p129 = pneg %p51
      $region26: #{_lambda_.7} parent=23 // pred_check_branch
        %131 = sbr.rel (%p129) target = $region28
      $region27: #{_lambda_.7} parent=23 // pred_region
        %p132 = scmp.lt.s32.totalorder %s10, 1
        %s133 = scalar_select %p132, %s10, 1
        %s134 = smul.addr %s133, 28
        %s135 = smul.addr %s134, 4
        %s136 = scalar_lea.vmem %s1, %s135
      $region28: #{_lambda_.7} parent=23 // pred_fallthru
        _
    $region24: #{_lambda_.7} parent=5 // pred_fallthru
      _
    %p137 = scmp.le.s32.totalorder 1, %s10
    %p138 = scmp.lt.s32.totalorder %s10, 3
    %p139 = pnand %p137, %p138
    %p140 = pneg %p139
    // Predicated region
    $region29: #{_lambda_.7} parent=5 // pred_check
      _
    $region30: #{_lambda_.7} parent=5 // pred_check_branch
      %142 = sbr.rel (%p139) target = $region32
    $region31: #{_lambda_.7} parent=5 // pred_region
      %s143 = ssub.s32 %s10, 1
      %p144 = pneg %p31
      %p145 = pneg %p28
      %p146 = scmp.lt.s32.totalorder %s15, 1
      %s147 = scalar_select %p146, %s15, 1
      %s148 = smul.addr %s147, 28
      %s149 = smul.addr %s148, 4
      %s150 = scalar_lea.vmem %s1, %s149
      %p151 = pneg %p57
      %p152 = pneg %p54
      %p153 = pneg %p78
      %p154 = pneg %p75
      %p155 = pneg %p104
      %p156 = pneg %p101
      %p157 = scmp.lt.s32.totalorder %s15, 1
      %s158 = scalar_select %p157, %s15, 1
      %s159 = smul.addr %s158, 2
      %s160 = smul.addr %s159, 8
      %s161 = scalar_lea.vmem %s3, %s160
      %p162 = scmp.lt.s32.totalorder %s15, 1
      %s163 = scalar_select %p162, %s15, 1
      %s164 = smul.addr %s163, 28
      %s165 = smul.addr %s164, 4
      %s166 = scalar_lea.vmem %s1, %s165
      %p167 = scmp.lt.s32.totalorder %s15, 1
      %s168 = scalar_select %p167, %s15, 1
      %s169 = smul.addr %s168, 2
      %s170 = smul.addr %s169, 8
      %s171 = scalar_lea.vmem %s3, %s170
      %v173 = vld [vmem:[%s0] sm:$0xff]
      %v174 = vld [vmem:[%s0 + $0x8] sm:$0xff]
      %v175 = vld [vmem:[%s166] sm:$0xf]
      %v176 = vld [vmem:[%s166 + $0x4] sm:$0xf]
      %v177 = vld [vmem:[%s166 + $0x8] sm:$0xf]
      %v178 = vld [vmem:[%s166 + $0xc] sm:$0xf]
      %v179 = vld [vmem:[%s166 + $0x10] sm:$0xf]
      %v180 = vld [vmem:[%s166 + $0x14] sm:$0xf]
      %v181 = vld [vmem:[%s166 + $0x18] sm:$0xf]
      %v182 = vld [vmem:[%s166 + $0x1c] sm:$0xf]
      %v183 = vld [vmem:[%s166 + $0x20] sm:$0xf]
      %v184 = vld [vmem:[%s166 + $0x24] sm:$0xf]
      %v185 = vld [vmem:[%s166 + $0x28] sm:$0xf]
      %v186 = vld [vmem:[%s166 + $0x2c] sm:$0xf]
      %v187 = vld [vmem:[%s166 + $0x30] sm:$0xf]
      %v188 = vld [vmem:[%s166 + $0x34] sm:$0xf]
      %v189 = vld [vmem:[%s166 + $0x38] sm:$0xf]
      %v190 = vld [vmem:[%s166 + $0x3c] sm:$0xf]
      %v191 = vld [vmem:[%s166 + $0x40] sm:$0xf]
      %v192 = vld [vmem:[%s166 + $0x44] sm:$0xf]
      %v193 = vld [vmem:[%s166 + $0x48] sm:$0xf]
      %v194 = vld [vmem:[%s166 + $0x4c] sm:$0xf]
      %v195 = vld [vmem:[%s166 + $0x50] sm:$0xf]
      %v196 = vld [vmem:[%s166 + $0x54] sm:$0xf]
      %v197 = vld [vmem:[%s166 + $0x58] sm:$0xf]
      %v198 = vld [vmem:[%s166 + $0x5c] sm:$0xf]
      %v199 = vld [vmem:[%s166 + $0x60] sm:$0xf]
      %v200 = vld [vmem:[%s166 + $0x64] sm:$0xf]
      %v201 = vld [vmem:[%s166 + $0x68] sm:$0xf]
      %v202 = vld [vmem:[%s166 + $0x6c] sm:$0xf]
      %v205 = vunpack.c.l.b16 %v173
      %v206 = vunpack.c.h.b16 %v173
      %v207 = vunpack.c.l.b16 %v174
      %v208 = vunpack.c.h.b16 %v174
      %v209 = vpack.c.b16 %v207, %v205
      %v210 = vpack.c.b16 %v208, %v206
      %v240 = vunpack.c.l.b16 %v175
      %v241 = vunpack.c.l.b16 %v176
      %v242 = vunpack.c.l.b16 %v177
      %v243 = vunpack.c.l.b16 %v178
      %v244 = vunpack.c.l.b16 %v179
      %v245 = vunpack.c.l.b16 %v180
      %v246 = vunpack.c.l.b16 %v181
      %v247 = vunpack.c.l.b16 %v182
      %v248 = vunpack.c.l.b16 %v183
      %v249 = vunpack.c.l.b16 %v184
      %v250 = vunpack.c.l.b16 %v185
      %v251 = vunpack.c.l.b16 %v186
      %v252 = vunpack.c.l.b16 %v187
      %v253 = vunpack.c.l.b16 %v188
      %v254 = vunpack.c.l.b16 %v189
      %v255 = vunpack.c.l.b16 %v190
      %v256 = vunpack.c.l.b16 %v191
      %v257 = vunpack.c.l.b16 %v192
      %v258 = vunpack.c.l.b16 %v193
      %v259 = vunpack.c.l.b16 %v194
      %v260 = vunpack.c.l.b16 %v195
      %v261 = vunpack.c.l.b16 %v196
      %v262 = vunpack.c.l.b16 %v197
      %v263 = vunpack.c.l.b16 %v198
      %v264 = vunpack.c.l.b16 %v199
      %v265 = vunpack.c.l.b16 %v200
      %v266 = vunpack.c.l.b16 %v201
      %v267 = vunpack.c.l.b16 %v202
      %v268 = vpack.c.b16 %v241, %v240
      %v269 = vpack.c.b16 %v243, %v242
      %v270 = vpack.c.b16 %v245, %v244
      %v271 = vpack.c.b16 %v247, %v246
      %v272 = vpack.c.b16 %v249, %v248
      %v273 = vpack.c.b16 %v251, %v250
      %v274 = vpack.c.b16 %v253, %v252
      %v275 = vpack.c.b16 %v255, %v254
      %v276 = vpack.c.b16 %v257, %v256
      %v277 = vpack.c.b16 %v259, %v258
      %v278 = vpack.c.b16 %v261, %v260
      %v279 = vpack.c.b16 %v263, %v262
      %v280 = vpack.c.b16 %v265, %v264
      %v281 = vpack.c.b16 %v267, %v266
      %vm296 = vcmask 785408
      %v298 = vsel %vm296, %v210, 0
      %300 = vmatprep.subr.bf16.mxu0 0
      %301 = vmatpush1.bf16.msra.mxu0 %v275
      %302 = vmatprep.subr.bf16.mxu0 0
      %303 = vmatpush1.bf16.msra.mxu0 %v274
      %304 = vmatprep.subr.bf16.mxu0 0
      %305 = vmatpush1.bf16.msra.mxu0 %v273
      %306 = vmatprep.subr.bf16.mxu0 0
      %307 = vmatpush1.bf16.msra.mxu0 %v272
      %308 = vmatprep.subr.bf16.mxu0 0
      %309 = vmatpush1.bf16.msra.mxu0 %v271
      %310 = vmatprep.subr.bf16.mxu0 0
      %311 = vmatpush1.bf16.msra.mxu0 %v270
      %312 = vmatprep.subr.bf16.mxu0 0
      %313 = vmatpush1.bf16.msra.mxu0 %v269
      %314 = vmatprep.subr.bf16.mxu0 0
      %315 = vmatpush1.bf16.msra.mxu0 %v268
      %316 = vmatprep.subr.bf16.mxu0 0
      %317 = vmatpush2.bf16.msra.mxu0 0
      %318 = vmatprep.subr.bf16.mxu0 0
      %319 = vmatpush2.bf16.msra.mxu0 0
      %320 = vmatprep.subr.bf16.mxu0 0
      %321 = vmatpush2.bf16.msra.mxu0 %v281
      %322 = vmatprep.subr.bf16.mxu0 0
      %323 = vmatpush2.bf16.msra.mxu0 %v280
      %324 = vmatprep.subr.bf16.mxu0 0
      %325 = vmatpush2.bf16.msra.mxu0 %v279
      %326 = vmatprep.subr.bf16.mxu0 0
      %327 = vmatpush2.bf16.msra.mxu0 %v278
      %328 = vmatprep.subr.bf16.mxu0 0
      %329 = vmatpush2.bf16.msra.mxu0 %v277
      %330 = vmatprep.subr.bf16.mxu0 0
      %331 = vmatpush2.bf16.msra.mxu0 %v276
      %332 = vmatprep.mubr.bf16.mxu0 %v298
      %333 = vmatmul.mubr.bf16.gmra.mxu0 %v209
      %v334 = vpop.f32.mrf.mxu0
      %v335 = vadd.f32 0.0, %v334
      %v336 = vpop.f32.mrf.mxu0
      %v337 = vpop.f32.mrf.mxu0
      %v338 = vadd.f32 0.0, %v337
      %v339 = vpop.f32.mrf.mxu0
      %340 = vdwg.mxu0
      %vm341 = vcmask 523264
      %v342 = vsel %vm341, %v335, 0.0
      %343 = vadd.xlane.f32.xlu0 %v342
      %v344 = vpop.xlane.xlu0 %343
      %v345 = vsel %vm341, %v338, 0.0
      %346 = vadd.xlane.f32.xlu0 %v345
      %v347 = vpop.xlane.xlu0 %346
      %v348 = vrcp.pop 64.0
      %v349 = vmul.f32 %v344, %v348
      %v350 = vmul.f32 %v347, %v348
      %v351 = vsub.f32 %v335, %v349
      %v352 = vsub.f32 %v338, %v350
      %v353 = vmul.f32 %v351, %v351
      %v354 = vmul.f32 %v352, %v352
      %v355 = vsel %vm341, %v353, 0.0
      %356 = vadd.xlane.f32.xlu0 %v355
      %v357 = vpop.xlane.xlu0 %356
      %v358 = vsel %vm341, %v354, 0.0
      %359 = vadd.xlane.f32.xlu0 %v358
      %v360 = vpop.xlane.xlu0 %359
      %v361 = vmul.f32 %v357, %v348
      %v362 = vmul.f32 %v360, %v348
      %v363 = vadd.f32 %v361, 1e-05
      %v364 = vadd.f32 %v362, 1e-05
      %v365 = vrsqrt.pop %v363
      %v366 = vrsqrt.pop %v364
      %v367 = vmul.f32 %v351, %v365
      %v368 = vmul.f32 %v352, %v366
      %s369 = sld [smem:[#allocation2]]
      %vm370 = vcmp.gt.f32.partialorder %v367, 0.0
      %vm371 = vcmp.gt.f32.partialorder %v368, 0.0
      %v372 = vstv %s369
      %v373 = vmul.f32 %v372, %v367
      %v374 = vmul.f32 %v372, %v368
      %v375 = vsel %vm370, %v367, %v373
      %v376 = vsel %vm371, %v368, %v374
      %377 = vst.msk [vmem:[%s171] sm:$0xff] %vm341, %v375
      %378 = vst.msk [vmem:[%s171 + $0x8] sm:$0xff] %vm341, %v376
      %p379 = scmp.lt.s32.totalorder %s15, 1
      %s380 = scalar_select %p379, %s15, 1
      %s381 = smul.addr %s380, 2
      %s382 = smul.addr %s381, 8
      %s383 = scalar_lea.vmem %s3, %s382
      // Predicated region
      $region33: #{_lambda_.7} parent=31 // pred_check
        %p384 = pneg %p101
      $region34: #{_lambda_.7} parent=31 // pred_check_branch
        %386 = sbr.rel (%p384) target = $region36
      $region35: #{_lambda_.7} parent=31 // pred_region
        _
      $region36: #{_lambda_.7} parent=31 // pred_fallthru
        _
    $region32: #{_lambda_.7} parent=5 // pred_fallthru
      _
    %p387 = scmp.le.s32.totalorder 2, %s10
    // Predicated region
    $region37: #{_lambda_.7} parent=5 // pred_check
      %p388 = pneg %p387
    $region38: #{_lambda_.7} parent=5 // pred_check_branch
      %390 = sbr.rel (%p388) target = $region40
    $region39: #{_lambda_.7} parent=5 // pred_region
      %s391 = ssub.s32 %s10, 2
      // Predicated region
      $region41: #{_lambda_.7} parent=39 // pred_check
        %p392 = pneg %p107
      $region42: #{_lambda_.7} parent=39 // pred_check_branch
        %394 = sbr.rel (%p392) target = $region44
      $region43: #{_lambda_.7} parent=39 // pred_region
        %p395 = scmp.lt.s32.totalorder %s16, 1
        %s396 = scalar_select %p395, %s16, 1
        %s397 = smul.addr %s396, 2
        %s398 = smul.addr %s397, 8
        %s399 = scalar_lea.vmem %s3, %s398
      $region44: #{_lambda_.7} parent=39 // pred_fallthru
        _
    $region40: #{_lambda_.7} parent=5 // pred_fallthru
      _
  $region6: #{_lambda_.7} parent=0 // loop_footer
    %s14 = sadd.s32 1, %s10
  $region7: #{_lambda_.7} parent=0 // loop_footer_branch
    %9 = sbr.rel target = $region3
  $region8: #{_lambda_.7} parent=0 // loop_exit
    _

// kernel: _lambda_.8
$region0: #{_lambda_.8}
  #allocation0 [shape = 'u32[]', space=smem, size = 0x4, offset = 0x4, fixed_abs, tag = 'smem constant byte address 0x4 - core index']
  #allocation1 [shape = 'u32[144,128]{1,0:T(1,128)}', space=vmem, size = 0x12000, scoped, tag = 'internal scratch']
  #allocation2 [shape = 'f32[1]{0:T(128)S(6)}', space=smem, size = 0x200, scoped, tag = 'scoped memory for _lambda_.8']
  %s0 = inlined_call_operand.vmem [shape: bf16[32,432], index: 0, kind: input, shape index: {}]
  %s1 = inlined_call_operand.vmem [shape: bf16[2,432,8], index: 1, kind: input, shape index: {}]
  %s2 = inlined_call_operand.<no memory space> [shape: f32[1], index: 2, kind: input, shape index: {}]
  %s3 = inlined_call_operand.vmem [shape: f32[2,32,8], index: 3, kind: output, shape index: {}]
  %s4 = sld [smem:[#allocation0]]
  $region45: #{_lambda_.8} parent=0
    _
  %s6 = ssub.s32 1, %s4
  %s7 = scalar_select 0, %s6, %s4
  %8 = sst [smem:[#allocation2]] %s2
  loop: start=0, step=1, limit=4
  $region2: #{_lambda_.8} parent=0 // loop_pre_header
    _
  $region3: #{_lambda_.8} parent=0 // loop_header
    %s10 = sphi 0, %s14
    %p11 = scmp.ge.s32.totalorder %s10, 4
    %s18 = sphi 0, %s18
    %s20 = sphi 0, %s18
    %s21 = sphi 0, %s20
    %s35 = sphi 0, %s21
    %s41 = sphi 0, %s43
    %s44 = sphi 0, %s41
    %s45 = sphi 0, %s44
    %s61 = sphi 0, %s45
    %s65 = sphi 0, %s65
    %s67 = sphi 0, %s65
    %s68 = sphi 0, %s67
    %s82 = sphi 0, %s68
    %s88 = sphi 0, %s90
    %s91 = sphi 0, %s88
    %s92 = sphi 0, %s91
    %s108 = sphi 0, %s92
  $region4: #{_lambda_.8} parent=0 // loop_header_branch
    %13 = sbr.rel (%p11) target = $region8
  $region5: #{_lambda_.8} parent=0 // loop_body
    %s15 = ssub.s32 %s10, 1
    %s16 = ssub.s32 %s10, 2
    %s17 = sadd.s32 %s10, 1
    %s19 = sadd.s32 %s18, 1
    %p22 = scmp.eq.s32.totalorder %s10, 1
    %p23 = scmp.ne.s32.totalorder %s18, %s20
    %p24 = scmp.eq.s32.totalorder %s10, 0
    %p25 = por %p23, %p24
    %p26 = scmp.ne.s32.totalorder %s18, %s20
    %p27 = scmp.eq.s32.totalorder %s15, 1
    %p28 = por %p26, %p27
    %p29 = scmp.ne.s32.totalorder %s20, %s21
    %p30 = scmp.eq.s32.totalorder %s15, 0
    %p31 = por %p29, %p30
    %p32 = scmp.ne.s32.totalorder %s20, %s21
    %p33 = scmp.eq.s32.totalorder %s16, 1
    %p34 = por %p32, %p33
    %p36 = scmp.ne.s32.totalorder %s21, %s35
    %p37 = scmp.eq.s32.totalorder %s16, 0
    %p38 = por %p36, %p37
    %s39 = ssub.s32 %s10, %s17
    %p40 = scmp.eq.s32.totalorder %s39, 0
    %s42 = sadd.s32 %s41, 1
    %s43 = scalar_select %p40, %s41, %s42
    %p46 = pneg %p40
    %p47 = scmp.eq.s32.totalorder %s10, 1
    %p48 = por %p46, %p47
    %p49 = scmp.ne.s32.totalorder %s41, %s44
    %p50 = scmp.eq.s32.totalorder %s10, 0
    %p51 = por %p49, %p50
    %p52 = scmp.ne.s32.totalorder %s41, %s44
    %p53 = scmp.eq.s32.totalorder %s15, 1
    %p54 = por %p52, %p53
    %p55 = scmp.ne.s32.totalorder %s44, %s45
    %p56 = scmp.eq.s32.totalorder %s15, 0
    %p57 = por %p55, %p56
    %p58 = scmp.ne.s32.totalorder %s44, %s45
    %p59 = scmp.eq.s32.totalorder %s16, 1
    %p60 = por %p58, %p59
    %p62 = scmp.ne.s32.totalorder %s45, %s61
    %p63 = scmp.eq.s32.totalorder %s16, 0
    %p64 = por %p62, %p63
    %s66 = sadd.s32 %s65, 1
    %p69 = scmp.eq.s32.totalorder %s10, 1
    %p70 = scmp.ne.s32.totalorder %s65, %s67
    %p71 = scmp.eq.s32.totalorder %s10, 0
    %p72 = por %p70, %p71
    %p73 = scmp.ne.s32.totalorder %s65, %s67
    %p74 = scmp.eq.s32.totalorder %s15, 1
    %p75 = por %p73, %p74
    %p76 = scmp.ne.s32.totalorder %s67, %s68
    %p77 = scmp.eq.s32.totalorder %s15, 0
    %p78 = por %p76, %p77
    %p79 = scmp.ne.s32.totalorder %s67, %s68
    %p80 = scmp.eq.s32.totalorder %s16, 1
    %p81 = por %p79, %p80
    %p83 = scmp.ne.s32.totalorder %s68, %s82
    %p84 = scmp.eq.s32.totalorder %s16, 0
    %p85 = por %p83, %p84
    %s86 = ssub.s32 %s10, %s17
    %p87 = scmp.eq.s32.totalorder %s86, 0
    %s89 = sadd.s32 %s88, 1
    %s90 = scalar_select %p87, %s88, %s89
    %p93 = pneg %p87
    %p94 = scmp.eq.s32.totalorder %s10, 1
    %p95 = por %p93, %p94
    %p96 = scmp.ne.s32.totalorder %s88, %s91
    %p97 = scmp.eq.s32.totalorder %s10, 0
    %p98 = por %p96, %p97
    %p99 = scmp.ne.s32.totalorder %s88, %s91
    %p100 = scmp.eq.s32.totalorder %s15, 1
    %p101 = por %p99, %p100
    %p102 = scmp.ne.s32.totalorder %s91, %s92
    %p103 = scmp.eq.s32.totalorder %s15, 0
    %p104 = por %p102, %p103
    %p105 = scmp.ne.s32.totalorder %s91, %s92
    %p106 = scmp.eq.s32.totalorder %s16, 1
    %p107 = por %p105, %p106
    %p109 = scmp.ne.s32.totalorder %s92, %s108
    %p110 = scmp.eq.s32.totalorder %s16, 0
    %p111 = por %p109, %p110
    %p112 = scmp.le.s32.totalorder 1, %s10
    %p113 = scmp.lt.s32.totalorder %s10, 3
    %p114 = pnand %p112, %p113
    %p115 = pneg %p114
    // Predicated region
    $region9: #{_lambda_.8} parent=5 // pred_check
      _
    $region10: #{_lambda_.8} parent=5 // pred_check_branch
      %117 = sbr.rel (%p114) target = $region12
    $region11: #{_lambda_.8} parent=5 // pred_region
      %s118 = ssub.s32 %s10, 1
      // Predicated region
      $region13: #{_lambda_.8} parent=11 // pred_check
        %p119 = pneg %p31
      $region14: #{_lambda_.8} parent=11 // pred_check_branch
        %121 = sbr.rel (%p119) target = $region16
      $region15: #{_lambda_.8} parent=11 // pred_region
        _
      $region16: #{_lambda_.8} parent=11 // pred_fallthru
        _
      // Predicated region
      $region17: #{_lambda_.8} parent=11 // pred_check
        %p122 = pneg %p78
      $region18: #{_lambda_.8} parent=11 // pred_check_branch
        %124 = sbr.rel (%p122) target = $region20
      $region19: #{_lambda_.8} parent=11 // pred_region
        _
      $region20: #{_lambda_.8} parent=11 // pred_fallthru
        _
    $region12: #{_lambda_.8} parent=5 // pred_fallthru
      _
    %p125 = scmp.lt.s32.totalorder %s10, 2
    // Predicated region
    $region21: #{_lambda_.8} parent=5 // pred_check
      %p126 = pneg %p125
    $region22: #{_lambda_.8} parent=5 // pred_check_branch
      %128 = sbr.rel (%p126) target = $region24
    $region23: #{_lambda_.8} parent=5 // pred_region
      // Predicated region
      $region25: #{_lambda_.8} parent=23 // pred_check
        %p129 = pneg %p51
      $region26: #{_lambda_.8} parent=23 // pred_check_branch
        %131 = sbr.rel (%p129) target = $region28
      $region27: #{_lambda_.8} parent=23 // pred_region
        %p132 = scmp.lt.s32.totalorder %s10, 1
        %s133 = scalar_select %p132, %s10, 1
        %s134 = smul.addr %s133, 54
        %s135 = smul.addr %s134, 4
        %s136 = scalar_lea.vmem %s1, %s135
      $region28: #{_lambda_.8} parent=23 // pred_fallthru
        _
    $region24: #{_lambda_.8} parent=5 // pred_fallthru
      _
    %p137 = scmp.le.s32.totalorder 1, %s10
    %p138 = scmp.lt.s32.totalorder %s10, 3
    %p139 = pnand %p137, %p138
    %p140 = pneg %p139
    // Predicated region
    $region29: #{_lambda_.8} parent=5 // pred_check
      _
    $region30: #{_lambda_.8} parent=5 // pred_check_branch
      %142 = sbr.rel (%p139) target = $region32
    $region31: #{_lambda_.8} parent=5 // pred_region
      %s143 = ssub.s32 %s10, 1
      %p144 = pneg %p31
      %p145 = pneg %p28
      %p146 = scmp.lt.s32.totalorder %s15, 1
      %s147 = scalar_select %p146, %s15, 1
      %s148 = smul.addr %s147, 54
      %s149 = smul.addr %s148, 4
      %s150 = scalar_lea.vmem %s1, %s149
      %p151 = pneg %p57
      %p152 = pneg %p54
      %p153 = pneg %p78
      %p154 = pneg %p75
      %p155 = pneg %p104
      %p156 = pneg %p101
      %p157 = scmp.lt.s32.totalorder %s15, 1
      %s158 = scalar_select %p157, %s15, 1
      %s159 = smul.addr %s158, 4
      %s160 = smul.addr %s159, 8
      %s161 = scalar_lea.vmem %s3, %s160
      %p162 = scmp.lt.s32.totalorder %s15, 1
      %s163 = scalar_select %p162, %s15, 1
      %s164 = smul.addr %s163, 54
      %s165 = smul.addr %s164, 4
      %s166 = scalar_lea.vmem %s1, %s165
      %p167 = scmp.lt.s32.totalorder %s15, 1
      %s168 = scalar_select %p167, %s15, 1
      %s169 = smul.addr %s168, 4
      %s170 = smul.addr %s169, 8
      %s171 = scalar_lea.vmem %s3, %s170
      %v173 = vld [vmem:[%s0] sm:$0xff]
      %v174 = vld [vmem:[%s0 + $0x8] sm:$0xff]
      %v175 = vld [vmem:[%s0 + $0x10] sm:$0xff]
      %v176 = vld [vmem:[%s0 + $0x18] sm:$0xff]
      %v177 = vld [vmem:[%s0 + $0x20] sm:$0xff]
      %v178 = vld [vmem:[%s0 + $0x28] sm:$0xff]
      %v179 = vld [vmem:[%s0 + $0x30] sm:$0xff]
      %v180 = vld [vmem:[%s0 + $0x38] sm:$0xff]
      %v181 = vld [vmem:[%s166] sm:$0xf]
      %v182 = vld [vmem:[%s166 + $0x4] sm:$0xf]
      %v183 = vld [vmem:[%s166 + $0x8] sm:$0xf]
      %v184 = vld [vmem:[%s166 + $0xc] sm:$0xf]
      %v185 = vld [vmem:[%s166 + $0x10] sm:$0xf]
      %v186 = vld [vmem:[%s166 + $0x14] sm:$0xf]
      %v187 = vld [vmem:[%s166 + $0x18] sm:$0xf]
      %v188 = vld [vmem:[%s166 + $0x1c] sm:$0xf]
      %v189 = vld [vmem:[%s166 + $0x20] sm:$0xf]
      %v190 = vld [vmem:[%s166 + $0x24] sm:$0xf]
      %v191 = vld [vmem:[%s166 + $0x28] sm:$0xf]
      %v192 = vld [vmem:[%s166 + $0x2c] sm:$0xf]
      %v193 = vld [vmem:[%s166 + $0x30] sm:$0xf]
      %v194 = vld [vmem:[%s166 + $0x34] sm:$0xf]
      %v195 = vld [vmem:[%s166 + $0x38] sm:$0xf]
      %v196 = vld [vmem:[%s166 + $0x3c] sm:$0xf]
      %v197 = vld [vmem:[%s166 + $0x40] sm:$0xf]
      %v198 = vld [vmem:[%s166 + $0x44] sm:$0xf]
      %v199 = vld [vmem:[%s166 + $0x48] sm:$0xf]
      %v200 = vld [vmem:[%s166 + $0x4c] sm:$0xf]
      %v201 = vld [vmem:[%s166 + $0x50] sm:$0xf]
      %v202 = vld [vmem:[%s166 + $0x54] sm:$0xf]
      %v203 = vld [vmem:[%s166 + $0x58] sm:$0xf]
      %v204 = vld [vmem:[%s166 + $0x5c] sm:$0xf]
      %v205 = vld [vmem:[%s166 + $0x60] sm:$0xf]
      %v206 = vld [vmem:[%s166 + $0x64] sm:$0xf]
      %v207 = vld [vmem:[%s166 + $0x68] sm:$0xf]
      %v208 = vld [vmem:[%s166 + $0x6c] sm:$0xf]
      %v209 = vld [vmem:[%s166 + $0x70] sm:$0xf]
      %v210 = vld [vmem:[%s166 + $0x74] sm:$0xf]
      %v211 = vld [vmem:[%s166 + $0x78] sm:$0xf]
      %v212 = vld [vmem:[%s166 + $0x7c] sm:$0xf]
      %v213 = vld [vmem:[%s166 + $0x80] sm:$0xf]
      %v214 = vld [vmem:[%s166 + $0x84] sm:$0xf]
      %v215 = vld [vmem:[%s166 + $0x88] sm:$0xf]
      %v216 = vld [vmem:[%s166 + $0x8c] sm:$0xf]
      %v217 = vld [vmem:[%s166 + $0x90] sm:$0xf]
      %v218 = vld [vmem:[%s166 + $0x94] sm:$0xf]
      %v219 = vld [vmem:[%s166 + $0x98] sm:$0xf]
      %v220 = vld [vmem:[%s166 + $0x9c] sm:$0xf]
      %v221 = vld [vmem:[%s166 + $0xa0] sm:$0xf]
      %v222 = vld [vmem:[%s166 + $0xa4] sm:$0xf]
      %v223 = vld [vmem:[%s166 + $0xa8] sm:$0xf]
      %v224 = vld [vmem:[%s166 + $0xac] sm:$0xf]
      %v225 = vld [vmem:[%s166 + $0xb0] sm:$0xf]
      %v226 = vld [vmem:[%s166 + $0xb4] sm:$0xf]
      %v227 = vld [vmem:[%s166 + $0xb8] sm:$0xf]
      %v228 = vld [vmem:[%s166 + $0xbc] sm:$0xf]
      %v229 = vld [vmem:[%s166 + $0xc0] sm:$0xf]
      %v230 = vld [vmem:[%s166 + $0xc4] sm:$0xf]
      %v231 = vld [vmem:[%s166 + $0xc8] sm:$0xf]
      %v232 = vld [vmem:[%s166 + $0xcc] sm:$0xf]
      %v233 = vld [vmem:[%s166 + $0xd0] sm:$0xf]
      %v234 = vld [vmem:[%s166 + $0xd4] sm:$0xf]
      %v243 = vunpack.c.l.b16 %v173
      %v244 = vunpack.c.h.b16 %v173
      %v245 = vunpack.c.l.b16 %v174
      %v246 = vunpack.c.h.b16 %v174
      %v247 = vunpack.c.l.b16 %v175
      %v248 = vunpack.c.h.b16 %v175
      %v249 = vunpack.c.l.b16 %v176
      %v250 = vunpack.c.h.b16 %v176
      %v251 = vunpack.c.l.b16 %v177
      %v252 = vunpack.c.h.b16 %v177
      %v253 = vunpack.c.l.b16 %v178
      %v254 = vunpack.c.h.b16 %v178
      %v255 = vunpack.c.l.b16 %v179
      %v256 = vunpack.c.h.b16 %v179
      %v257 = vunpack.c.l.b16 %v180
      %v258 = vunpack.c.h.b16 %v180
      %v259 = vpack.c.b16 %v247, %v243
      %v260 = vpack.c.b16 %v248, %v244
      %v261 = vpack.c.b16 %v249, %v245
      %v262 = vpack.c.b16 %v250, %v246
      %v263 = vpack.c.b16 %v255, %v251
      %v264 = vpack.c.b16 %v256, %v252
      %v265 = vpack.c.b16 %v257, %v253
      %v266 = vpack.c.b16 %v258, %v254
      %v327 = vunpack.c.l.b16 %v181
      %v328 = vunpack.c.l.b16 %v182
      %v329 = vunpack.c.l.b16 %v183
      %v330 = vunpack.c.l.b16 %v184
      %v331 = vunpack.c.l.b16 %v185
      %v332 = vunpack.c.l.b16 %v186
      %v333 = vunpack.c.l.b16 %v187
      %v334 = vunpack.c.l.b16 %v188
      %v335 = vunpack.c.l.b16 %v189
      %v336 = vunpack.c.l.b16 %v190
      %v337 = vunpack.c.l.b16 %v191
      %v338 = vunpack.c.l.b16 %v192
      %v339 = vunpack.c.l.b16 %v193
      %v340 = vunpack.c.l.b16 %v194
      %v341 = vunpack.c.l.b16 %v195
      %v342 = vunpack.c.l.b16 %v196
      %v343 = vunpack.c.l.b16 %v197
      %v344 = vunpack.c.l.b16 %v198
      %v345 = vunpack.c.l.b16 %v199
      %v346 = vunpack.c.l.b16 %v200
      %v347 = vunpack.c.l.b16 %v201
      %v348 = vunpack.c.l.b16 %v202
      %v349 = vunpack.c.l.b16 %v203
      %v350 = vunpack.c.l.b16 %v204
      %v351 = vunpack.c.l.b16 %v205
      %v352 = vunpack.c.l.b16 %v206
      %v353 = vunpack.c.l.b16 %v207
      %v354 = vunpack.c.l.b16 %v208
      %v355 = vunpack.c.l.b16 %v209
      %v356 = vunpack.c.l.b16 %v210
      %v357 = vunpack.c.l.b16 %v211
      %v358 = vunpack.c.l.b16 %v212
      %v359 = vunpack.c.l.b16 %v213
      %v360 = vunpack.c.l.b16 %v214
      %v361 = vunpack.c.l.b16 %v215
      %v362 = vunpack.c.l.b16 %v216
      %v363 = vunpack.c.l.b16 %v217
      %v364 = vunpack.c.l.b16 %v218
      %v365 = vunpack.c.l.b16 %v219
      %v366 = vunpack.c.l.b16 %v220
      %v367 = vunpack.c.l.b16 %v221
      %v368 = vunpack.c.l.b16 %v222
      %v369 = vunpack.c.l.b16 %v223
      %v370 = vunpack.c.l.b16 %v224
      %v371 = vunpack.c.l.b16 %v225
      %v372 = vunpack.c.l.b16 %v226
      %v373 = vunpack.c.l.b16 %v227
      %v374 = vunpack.c.l.b16 %v228
      %v375 = vunpack.c.l.b16 %v229
      %v376 = vunpack.c.l.b16 %v230
      %v377 = vunpack.c.l.b16 %v231
      %v378 = vunpack.c.l.b16 %v232
      %v379 = vunpack.c.l.b16 %v233
      %v380 = vunpack.c.l.b16 %v234
      %v381 = vpack.c.b16 %v328, %v327
      %v382 = vpack.c.b16 %v330, %v329
      %v383 = vpack.c.b16 %v332, %v331
      %v384 = vpack.c.b16 %v334, %v333
      %v385 = vpack.c.b16 %v336, %v335
      %v386 = vpack.c.b16 %v338, %v337
      %v387 = vpack.c.b16 %v340, %v339
      %v388 = vpack.c.b16 %v342, %v341
      %v389 = vpack.c.b16 %v344, %v343
      %v390 = vpack.c.b16 %v346, %v345
      %v391 = vpack.c.b16 %v348, %v347
      %v392 = vpack.c.b16 %v350, %v349
      %v393 = vpack.c.b16 %v352, %v351
      %v394 = vpack.c.b16 %v354, %v353
      %v395 = vpack.c.b16 %v356, %v355
      %v396 = vpack.c.b16 %v358, %v357
      %v397 = vpack.c.b16 %v360, %v359
      %v398 = vpack.c.b16 %v362, %v361
      %v399 = vpack.c.b16 %v364, %v363
      %v400 = vpack.c.b16 %v366, %v365
      %v401 = vpack.c.b16 %v368, %v367
      %v402 = vpack.c.b16 %v370, %v369
      %v403 = vpack.c.b16 %v372, %v371
      %v404 = vpack.c.b16 %v374, %v373
      %v405 = vpack.c.b16 %v376, %v375
      %v406 = vpack.c.b16 %v378, %v377
      %v407 = vpack.c.b16 %v380, %v379
      %vm435 = vcmask 392192
      %v437 = vsel %vm435, %v262, 0
      %v440 = vsel %vm435, %v266, 0
      %442 = vmatprep.subr.bf16.mxu0 0
      %443 = vmatpush1.bf16.msra.mxu0 %v388
      %444 = vmatprep.subr.bf16.mxu0 0
      %445 = vmatpush1.bf16.msra.mxu0 %v387
      %446 = vmatprep.subr.bf16.mxu0 0
      %447 = vmatpush1.bf16.msra.mxu0 %v386
      %448 = vmatprep.subr.bf16.mxu0 0
      %449 = vmatpush1.bf16.msra.mxu0 %v385
      %450 = vmatprep.subr.bf16.mxu0 0
      %451 = vmatpush1.bf16.msra.mxu0 %v384
      %452 = vmatprep.subr.bf16.mxu0 0
      %453 = vmatpush1.bf16.msra.mxu0 %v383
      %454 = vmatprep.subr.bf16.mxu0 0
      %455 = vmatpush1.bf16.msra.mxu0 %v382
      %456 = vmatprep.subr.bf16.mxu0 0
      %457 = vmatpush1.bf16.msra.mxu0 %v381
      %458 = vmatprep.subr.bf16.mxu0 0
      %459 = vmatpush2.bf16.msra.mxu0 %v396
      %460 = vmatprep.subr.bf16.mxu0 0
      %461 = vmatpush2.bf16.msra.mxu0 %v395
      %462 = vmatprep.subr.bf16.mxu0 0
      %463 = vmatpush2.bf16.msra.mxu0 %v394
      %464 = vmatprep.subr.bf16.mxu0 0
      %465 = vmatpush2.bf16.msra.mxu0 %v393
      %466 = vmatprep.subr.bf16.mxu0 0
      %467 = vmatpush2.bf16.msra.mxu0 %v392
      %468 = vmatprep.subr.bf16.mxu0 0
      %469 = vmatpush2.bf16.msra.mxu0 %v391
      %470 = vmatprep.subr.bf16.mxu0 0
      %471 = vmatpush2.bf16.msra.mxu0 %v390
      %472 = vmatprep.subr.bf16.mxu0 0
      %473 = vmatpush2.bf16.msra.mxu0 %v389
      %474 = vmatprep.mubr.bf16.mxu0 %v260
      %475 = vmatmul.mubr.bf16.gmra.mxu0 %v259
      %v476 = vpop.f32.mrf.mxu0
      %v477 = vadd.f32 0.0, %v476
      %v478 = vpop.f32.mrf.mxu0
      %v479 = vpop.f32.mrf.mxu0
      %v480 = vadd.f32 0.0, %v479
      %v481 = vpop.f32.mrf.mxu0
      %482 = vmatprep.mubr.bf16.mxu0 %v264
      %483 = vmatmul.mubr.bf16.gmra.mxu0 %v263
      %v484 = vpop.f32.mrf.mxu0
      %v485 = vadd.f32 0.0, %v484
      %v486 = vpop.f32.mrf.mxu0
      %v487 = vpop.f32.mrf.mxu0
      %v488 = vadd.f32 0.0, %v487
      %v489 = vpop.f32.mrf.mxu0
      %490 = vdwg.mxu0
      %491 = vmatprep.subr.bf16.mxu0 0
      %492 = vmatpush1.bf16.msra.mxu0 %v404
      %493 = vmatprep.subr.bf16.mxu0 0
      %494 = vmatpush1.bf16.msra.mxu0 %v403
      %495 = vmatprep.subr.bf16.mxu0 0
      %496 = vmatpush1.bf16.msra.mxu0 %v402
      %497 = vmatprep.subr.bf16.mxu0 0
      %498 = vmatpush1.bf16.msra.mxu0 %v401
      %499 = vmatprep.subr.bf16.mxu0 0
      %500 = vmatpush1.bf16.msra.mxu0 %v400
      %501 = vmatprep.subr.bf16.mxu0 0
      %502 = vmatpush1.bf16.msra.mxu0 %v399
      %503 = vmatprep.subr.bf16.mxu0 0
      %504 = vmatpush1.bf16.msra.mxu0 %v398
      %505 = vmatprep.subr.bf16.mxu0 0
      %506 = vmatpush1.bf16.msra.mxu0 %v397
      %507 = vmatprep.subr.bf16.mxu0 0
      %508 = vmatpush2.bf16.msra.mxu0 0
      %509 = vmatprep.subr.bf16.mxu0 0
      %510 = vmatpush2.bf16.msra.mxu0 0
      %511 = vmatprep.subr.bf16.mxu0 0
      %512 = vmatpush2.bf16.msra.mxu0 0
      %513 = vmatprep.subr.bf16.mxu0 0
      %514 = vmatpush2.bf16.msra.mxu0 0
      %515 = vmatprep.subr.bf16.mxu0 0
      %516 = vmatpush2.bf16.msra.mxu0 0
      %517 = vmatprep.subr.bf16.mxu0 0
      %518 = vmatpush2.bf16.msra.mxu0 %v407
      %519 = vmatprep.subr.bf16.mxu0 0
      %520 = vmatpush2.bf16.msra.mxu0 %v406
      %521 = vmatprep.subr.bf16.mxu0 0
      %522 = vmatpush2.bf16.msra.mxu0 %v405
      %523 = vmatprep.mubr.bf16.mxu0 %v437
      %524 = vmatmul.mubr.bf16.gmra.mxu0 %v261
      %v525 = vpop.f32.mrf.mxu0
      %v526 = vadd.f32 %v477, %v525
      %v527 = vpop.f32.mrf.mxu0
      %v528 = vpop.f32.mrf.mxu0
      %v529 = vadd.f32 %v480, %v528
      %v530 = vpop.f32.mrf.mxu0
      %531 = vmatprep.mubr.bf16.mxu0 %v440
      %532 = vmatmul.mubr.bf16.gmra.mxu0 %v265
      %v533 = vpop.f32.mrf.mxu0
      %v534 = vadd.f32 %v485, %v533
      %v535 = vpop.f32.mrf.mxu0
      %v536 = vpop.f32.mrf.mxu0
      %v537 = vadd.f32 %v488, %v536
      %v538 = vpop.f32.mrf.mxu0
      %539 = vdwg.mxu0
      %vm540 = vcmask 64512
      %v541 = vsel %vm540, %v526, 0.0
      %542 = vadd.xlane.f32.xlu0 %v541
      %v543 = vpop.xlane.xlu0 %542
      %v544 = vsel %vm540, %v529, 0.0
      %545 = vadd.xlane.f32.xlu0 %v544
      %v546 = vpop.xlane.xlu0 %545
      %v547 = vsel %vm540, %v534, 0.0
      %548 = vadd.xlane.f32.xlu0 %v547
      %v549 = vpop.xlane.xlu0 %548
      %v550 = vsel %vm540, %v537, 0.0
      %551 = vadd.xlane.f32.xlu0 %v550
      %v552 = vpop.xlane.xlu0 %551
      %v553 = vrcp.pop 8.0
      %v554 = vmul.f32 %v543, %v553
      %v555 = vmul.f32 %v546, %v553
      %v556 = vmul.f32 %v549, %v553
      %v557 = vmul.f32 %v552, %v553
      %v558 = vsub.f32 %v526, %v554
      %v559 = vsub.f32 %v529, %v555
      %v560 = vsub.f32 %v534, %v556
      %v561 = vsub.f32 %v537, %v557
      %v562 = vmul.f32 %v558, %v558
      %v563 = vmul.f32 %v559, %v559
      %v564 = vmul.f32 %v560, %v560
      %v565 = vmul.f32 %v561, %v561
      %v566 = vsel %vm540, %v562, 0.0
      %567 = vadd.xlane.f32.xlu0 %v566
      %v568 = vpop.xlane.xlu0 %567
      %v569 = vsel %vm540, %v563, 0.0
      %570 = vadd.xlane.f32.xlu0 %v569
      %v571 = vpop.xlane.xlu0 %570
      %v572 = vsel %vm540, %v564, 0.0
      %573 = vadd.xlane.f32.xlu0 %v572
      %v574 = vpop.xlane.xlu0 %573
      %v575 = vsel %vm540, %v565, 0.0
      %576 = vadd.xlane.f32.xlu0 %v575
      %v577 = vpop.xlane.xlu0 %576
      %v578 = vmul.f32 %v568, %v553
      %v579 = vmul.f32 %v571, %v553
      %v580 = vmul.f32 %v574, %v553
      %v581 = vmul.f32 %v577, %v553
      %v582 = vadd.f32 %v578, 1e-05
      %v583 = vadd.f32 %v579, 1e-05
      %v584 = vadd.f32 %v580, 1e-05
      %v585 = vadd.f32 %v581, 1e-05
      %v586 = vrsqrt.pop %v582
      %v587 = vrsqrt.pop %v583
      %v588 = vrsqrt.pop %v584
      %v589 = vrsqrt.pop %v585
      %v590 = vmul.f32 %v558, %v586
      %v591 = vmul.f32 %v559, %v587
      %v592 = vmul.f32 %v560, %v588
      %v593 = vmul.f32 %v561, %v589
      %s594 = sld [smem:[#allocation2]]
      %vm595 = vcmp.gt.f32.partialorder %v590, 0.0
      %vm596 = vcmp.gt.f32.partialorder %v591, 0.0
      %vm597 = vcmp.gt.f32.partialorder %v592, 0.0
      %vm598 = vcmp.gt.f32.partialorder %v593, 0.0
      %v599 = vstv %s594
      %v600 = vmul.f32 %v599, %v590
      %v601 = vmul.f32 %v599, %v591
      %v602 = vmul.f32 %v599, %v592
      %v603 = vmul.f32 %v599, %v593
      %v604 = vsel %vm595, %v590, %v600
      %v605 = vsel %vm596, %v591, %v601
      %v606 = vsel %vm597, %v592, %v602
      %v607 = vsel %vm598, %v593, %v603
      %608 = vst.msk [vmem:[%s171] sm:$0xff] %vm540, %v604
      %609 = vst.msk [vmem:[%s171 + $0x8] sm:$0xff] %vm540, %v605
      %610 = vst.msk [vmem:[%s171 + $0x10] sm:$0xff] %vm540, %v606
      %611 = vst.msk [vmem:[%s171 + $0x18] sm:$0xff] %vm540, %v607
      %p612 = scmp.lt.s32.totalorder %s15, 1
      %s613 = scalar_select %p612, %s15, 1
      %s614 = smul.addr %s613, 4
      %s615 = smul.addr %s614, 8
      %s616 = scalar_lea.vmem %s3, %s615
      // Predicated region
      $region33: #{_lambda_.8} parent=31 // pred_check
        %p617 = pneg %p101
      $region34: #{_lambda_.8} parent=31 // pred_check_branch
        %619 = sbr.rel (%p617) target = $region36
      $region35: #{_lambda_.8} parent=31 // pred_region
        _
      $region36: #{_lambda_.8} parent=31 // pred_fallthru
        _
    $region32: #{_lambda_.8} parent=5 // pred_fallthru
      _
    %p620 = scmp.le.s32.totalorder 2, %s10
    // Predicated region
    $region37: #{_lambda_.8} parent=5 // pred_check
      %p621 = pneg %p620
    $region38: #{_lambda_.8} parent=5 // pred_check_branch
      %623 = sbr.rel (%p621) target = $region40
    $region39: #{_lambda_.8} parent=5 // pred_region
      %s624 = ssub.s32 %s10, 2
      // Predicated region
      $region41: #{_lambda_.8} parent=39 // pred_check
        %p625 = pneg %p107
      $region42: #{_lambda_.8} parent=39 // pred_check_branch
        %627 = sbr.rel (%p625) target = $region44
      $region43: #{_lambda_.8} parent=39 // pred_region
        %p628 = scmp.lt.s32.totalorder %s16, 1
        %s629 = scalar_select %p628, %s16, 1
        %s630 = smul.addr %s629, 4
        %s631 = smul.addr %s630, 8
        %s632 = scalar_lea.vmem %s3, %s631
      $region44: #{_lambda_.8} parent=39 // pred_fallthru
        _
    $region40: #{_lambda_.8} parent=5 // pred_fallthru
      _
  $region6: #{_lambda_.8} parent=0 // loop_footer
    %s14 = sadd.s32 1, %s10
  $region7: #{_lambda_.8} parent=0 // loop_footer_branch
    %9 = sbr.rel target = $region3
  $region8: #{_lambda_.8} parent=0 // loop_exit
    _

// kernel: _lambda_.9
$region0: #{_lambda_.9}
  #allocation0 [shape = 'u32[]', space=smem, size = 0x4, offset = 0x4, fixed_abs, tag = 'smem constant byte address 0x4 - core index']
  #allocation1 [shape = 'u32[144,128]{1,0:T(1,128)}', space=vmem, size = 0x12000, scoped, tag = 'internal scratch']
  #allocation2 [shape = 'f32[1]{0:T(128)S(6)}', space=smem, size = 0x200, scoped, tag = 'scoped memory for _lambda_.9']
  %s0 = inlined_call_operand.vmem [shape: bf16[64,864], index: 0, kind: input, shape index: {}]
  %s1 = inlined_call_operand.vmem [shape: bf16[2,864,8], index: 1, kind: input, shape index: {}]
  %s2 = inlined_call_operand.<no memory space> [shape: f32[1], index: 2, kind: input, shape index: {}]
  %s3 = inlined_call_operand.vmem [shape: f32[2,64,8], index: 3, kind: output, shape index: {}]
  %s4 = sld [smem:[#allocation0]]
  $region45: #{_lambda_.9} parent=0
    _
  %s6 = ssub.s32 1, %s4
  %s7 = scalar_select 0, %s6, %s4
  %8 = sst [smem:[#allocation2]] %s2
  loop: start=0, step=1, limit=4
  $region2: #{_lambda_.9} parent=0 // loop_pre_header
    _
  $region3: #{_lambda_.9} parent=0 // loop_header
    %s10 = sphi 0, %s14
    %p11 = scmp.ge.s32.totalorder %s10, 4
    %s18 = sphi 0, %s18
    %s20 = sphi 0, %s18
    %s21 = sphi 0, %s20
    %s35 = sphi 0, %s21
    %s41 = sphi 0, %s43
    %s44 = sphi 0, %s41
    %s45 = sphi 0, %s44
    %s61 = sphi 0, %s45
    %s65 = sphi 0, %s65
    %s67 = sphi 0, %s65
    %s68 = sphi 0, %s67
    %s82 = sphi 0, %s68
    %s88 = sphi 0, %s90
    %s91 = sphi 0, %s88
    %s92 = sphi 0, %s91
    %s108 = sphi 0, %s92
  $region4: #{_lambda_.9} parent=0 // loop_header_branch
    %13 = sbr.rel (%p11) target = $region8
  $region5: #{_lambda_.9} parent=0 // loop_body
    %s15 = ssub.s32 %s10, 1
    %s16 = ssub.s32 %s10, 2
    %s17 = sadd.s32 %s10, 1
    %s19 = sadd.s32 %s18, 1
    %p22 = scmp.eq.s32.totalorder %s10, 1
    %p23 = scmp.ne.s32.totalorder %s18, %s20
    %p24 = scmp.eq.s32.totalorder %s10, 0
    %p25 = por %p23, %p24
    %p26 = scmp.ne.s32.totalorder %s18, %s20
    %p27 = scmp.eq.s32.totalorder %s15, 1
    %p28 = por %p26, %p27
    %p29 = scmp.ne.s32.totalorder %s20, %s21
    %p30 = scmp.eq.s32.totalorder %s15, 0
    %p31 = por %p29, %p30
    %p32 = scmp.ne.s32.totalorder %s20, %s21
    %p33 = scmp.eq.s32.totalorder %s16, 1
    %p34 = por %p32, %p33
    %p36 = scmp.ne.s32.totalorder %s21, %s35
    %p37 = scmp.eq.s32.totalorder %s16, 0
    %p38 = por %p36, %p37
    %s39 = ssub.s32 %s10, %s17
    %p40 = scmp.eq.s32.totalorder %s39, 0
    %s42 = sadd.s32 %s41, 1
    %s43 = scalar_select %p40, %s41, %s42
    %p46 = pneg %p40
    %p47 = scmp.eq.s32.totalorder %s10, 1
    %p48 = por %p46, %p47
    %p49 = scmp.ne.s32.totalorder %s41, %s44
    %p50 = scmp.eq.s32.totalorder %s10, 0
    %p51 = por %p49, %p50
    %p52 = scmp.ne.s32.totalorder %s41, %s44
    %p53 = scmp.eq.s32.totalorder %s15, 1
    %p54 = por %p52, %p53
    %p55 = scmp.ne.s32.totalorder %s44, %s45
    %p56 = scmp.eq.s32.totalorder %s15, 0
    %p57 = por %p55, %p56
    %p58 = scmp.ne.s32.totalorder %s44, %s45
    %p59 = scmp.eq.s32.totalorder %s16, 1
    %p60 = por %p58, %p59
    %p62 = scmp.ne.s32.totalorder %s45, %s61
    %p63 = scmp.eq.s32.totalorder %s16, 0
    %p64 = por %p62, %p63
    %s66 = sadd.s32 %s65, 1
    %p69 = scmp.eq.s32.totalorder %s10, 1
    %p70 = scmp.ne.s32.totalorder %s65, %s67
    %p71 = scmp.eq.s32.totalorder %s10, 0
    %p72 = por %p70, %p71
    %p73 = scmp.ne.s32.totalorder %s65, %s67
    %p74 = scmp.eq.s32.totalorder %s15, 1
    %p75 = por %p73, %p74
    %p76 = scmp.ne.s32.totalorder %s67, %s68
    %p77 = scmp.eq.s32.totalorder %s15, 0
    %p78 = por %p76, %p77
    %p79 = scmp.ne.s32.totalorder %s67, %s68
    %p80 = scmp.eq.s32.totalorder %s16, 1
    %p81 = por %p79, %p80
    %p83 = scmp.ne.s32.totalorder %s68, %s82
    %p84 = scmp.eq.s32.totalorder %s16, 0
    %p85 = por %p83, %p84
    %s86 = ssub.s32 %s10, %s17
    %p87 = scmp.eq.s32.totalorder %s86, 0
    %s89 = sadd.s32 %s88, 1
    %s90 = scalar_select %p87, %s88, %s89
    %p93 = pneg %p87
    %p94 = scmp.eq.s32.totalorder %s10, 1
    %p95 = por %p93, %p94
    %p96 = scmp.ne.s32.totalorder %s88, %s91
    %p97 = scmp.eq.s32.totalorder %s10, 0
    %p98 = por %p96, %p97
    %p99 = scmp.ne.s32.totalorder %s88, %s91
    %p100 = scmp.eq.s32.totalorder %s15, 1
    %p101 = por %p99, %p100
    %p102 = scmp.ne.s32.totalorder %s91, %s92
    %p103 = scmp.eq.s32.totalorder %s15, 0
    %p104 = por %p102, %p103
    %p105 = scmp.ne.s32.totalorder %s91, %s92
    %p106 = scmp.eq.s32.totalorder %s16, 1
    %p107 = por %p105, %p106
    %p109 = scmp.ne.s32.totalorder %s92, %s108
    %p110 = scmp.eq.s32.totalorder %s16, 0
    %p111 = por %p109, %p110
    %p112 = scmp.le.s32.totalorder 1, %s10
    %p113 = scmp.lt.s32.totalorder %s10, 3
    %p114 = pnand %p112, %p113
    %p115 = pneg %p114
    // Predicated region
    $region9: #{_lambda_.9} parent=5 // pred_check
      _
    $region10: #{_lambda_.9} parent=5 // pred_check_branch
      %117 = sbr.rel (%p114) target = $region12
    $region11: #{_lambda_.9} parent=5 // pred_region
      %s118 = ssub.s32 %s10, 1
      // Predicated region
      $region13: #{_lambda_.9} parent=11 // pred_check
        %p119 = pneg %p31
      $region14: #{_lambda_.9} parent=11 // pred_check_branch
        %121 = sbr.rel (%p119) target = $region16
      $region15: #{_lambda_.9} parent=11 // pred_region
        _
      $region16: #{_lambda_.9} parent=11 // pred_fallthru
        _
      // Predicated region
      $region17: #{_lambda_.9} parent=11 // pred_check
        %p122 = pneg %p78
      $region18: #{_lambda_.9} parent=11 // pred_check_branch
        %124 = sbr.rel (%p122) target = $region20
      $region19: #{_lambda_.9} parent=11 // pred_region
        _
      $region20: #{_lambda_.9} parent=11 // pred_fallthru
        _
    $region12: #{_lambda_.9} parent=5 // pred_fallthru
      _
    %p125 = scmp.lt.s32.totalorder %s10, 2
    // Predicated region
    $region21: #{_lambda_.9} parent=5 // pred_check
      %p126 = pneg %p125
    $region22: #{_lambda_.9} parent=5 // pred_check_branch
      %128 = sbr.rel (%p126) target = $region24
    $region23: #{_lambda_.9} parent=5 // pred_region
      // Predicated region
      $region25: #{_lambda_.9} parent=23 // pred_check
        %p129 = pneg %p51
      $region26: #{_lambda_.9} parent=23 // pred_check_branch
        %131 = sbr.rel (%p129) target = $region28
      $region27: #{_lambda_.9} parent=23 // pred_region
        %p132 = scmp.lt.s32.totalorder %s10, 1
        %s133 = scalar_select %p132, %s10, 1
        %s134 = smul.addr %s133, 108
        %s135 = smul.addr %s134, 4
        %s136 = scalar_lea.vmem %s1, %s135
      $region28: #{_lambda_.9} parent=23 // pred_fallthru
        _
    $region24: #{_lambda_.9} parent=5 // pred_fallthru
      _
    %p137 = scmp.le.s32.totalorder 1, %s10
    %p138 = scmp.lt.s32.totalorder %s10, 3
    %p139 = pnand %p137, %p138
    %p140 = pneg %p139
    // Predicated region
    $region29: #{_lambda_.9} parent=5 // pred_check
      _
    $region30: #{_lambda_.9} parent=5 // pred_check_branch
      %142 = sbr.rel (%p139) target = $region32
    $region31: #{_lambda_.9} parent=5 // pred_region
      %s143 = ssub.s32 %s10, 1
      %p144 = pneg %p31
      %p145 = pneg %p28
      %p146 = scmp.lt.s32.totalorder %s15, 1
      %s147 = scalar_select %p146, %s15, 1
      %s148 = smul.addr %s147, 108
      %s149 = smul.addr %s148, 4
      %s150 = scalar_lea.vmem %s1, %s149
      %p151 = pneg %p57
      %p152 = pneg %p54
      %p153 = pneg %p78
      %p154 = pneg %p75
      %p155 = pneg %p104
      %p156 = pneg %p101
      %p157 = scmp.lt.s32.totalorder %s15, 1
      %s158 = scalar_select %p157, %s15, 1
      %s159 = smul.addr %s158, 8
      %s160 = smul.addr %s159, 8
      %s161 = scalar_lea.vmem %s3, %s160
      %p162 = scmp.lt.s32.totalorder %s15, 1
      %s163 = scalar_select %p162, %s15, 1
      %s164 = smul.addr %s163, 108
      %s165 = smul.addr %s164, 4
      %s166 = scalar_lea.vmem %s1, %s165
      %p167 = scmp.lt.s32.totalorder %s15, 1
      %s168 = scalar_select %p167, %s15, 1
      %s169 = smul.addr %s168, 8
      %s170 = smul.addr %s169, 8
      %s171 = scalar_lea.vmem %s3, %s170
      %v173 = vld [vmem:[%s0] sm:$0xff]
      %v174 = vld [vmem:[%s0 + $0x8] sm:$0xff]
      %v175 = vld [vmem:[%s0 + $0x10] sm:$0xff]
      %v176 = vld [vmem:[%s0 + $0x18] sm:$0xf]
      %v177 = vld [vmem:[%s0 + $0x1c] sm:$0xff]
      %v178 = vld [vmem:[%s0 + $0x24] sm:$0xff]
      %v179 = vld [vmem:[%s0 + $0x2c] sm:$0xff]
      %v180 = vld [vmem:[%s0 + $0x34] sm:$0xf]
      %v181 = vld [vmem:[%s0 + $0x38] sm:$0xff]
      %v182 = vld [vmem:[%s0 + $0x40] sm:$0xff]
      %v183 = vld [vmem:[%s0 + $0x48] sm:$0xff]
      %v184 = vld [vmem:[%s0 + $0x50] sm:$0xf]
      %v185 = vld [vmem:[%s0 + $0x54] sm:$0xff]
      %v186 = vld [vmem:[%s0 + $0x5c] sm:$0xff]
      %v187 = vld [vmem:[%s0 + $0x64] sm:$0xff]
      %v188 = vld [vmem:[%s0 + $0x6c] sm:$0xf]
      %v189 = vld [vmem:[%s0 + $0x70] sm:$0xff]
      %v190 = vld [vmem:[%s0 + $0x78] sm:$0xff]
      %v191 = vld [vmem:[%s0 + $0x80] sm:$0xff]
      %v192 = vld [vmem:[%s0 + $0x88] sm:$0xf]
      %v193 = vld [vmem:[%s0 + $0x8c] sm:$0xff]
      %v194 = vld [vmem:[%s0 + $0x94] sm:$0xff]
      %v195 = vld [vmem:[%s0 + $0x9c] sm:$0xff]
      %v196 = vld [vmem:[%s0 + $0xa4] sm:$0xf]
      %v197 = vld [vmem:[%s0 + $0xa8] sm:$0xff]
      %v198 = vld [vmem:[%s0 + $0xb0] sm:$0xff]
      %v199 = vld [vmem:[%s0 + $0xb8] sm:$0xff]
      %v200 = vld [vmem:[%s0 + $0xc0] sm:$0xf]
      %v201 = vld [vmem:[%s0 + $0xc4] sm:$0xff]
      %v202 = vld [vmem:[%s0 + $0xcc] sm:$0xff]
      %v203 = vld [vmem:[%s0 + $0xd4] sm:$0xff]
      %v204 = vld [vmem:[%s0 + $0xdc] sm:$0xf]
      %v205 = vld [vmem:[%s166] sm:$0xf]
      %v206 = vld [vmem:[%s166 + $0x4] sm:$0xf]
      %v207 = vld [vmem:[%s166 + $0x8] sm:$0xf]
      %v208 = vld [vmem:[%s166 + $0xc] sm:$0xf]
      %v209 = vld [vmem:[%s166 + $0x10] sm:$0xf]
      %v210 = vld [vmem:[%s166 + $0x14] sm:$0xf]
      %v211 = vld [vmem:[%s166 + $0x18] sm:$0xf]
      %v212 = vld [vmem:[%s166 + $0x1c] sm:$0xf]
      %v213 = vld [vmem:[%s166 + $0x20] sm:$0xf]
      %v214 = vld [vmem:[%s166 + $0x24] sm:$0xf]
      %v215 = vld [vmem:[%s166 + $0x28] sm:$0xf]
      %v216 = vld [vmem:[%s166 + $0x2c] sm:$0xf]
      %v217 = vld [vmem:[%s166 + $0x30] sm:$0xf]
      %v218 = vld [vmem:[%s166 + $0x34] sm:$0xf]
      %v219 = vld [vmem:[%s166 + $0x38] sm:$0xf]
      %v220 = vld [vmem:[%s166 + $0x3c] sm:$0xf]
      %v221 = vld [vmem:[%s166 + $0x40] sm:$0xf]
      %v222 = vld [vmem:[%s166 + $0x44] sm:$0xf]
      %v223 = vld [vmem:[%s166 + $0x48] sm:$0xf]
      %v224 = vld [vmem:[%s166 + $0x4c] sm:$0xf]
      %v225 = vld [vmem:[%s166 + $0x50] sm:$0xf]
      %v226 = vld [vmem:[%s166 + $0x54] sm:$0xf]
      %v227 = vld [vmem:[%s166 + $0x58] sm:$0xf]
      %v228 = vld [vmem:[%s166 + $0x5c] sm:$0xf]
      %v229 = vld [vmem:[%s166 + $0x60] sm:$0xf]
      %v230 = vld [vmem:[%s166 + $0x64] sm:$0xf]
      %v231 = vld [vmem:[%s166 + $0x68] sm:$0xf]
      %v232 = vld [vmem:[%s166 + $0x6c] sm:$0xf]
      %v233 = vld [vmem:[%s166 + $0x70] sm:$0xf]
      %v234 = vld [vmem:[%s166 + $0x74] sm:$0xf]
      %v235 = vld [vmem:[%s166 + $0x78] sm:$0xf]
      %v236 = vld [vmem:[%s166 + $0x7c] sm:$0xf]
      %v237 = vld [vmem:[%s166 + $0x80] sm:$0xf]
      %v238 = vld [vmem:[%s166 + $0x84] sm:$0xf]
      %v239 = vld [vmem:[%s166 + $0x88] sm:$0xf]
      %v240 = vld [vmem:[%s166 + $0x8c] sm:$0xf]
      %v241 = vld [vmem:[%s166 + $0x90] sm:$0xf]
      %v242 = vld [vmem:[%s166 + $0x94] sm:$0xf]
      %v243 = vld [vmem:[%s166 + $0x98] sm:$0xf]
      %v244 = vld [vmem:[%s166 + $0x9c] sm:$0xf]
      %v245 = vld [vmem:[%s166 + $0xa0] sm:$0xf]
      %v246 = vld [vmem:[%s166 + $0xa4] sm:$0xf]
      %v247 = vld [vmem:[%s166 + $0xa8] sm:$0xf]
      %v248 = vld [vmem:[%s166 + $0xac] sm:$0xf]
      %v249 = vld [vmem:[%s166 + $0xb0] sm:$0xf]
      %v250 = vld [vmem:[%s166 + $0xb4] sm:$0xf]
      %v251 = vld [vmem:[%s166 + $0xb8] sm:$0xf]
      %v252 = vld [vmem:[%s166 + $0xbc] sm:$0xf]
      %v253 = vld [vmem:[%s166 + $0xc0] sm:$0xf]
      %v254 = vld [vmem:[%s166 + $0xc4] sm:$0xf]
      %v255 = vld [vmem:[%s166 + $0xc8] sm:$0xf]
      %v256 = vld [vmem:[%s166 + $0xcc] sm:$0xf]
      %v257 = vld [vmem:[%s166 + $0xd0] sm:$0xf]
      %v258 = vld [vmem:[%s166 + $0xd4] sm:$0xf]
      %v259 = vld [vmem:[%s166 + $0xd8] sm:$0xf]
      %v260 = vld [vmem:[%s166 + $0xdc] sm:$0xf]
      %v261 = vld [vmem:[%s166 + $0xe0] sm:$0xf]
      %v262 = vld [vmem:[%s166 + $0xe4] sm:$0xf]
      %v263 = vld [vmem:[%s166 + $0xe8] sm:$0xf]
      %v264 = vld [vmem:[%s166 + $0xec] sm:$0xf]
      %v265 = vld [vmem:[%s166 + $0xf0] sm:$0xf]
      %v266 = vld [vmem:[%s166 + $0xf4] sm:$0xf]
      %v267 = vld [vmem:[%s166 + $0xf8] sm:$0xf]
      %v268 = vld [vmem:[%s166 + $0xfc] sm:$0xf]
      %v269 = vld [vmem:[%s166 + $0x100] sm:$0xf]
      %v270 = vld [vmem:[%s166 + $0x104] sm:$0xf]
      %v271 = vld [vmem:[%s166 + $0x108] sm:$0xf]
      %v272 = vld [vmem:[%s166 + $0x10c] sm:$0xf]
      %v273 = vld [vmem:[%s166 + $0x110] sm:$0xf]
      %v274 = vld [vmem:[%s166 + $0x114] sm:$0xf]
      %v275 = vld [vmem:[%s166 + $0x118] sm:$0xf]
      %v276 = vld [vmem:[%s166 + $0x11c] sm:$0xf]
      %v277 = vld [vmem:[%s166 + $0x120] sm:$0xf]
      %v278 = vld [vmem:[%s166 + $0x124] sm:$0xf]
      %v279 = vld [vmem:[%s166 + $0x128] sm:$0xf]
      %v280 = vld [vmem:[%s166 + $0x12c] sm:$0xf]
      %v281 = vld [vmem:[%s166 + $0x130] sm:$0xf]
      %v282 = vld [vmem:[%s166 + $0x134] sm:$0xf]
      %v283 = vld [vmem:[%s166 + $0x138] sm:$0xf]
      %v284 = vld [vmem:[%s166 + $0x13c] sm:$0xf]
      %v285 = vld [vmem:[%s166 + $0x140] sm:$0xf]
      %v286 = vld [vmem:[%s166 + $0x144] sm:$0xf]
      %v287 = vld [vmem:[%s166 + $0x148] sm:$0xf]
      %v288 = vld [vmem:[%s166 + $0x14c] sm:$0xf]
      %v289 = vld [vmem:[%s166 + $0x150] sm:$0xf]
      %v290 = vld [vmem:[%s166 + $0x154] sm:$0xf]
      %v291 = vld [vmem:[%s166 + $0x158] sm:$0xf]
      %v292 = vld [vmem:[%s166 + $0x15c] sm:$0xf]
      %v293 = vld [vmem:[%s166 + $0x160] sm:$0xf]
      %v294 = vld [vmem:[%s166 + $0x164] sm:$0xf]
      %v295 = vld [vmem:[%s166 + $0x168] sm:$0xf]
      %v296 = vld [vmem:[%s166 + $0x16c] sm:$0xf]
      %v297 = vld [vmem:[%s166 + $0x170] sm:$0xf]
      %v298 = vld [vmem:[%s166 + $0x174] sm:$0xf]
      %v299 = vld [vmem:[%s166 + $0x178] sm:$0xf]
      %v300 = vld [vmem:[%s166 + $0x17c] sm:$0xf]
      %v301 = vld [vmem:[%s166 + $0x180] sm:$0xf]
      %v302 = vld [vmem:[%s166 + $0x184] sm:$0xf]
      %v303 = vld [vmem:[%s166 + $0x188] sm:$0xf]
      %v304 = vld [vmem:[%s166 + $0x18c] sm:$0xf]
      %v305 = vld [vmem:[%s166 + $0x190] sm:$0xf]
      %v306 = vld [vmem:[%s166 + $0x194] sm:$0xf]
      %v307 = vld [vmem:[%s166 + $0x198] sm:$0xf]
      %v308 = vld [vmem:[%s166 + $0x19c] sm:$0xf]
      %v309 = vld [vmem:[%s166 + $0x1a0] sm:$0xf]
      %v310 = vld [vmem:[%s166 + $0x1a4] sm:$0xf]
      %v311 = vld [vmem:[%s166 + $0x1a8] sm:$0xf]
      %v312 = vld [vmem:[%s166 + $0x1ac] sm:$0xf]
      %v345 = vunpack.c.l.b16 %v173
      %v346 = vunpack.c.h.b16 %v173
      %v347 = vunpack.c.l.b16 %v174
      %v348 = vunpack.c.h.b16 %v174
      %v349 = vunpack.c.l.b16 %v175
      %v350 = vunpack.c.h.b16 %v175
      %v351 = vunpack.c.l.b16 %v176
      %v352 = vunpack.c.l.b16 %v177
      %v353 = vunpack.c.h.b16 %v177
      %v354 = vunpack.c.l.b16 %v178
      %v355 = vunpack.c.h.b16 %v178
      %v356 = vunpack.c.l.b16 %v179
      %v357 = vunpack.c.h.b16 %v179
      %v358 = vunpack.c.l.b16 %v180
      %v359 = vunpack.c.l.b16 %v181
      %v360 = vunpack.c.h.b16 %v181
      %v361 = vunpack.c.l.b16 %v182
      %v362 = vunpack.c.h.b16 %v182
      %v363 = vunpack.c.l.b16 %v183
      %v364 = vunpack.c.h.b16 %v183
      %v365 = vunpack.c.l.b16 %v184
      %v366 = vunpack.c.l.b16 %v185
      %v367 = vunpack.c.h.b16 %v185
      %v368 = vunpack.c.l.b16 %v186
      %v369 = vunpack.c.h.b16 %v186
      %v370 = vunpack.c.l.b16 %v187
      %v371 = vunpack.c.h.b16 %v187
      %v372 = vunpack.c.l.b16 %v188
      %v373 = vunpack.c.l.b16 %v189
      %v374 = vunpack.c.h.b16 %v189
      %v375 = vunpack.c.l.b16 %v190
      %v376 = vunpack.c.h.b16 %v190
      %v377 = vunpack.c.l.b16 %v191
      %v378 = vunpack.c.h.b16 %v191
      %v379 = vunpack.c.l.b16 %v192
      %v380 = vunpack.c.l.b16 %v193
      %v381 = vunpack.c.h.b16 %v193
      %v382 = vunpack.c.l.b16 %v194
      %v383 = vunpack.c.h.b16 %v194
      %v384 = vunpack.c.l.b16 %v195
      %v385 = vunpack.c.h.b16 %v195
      %v386 = vunpack.c.l.b16 %v196
      %v387 = vunpack.c.l.b16 %v197
      %v388 = vunpack.c.h.b16 %v197
      %v389 = vunpack.c.l.b16 %v198
      %v390 = vunpack.c.h.b16 %v198
      %v391 = vunpack.c.l.b16 %v199
      %v392 = vunpack.c.h.b16 %v199
      %v393 = vunpack.c.l.b16 %v200
      %v394 = vunpack.c.l.b16 %v201
      %v395 = vunpack.c.h.b16 %v201
      %v396 = vunpack.c.l.b16 %v202
      %v397 = vunpack.c.h.b16 %v202
      %v398 = vunpack.c.l.b16 %v203
      %v399 = vunpack.c.h.b16 %v203
      %v400 = vunpack.c.l.b16 %v204
      %v401 = vpack.c.b16 %v352, %v345
      %v402 = vpack.c.b16 %v353, %v346
      %v403 = vpack.c.b16 %v354, %v347
      %v404 = vpack.c.b16 %v355, %v348
      %v405 = vpack.c.b16 %v356, %v349
      %v406 = vpack.c.b16 %v357, %v350
      %v407 = vpack.c.b16 %v358, %v351
      %v408 = vpack.c.b16 %v366, %v359
      %v409 = vpack.c.b16 %v367, %v360
      %v410 = vpack.c.b16 %v368, %v361
      %v411 = vpack.c.b16 %v369, %v362
      %v412 = vpack.c.b16 %v370, %v363
      %v413 = vpack.c.b16 %v371, %v364
      %v414 = vpack.c.b16 %v372, %v365
      %v415 = vpack.c.b16 %v380, %v373
      %v416 = vpack.c.b16 %v381, %v374
      %v417 = vpack.c.b16 %v382, %v375
      %v418 = vpack.c.b16 %v383, %v376
      %v419 = vpack.c.b16 %v384, %v377
      %v420 = vpack.c.b16 %v385, %v378
      %v421 = vpack.c.b16 %v386, %v379
      %v422 = vpack.c.b16 %v394, %v387
      %v423 = vpack.c.b16 %v395, %v388
      %v424 = vpack.c.b16 %v396, %v389
      %v425 = vpack.c.b16 %v397, %v390
      %v426 = vpack.c.b16 %v398, %v391
      %v427 = vpack.c.b16 %v399, %v392
      %v428 = vpack.c.b16 %v400, %v393
      %v561 = vunpack.c.l.b16 %v205
      %v562 = vunpack.c.l.b16 %v206
      %v563 = vunpack.c.l.b16 %v207
      %v564 = vunpack.c.l.b16 %v208
      %v565 = vunpack.c.l.b16 %v209
      %v566 = vunpack.c.l.b16 %v210
      %v567 = vunpack.c.l.b16 %v211
      %v568 = vunpack.c.l.b16 %v212
      %v569 = vunpack.c.l.b16 %v213
      %v570 = vunpack.c.l.b16 %v214
      %v571 = vunpack.c.l.b16 %v215
      %v572 = vunpack.c.l.b16 %v216
      %v573 = vunpack.c.l.b16 %v217
      %v574 = vunpack.c.l.b16 %v218
      %v575 = vunpack.c.l.b16 %v219
      %v576 = vunpack.c.l.b16 %v220
      %v577 = vunpack.c.l.b16 %v221
      %v578 = vunpack.c.l.b16 %v222
      %v579 = vunpack.c.l.b16 %v223
      %v580 = vunpack.c.l.b16 %v224
      %v581 = vunpack.c.l.b16 %v225
      %v582 = vunpack.c.l.b16 %v226
      %v583 = vunpack.c.l.b16 %v227
      %v584 = vunpack.c.l.b16 %v228
      %v585 = vunpack.c.l.b16 %v229
      %v586 = vunpack.c.l.b16 %v230
      %v587 = vunpack.c.l.b16 %v231
      %v588 = vunpack.c.l.b16 %v232
      %v589 = vunpack.c.l.b16 %v233
      %v590 = vunpack.c.l.b16 %v234
      %v591 = vunpack.c.l.b16 %v235
      %v592 = vunpack.c.l.b16 %v236
      %v593 = vunpack.c.l.b16 %v237
      %v594 = vunpack.c.l.b16 %v238
      %v595 = vunpack.c.l.b16 %v239
      %v596 = vunpack.c.l.b16 %v240
      %v597 = vunpack.c.l.b16 %v241
      %v598 = vunpack.c.l.b16 %v242
      %v599 = vunpack.c.l.b16 %v243
      %v600 = vunpack.c.l.b16 %v244
      %v601 = vunpack.c.l.b16 %v245
      %v602 = vunpack.c.l.b16 %v246
      %v603 = vunpack.c.l.b16 %v247
      %v604 = vunpack.c.l.b16 %v248
      %v605 = vunpack.c.l.b16 %v249
      %v606 = vunpack.c.l.b16 %v250
      %v607 = vunpack.c.l.b16 %v251
      %v608 = vunpack.c.l.b16 %v252
      %v609 = vunpack.c.l.b16 %v253
      %v610 = vunpack.c.l.b16 %v254
      %v611 = vunpack.c.l.b16 %v255
      %v612 = vunpack.c.l.b16 %v256
      %v613 = vunpack.c.l.b16 %v257
      %v614 = vunpack.c.l.b16 %v258
      %v615 = vunpack.c.l.b16 %v259
      %v616 = vunpack.c.l.b16 %v260
      %v617 = vunpack.c.l.b16 %v261
      %v618 = vunpack.c.l.b16 %v262
      %v619 = vunpack.c.l.b16 %v263
      %v620 = vunpack.c.l.b16 %v264
      %v621 = vunpack.c.l.b16 %v265
      %v622 = vunpack.c.l.b16 %v266
      %v623 = vunpack.c.l.b16 %v267
      %v624 = vunpack.c.l.b16 %v268
      %v625 = vunpack.c.l.b16 %v269
      %v626 = vunpack.c.l.b16 %v270
      %v627 = vunpack.c.l.b16 %v271
      %v628 = vunpack.c.l.b16 %v272
      %v629 = vunpack.c.l.b16 %v273
      %v630 = vunpack.c.l.b16 %v274
      %v631 = vunpack.c.l.b16 %v275
      %v632 = vunpack.c.l.b16 %v276
      %v633 = vunpack.c.l.b16 %v277
      %v634 = vunpack.c.l.b16 %v278
      %v635 = vunpack.c.l.b16 %v279
      %v636 = vunpack.c.l.b16 %v280
      %v637 = vunpack.c.l.b16 %v281
      %v638 = vunpack.c.l.b16 %v282
      %v639 = vunpack.c.l.b16 %v283
      %v640 = vunpack.c.l.b16 %v284
      %v641 = vunpack.c.l.b16 %v285
      %v642 = vunpack.c.l.b16 %v286
      %v643 = vunpack.c.l.b16 %v287
      %v644 = vunpack.c.l.b16 %v288
      %v645 = vunpack.c.l.b16 %v289
      %v646 = vunpack.c.l.b16 %v290
      %v647 = vunpack.c.l.b16 %v291
      %v648 = vunpack.c.l.b16 %v292
      %v649 = vunpack.c.l.b16 %v293
      %v650 = vunpack.c.l.b16 %v294
      %v651 = vunpack.c.l.b16 %v295
      %v652 = vunpack.c.l.b16 %v296
      %v653 = vunpack.c.l.b16 %v297
      %v654 = vunpack.c.l.b16 %v298
      %v655 = vunpack.c.l.b16 %v299
      %v656 = vunpack.c.l.b16 %v300
      %v657 = vunpack.c.l.b16 %v301
      %v658 = vunpack.c.l.b16 %v302
      %v659 = vunpack.c.l.b16 %v303
      %v660 = vunpack.c.l.b16 %v304
      %v661 = vunpack.c.l.b16 %v305
      %v662 = vunpack.c.l.b16 %v306
      %v663 = vunpack.c.l.b16 %v307
      %v664 = vunpack.c.l.b16 %v308
      %v665 = vunpack.c.l.b16 %v309
      %v666 = vunpack.c.l.b16 %v310
      %v667 = vunpack.c.l.b16 %v311
      %v668 = vunpack.c.l.b16 %v312
      %v669 = vpack.c.b16 %v562, %v561
      %v670 = vpack.c.b16 %v564, %v563
      %v671 = vpack.c.b16 %v566, %v565
      %v672 = vpack.c.b16 %v568, %v567
      %v673 = vpack.c.b16 %v570, %v569
      %v674 = vpack.c.b16 %v572, %v571
      %v675 = vpack.c.b16 %v574, %v573
      %v676 = vpack.c.b16 %v576, %v575
      %v677 = vpack.c.b16 %v578, %v577
      %v678 = vpack.c.b16 %v580, %v579
      %v679 = vpack.c.b16 %v582, %v581
      %v680 = vpack.c.b16 %v584, %v583
      %v681 = vpack.c.b16 %v586, %v585
      %v682 = vpack.c.b16 %v588, %v587
      %v683 = vpack.c.b16 %v590, %v589
      %v684 = vpack.c.b16 %v592, %v591
      %v685 = vpack.c.b16 %v594, %v593
      %v686 = vpack.c.b16 %v596, %v595
      %v687 = vpack.c.b16 %v598, %v597
      %v688 = vpack.c.b16 %v600, %v599
      %v689 = vpack.c.b16 %v602, %v601
      %v690 = vpack.c.b16 %v604, %v603
      %v691 = vpack.c.b16 %v606, %v605
      %v692 = vpack.c.b16 %v608, %v607
      %v693 = vpack.c.b16 %v610, %v609
      %v694 = vpack.c.b16 %v612, %v611
      %v695 = vpack.c.b16 %v614, %v613
      %v696 = vpack.c.b16 %v616, %v615
      %v697 = vpack.c.b16 %v618, %v617
      %v698 = vpack.c.b16 %v620, %v619
      %v699 = vpack.c.b16 %v622, %v621
      %v700 = vpack.c.b16 %v624, %v623
      %v701 = vpack.c.b16 %v626, %v625
      %v702 = vpack.c.b16 %v628, %v627
      %v703 = vpack.c.b16 %v630, %v629
      %v704 = vpack.c.b16 %v632, %v631
      %v705 = vpack.c.b16 %v634, %v633
      %v706 = vpack.c.b16 %v636, %v635
      %v707 = vpack.c.b16 %v638, %v637
      %v708 = vpack.c.b16 %v640, %v639
      %v709 = vpack.c.b16 %v642, %v641
      %v710 = vpack.c.b16 %v644, %v643
      %v711 = vpack.c.b16 %v646, %v645
      %v712 = vpack.c.b16 %v648, %v647
      %v713 = vpack.c.b16 %v650, %v649
      %v714 = vpack.c.b16 %v652, %v651
      %v715 = vpack.c.b16 %v654, %v653
      %v716 = vpack.c.b16 %v656, %v655
      %v717 = vpack.c.b16 %v658, %v657
      %v718 = vpack.c.b16 %v660, %v659
      %v719 = vpack.c.b16 %v662, %v661
      %v720 = vpack.c.b16 %v664, %v663
      %v721 = vpack.c.b16 %v666, %v665
      %v722 = vpack.c.b16 %v668, %v667
      %vm777 = vcmask 785408
      %v779 = vsel %vm777, %v407, 0
      %v782 = vsel %vm777, %v414, 0
      %v785 = vsel %vm777, %v421, 0
      %v788 = vsel %vm777, %v428, 0
      %790 = vmatprep.subr.bf16.mxu0 0
      %791 = vmatpush1.bf16.msra.mxu0 %v676
      %792 = vmatprep.subr.bf16.mxu0 0
      %793 = vmatpush1.bf16.msra.mxu0 %v675
      %794 = vmatprep.subr.bf16.mxu0 0
      %795 = vmatpush1.bf16.msra.mxu0 %v674
      %796 = vmatprep.subr.bf16.mxu0 0
      %797 = vmatpush1.bf16.msra.mxu0 %v673
      %798 = vmatprep.subr.bf16.mxu0 0
      %799 = vmatpush1.bf16.msra.mxu0 %v672
      %800 = vmatprep.subr.bf16.mxu0 0
      %801 = vmatpush1.bf16.msra.mxu0 %v671
      %802 = vmatprep.subr.bf16.mxu0 0
      %803 = vmatpush1.bf16.msra.mxu0 %v670
      %804 = vmatprep.subr.bf16.mxu0 0
      %805 = vmatpush1.bf16.msra.mxu0 %v669
      %806 = vmatprep.subr.bf16.mxu0 0
      %807 = vmatpush2.bf16.msra.mxu0 %v684
      %808 = vmatprep.subr.bf16.mxu0 0
      %809 = vmatpush2.bf16.msra.mxu0 %v683
      %810 = vmatprep.subr.bf16.mxu0 0
      %811 = vmatpush2.bf16.msra.mxu0 %v682
      %812 = vmatprep.subr.bf16.mxu0 0
      %813 = vmatpush2.bf16.msra.mxu0 %v681
      %814 = vmatprep.subr.bf16.mxu0 0
      %815 = vmatpush2.bf16.msra.mxu0 %v680
      %816 = vmatprep.subr.bf16.mxu0 0
      %817 = vmatpush2.bf16.msra.mxu0 %v679
      %818 = vmatprep.subr.bf16.mxu0 0
      %819 = vmatpush2.bf16.msra.mxu0 %v678
      %820 = vmatprep.subr.bf16.mxu0 0
      %821 = vmatpush2.bf16.msra.mxu0 %v677
      %822 = vmatprep.mubr.bf16.mxu0 %v402
      %823 = vmatmul.mubr.bf16.gmra.mxu0 %v401
      %v824 = vpop.f32.mrf.mxu0
      %v825 = vadd.f32 0.0, %v824
      %v826 = vpop.f32.mrf.mxu0
      %v827 = vpop.f32.mrf.mxu0
      %v828 = vadd.f32 0.0, %v827
      %v829 = vpop.f32.mrf.mxu0
      %830 = vmatprep.mubr.bf16.mxu0 %v409
      %831 = vmatmul.mubr.bf16.gmra.mxu0 %v408
      %v832 = vpop.f32.mrf.mxu0
      %v833 = vadd.f32 0.0, %v832
      %v834 = vpop.f32.mrf.mxu0
      %v835 = vpop.f32.mrf.mxu0
      %v836 = vadd.f32 0.0, %v835
      %v837 = vpop.f32.mrf.mxu0
      %838 = vmatprep.mubr.bf16.mxu0 %v416
      %839 = vmatmul.mubr.bf16.gmra.mxu0 %v415
      %v840 = vpop.f32.mrf.mxu0
      %v841 = vadd.f32 0.0, %v840
      %v842 = vpop.f32.mrf.mxu0
      %v843 = vpop.f32.mrf.mxu0
      %v844 = vadd.f32 0.0, %v843
      %v845 = vpop.f32.mrf.mxu0
      %846 = vmatprep.mubr.bf16.mxu0 %v423
      %847 = vmatmul.mubr.bf16.gmra.mxu0 %v422
      %v848 = vpop.f32.mrf.mxu0
      %v849 = vadd.f32 0.0, %v848
      %v850 = vpop.f32.mrf.mxu0
      %v851 = vpop.f32.mrf.mxu0
      %v852 = vadd.f32 0.0, %v851
      %v853 = vpop.f32.mrf.mxu0
      %854 = vdwg.mxu0
      %855 = vmatprep.subr.bf16.mxu0 0
      %856 = vmatpush1.bf16.msra.mxu0 %v692
      %857 = vmatprep.subr.bf16.mxu0 0
      %858 = vmatpush1.bf16.msra.mxu0 %v691
      %859 = vmatprep.subr.bf16.mxu0 0
      %860 = vmatpush1.bf16.msra.mxu0 %v690
      %861 = vmatprep.subr.bf16.mxu0 0
      %862 = vmatpush1.bf16.msra.mxu0 %v689
      %863 = vmatprep.subr.bf16.mxu0 0
      %864 = vmatpush1.bf16.msra.mxu0 %v688
      %865 = vmatprep.subr.bf16.mxu0 0
      %866 = vmatpush1.bf16.msra.mxu0 %v687
      %867 = vmatprep.subr.bf16.mxu0 0
      %868 = vmatpush1.bf16.msra.mxu0 %v686
      %869 = vmatprep.subr.bf16.mxu0 0
      %870 = vmatpush1.bf16.msra.mxu0 %v685
      %871 = vmatprep.subr.bf16.mxu0 0
      %872 = vmatpush2.bf16.msra.mxu0 %v700
      %873 = vmatprep.subr.bf16.mxu0 0
      %874 = vmatpush2.bf16.msra.mxu0 %v699
      %875 = vmatprep.subr.bf16.mxu0 0
      %876 = vmatpush2.bf16.msra.mxu0 %v698
      %877 = vmatprep.subr.bf16.mxu0 0
      %878 = vmatpush2.bf16.msra.mxu0 %v697
      %879 = vmatprep.subr.bf16.mxu0 0
      %880 = vmatpush2.bf16.msra.mxu0 %v696
      %881 = vmatprep.subr.bf16.mxu0 0
      %882 = vmatpush2.bf16.msra.mxu0 %v695
      %883 = vmatprep.subr.bf16.mxu0 0
      %884 = vmatpush2.bf16.msra.mxu0 %v694
      %885 = vmatprep.subr.bf16.mxu0 0
      %886 = vmatpush2.bf16.msra.mxu0 %v693
      %887 = vmatprep.mubr.bf16.mxu0 %v404
      %888 = vmatmul.mubr.bf16.gmra.mxu0 %v403
      %v889 = vpop.f32.mrf.mxu0
      %v890 = vadd.f32 %v825, %v889
      %v891 = vpop.f32.mrf.mxu0
      %v892 = vpop.f32.mrf.mxu0
      %v893 = vadd.f32 %v828, %v892
      %v894 = vpop.f32.mrf.mxu0
      %895 = vmatprep.mubr.bf16.mxu0 %v411
      %896 = vmatmul.mubr.bf16.gmra.mxu0 %v410
      %v897 = vpop.f32.mrf.mxu0
      %v898 = vadd.f32 %v833, %v897
      %v899 = vpop.f32.mrf.mxu0
      %v900 = vpop.f32.mrf.mxu0
      %v901 = vadd.f32 %v836, %v900
      %v902 = vpop.f32.mrf.mxu0
      %903 = vmatprep.mubr.bf16.mxu0 %v418
      %904 = vmatmul.mubr.bf16.gmra.mxu0 %v417
      %v905 = vpop.f32.mrf.mxu0
      %v906 = vadd.f32 %v841, %v905
      %v907 = vpop.f32.mrf.mxu0
      %v908 = vpop.f32.mrf.mxu0
      %v909 = vadd.f32 %v844, %v908
      %v910 = vpop.f32.mrf.mxu0
      %911 = vmatprep.mubr.bf16.mxu0 %v425
      %912 = vmatmul.mubr.bf16.gmra.mxu0 %v424
      %v913 = vpop.f32.mrf.mxu0
      %v914 = vadd.f32 %v849, %v913
      %v915 = vpop.f32.mrf.mxu0
      %v916 = vpop.f32.mrf.mxu0
      %v917 = vadd.f32 %v852, %v916
      %v918 = vpop.f32.mrf.mxu0
      %919 = vdwg.mxu0
      %920 = vmatprep.subr.bf16.mxu0 0
      %921 = vmatpush1.bf16.msra.mxu0 %v708
      %922 = vmatprep.subr.bf16.mxu0 0
      %923 = vmatpush1.bf16.msra.mxu0 %v707
      %924 = vmatprep.subr.bf16.mxu0 0
      %925 = vmatpush1.bf16.msra.mxu0 %v706
      %926 = vmatprep.subr.bf16.mxu0 0
      %927 = vmatpush1.bf16.msra.mxu0 %v705
      %928 = vmatprep.subr.bf16.mxu0 0
      %929 = vmatpush1.bf16.msra.mxu0 %v704
      %930 = vmatprep.subr.bf16.mxu0 0
      %931 = vmatpush1.bf16.msra.mxu0 %v703
      %932 = vmatprep.subr.bf16.mxu0 0
      %933 = vmatpush1.bf16.msra.mxu0 %v702
      %934 = vmatprep.subr.bf16.mxu0 0
      %935 = vmatpush1.bf16.msra.mxu0 %v701
      %936 = vmatprep.subr.bf16.mxu0 0
      %937 = vmatpush2.bf16.msra.mxu0 %v716
      %938 = vmatprep.subr.bf16.mxu0 0
      %939 = vmatpush2.bf16.msra.mxu0 %v715
      %940 = vmatprep.subr.bf16.mxu0 0
      %941 = vmatpush2.bf16.msra.mxu0 %v714
      %942 = vmatprep.subr.bf16.mxu0 0
      %943 = vmatpush2.bf16.msra.mxu0 %v713
      %944 = vmatprep.subr.bf16.mxu0 0
      %945 = vmatpush2.bf16.msra.mxu0 %v712
      %946 = vmatprep.subr.bf16.mxu0 0
      %947 = vmatpush2.bf16.msra.mxu0 %v711
      %948 = vmatprep.subr.bf16.mxu0 0
      %949 = vmatpush2.bf16.msra.mxu0 %v710
      %950 = vmatprep.subr.bf16.mxu0 0
      %951 = vmatpush2.bf16.msra.mxu0 %v709
      %952 = vmatprep.mubr.bf16.mxu0 %v406
      %953 = vmatmul.mubr.bf16.gmra.mxu0 %v405
      %v954 = vpop.f32.mrf.mxu0
      %v955 = vadd.f32 %v890, %v954
      %v956 = vpop.f32.mrf.mxu0
      %v957 = vpop.f32.mrf.mxu0
      %v958 = vadd.f32 %v893, %v957
      %v959 = vpop.f32.mrf.mxu0
      %960 = vmatprep.mubr.bf16.mxu0 %v413
      %961 = vmatmul.mubr.bf16.gmra.mxu0 %v412
      %v962 = vpop.f32.mrf.mxu0
      %v963 = vadd.f32 %v898, %v962
      %v964 = vpop.f32.mrf.mxu0
      %v965 = vpop.f32.mrf.mxu0
      %v966 = vadd.f32 %v901, %v965
      %v967 = vpop.f32.mrf.mxu0
      %968 = vmatprep.mubr.bf16.mxu0 %v420
      %969 = vmatmul.mubr.bf16.gmra.mxu0 %v419
      %v970 = vpop.f32.mrf.mxu0
      %v971 = vadd.f32 %v906, %v970
      %v972 = vpop.f32.mrf.mxu0
      %v973 = vpop.f32.mrf.mxu0
      %v974 = vadd.f32 %v909, %v973
      %v975 = vpop.f32.mrf.mxu0
      %976 = vmatprep.mubr.bf16.mxu0 %v427
      %977 = vmatmul.mubr.bf16.gmra.mxu0 %v426
      %v978 = vpop.f32.mrf.mxu0
      %v979 = vadd.f32 %v914, %v978
      %v980 = vpop.f32.mrf.mxu0
      %v981 = vpop.f32.mrf.mxu0
      %v982 = vadd.f32 %v917, %v981
      %v983 = vpop.f32.mrf.mxu0
      %984 = vdwg.mxu0
      %985 = vmatprep.subr.bf16.mxu0 0
      %986 = vmatpush1.bf16.msra.mxu0 0
      %987 = vmatprep.subr.bf16.mxu0 0
      %988 = vmatpush1.bf16.msra.mxu0 0
      %989 = vmatprep.subr.bf16.mxu0 0
      %990 = vmatpush1.bf16.msra.mxu0 %v722
      %991 = vmatprep.subr.bf16.mxu0 0
      %992 = vmatpush1.bf16.msra.mxu0 %v721
      %993 = vmatprep.subr.bf16.mxu0 0
      %994 = vmatpush1.bf16.msra.mxu0 %v720
      %995 = vmatprep.subr.bf16.mxu0 0
      %996 = vmatpush1.bf16.msra.mxu0 %v719
      %997 = vmatprep.subr.bf16.mxu0 0
      %998 = vmatpush1.bf16.msra.mxu0 %v718
      %999 = vmatprep.subr.bf16.mxu0 0
      %1000 = vmatpush1.bf16.msra.mxu0 %v717
      %1001 = vmatprep.subr.bf16.mxu0 0
      %1002 = vmatpush2.bf16.msra.mxu0 0
      %1003 = vmatprep.subr.bf16.mxu0 0
      %1004 = vmatpush2.bf16.msra.mxu0 0
      %1005 = vmatprep.subr.bf16.mxu0 0
      %1006 = vmatpush2.bf16.msra.mxu0 0
      %1007 = vmatprep.subr.bf16.mxu0 0
      %1008 = vmatpush2.bf16.msra.mxu0 0
      %1009 = vmatprep.subr.bf16.mxu0 0
      %1010 = vmatpush2.bf16.msra.mxu0 0
      %1011 = vmatprep.subr.bf16.mxu0 0
      %1012 = vmatpush2.bf16.msra.mxu0 0
      %1013 = vmatprep.subr.bf16.mxu0 0
      %1014 = vmatpush2.bf16.msra.mxu0 0
      %1015 = vmatprep.subr.bf16.mxu0 0
      %1016 = vmatpush2.bf16.msra.mxu0 0
      %1017 = vmatprep.mubr.bf16.mxu0 0
      %1018 = vmatmul.mubr.bf16.gmra.mxu0 %v779
      %v1019 = vpop.f32.mrf.mxu0
      %v1020 = vadd.f32 %v955, %v1019
      %v1021 = vpop.f32.mrf.mxu0
      %v1022 = vpop.f32.mrf.mxu0
      %v1023 = vadd.f32 %v958, %v1022
      %v1024 = vpop.f32.mrf.mxu0
      %1025 = vmatprep.mubr.bf16.mxu0 0
      %1026 = vmatmul.mubr.bf16.gmra.mxu0 %v782
      %v1027 = vpop.f32.mrf.mxu0
      %v1028 = vadd.f32 %v963, %v1027
      %v1029 = vpop.f32.mrf.mxu0
      %v1030 = vpop.f32.mrf.mxu0
      %v1031 = vadd.f32 %v966, %v1030
      %v1032 = vpop.f32.mrf.mxu0
      %1033 = vmatprep.mubr.bf16.mxu0 0
      %1034 = vmatmul.mubr.bf16.gmra.mxu0 %v785
      %v1035 = vpop.f32.mrf.mxu0
      %v1036 = vadd.f32 %v971, %v1035
      %v1037 = vpop.f32.mrf.mxu0
      %v1038 = vpop.f32.mrf.mxu0
      %v1039 = vadd.f32 %v974, %v1038
      %v1040 = vpop.f32.mrf.mxu0
      %1041 = vmatprep.mubr.bf16.mxu0 0
      %1042 = vmatmul.mubr.bf16.gmra.mxu0 %v788
      %v1043 = vpop.f32.mrf.mxu0
      %v1044 = vadd.f32 %v979, %v1043
      %v1045 = vpop.f32.mrf.mxu0
      %v1046 = vpop.f32.mrf.mxu0
      %v1047 = vadd.f32 %v982, %v1046
      %v1048 = vpop.f32.mrf.mxu0
      %1049 = vdwg.mxu0
      %vm1050 = vcmask 64512
      %v1051 = vsel %vm1050, %v1020, 0.0
      %1052 = vadd.xlane.f32.xlu0 %v1051
      %v1053 = vpop.xlane.xlu0 %1052
      %v1054 = vsel %vm1050, %v1023, 0.0
      %1055 = vadd.xlane.f32.xlu0 %v1054
      %v1056 = vpop.xlane.xlu0 %1055
      %v1057 = vsel %vm1050, %v1028, 0.0
      %1058 = vadd.xlane.f32.xlu0 %v1057
      %v1059 = vpop.xlane.xlu0 %1058
      %v1060 = vsel %vm1050, %v1031, 0.0
      %1061 = vadd.xlane.f32.xlu0 %v1060
      %v1062 = vpop.xlane.xlu0 %1061
      %v1063 = vsel %vm1050, %v1036, 0.0
      %1064 = vadd.xlane.f32.xlu0 %v1063
      %v1065 = vpop.xlane.xlu0 %1064
      %v1066 = vsel %vm1050, %v1039, 0.0
      %1067 = vadd.xlane.f32.xlu0 %v1066
      %v1068 = vpop.xlane.xlu0 %1067
      %v1069 = vsel %vm1050, %v1044, 0.0
      %1070 = vadd.xlane.f32.xlu0 %v1069
      %v1071 = vpop.xlane.xlu0 %1070
      %v1072 = vsel %vm1050, %v1047, 0.0
      %1073 = vadd.xlane.f32.xlu0 %v1072
      %v1074 = vpop.xlane.xlu0 %1073
      %v1075 = vrcp.pop 8.0
      %v1076 = vmul.f32 %v1053, %v1075
      %v1077 = vmul.f32 %v1056, %v1075
      %v1078 = vmul.f32 %v1059, %v1075
      %v1079 = vmul.f32 %v1062, %v1075
      %v1080 = vmul.f32 %v1065, %v1075
      %v1081 = vmul.f32 %v1068, %v1075
      %v1082 = vmul.f32 %v1071, %v1075
      %v1083 = vmul.f32 %v1074, %v1075
      %v1084 = vsub.f32 %v1020, %v1076
      %v1085 = vsub.f32 %v1023, %v1077
      %v1086 = vsub.f32 %v1028, %v1078
      %v1087 = vsub.f32 %v1031, %v1079
      %v1088 = vsub.f32 %v1036, %v1080
      %v1089 = vsub.f32 %v1039, %v1081
      %v1090 = vsub.f32 %v1044, %v1082
      %v1091 = vsub.f32 %v1047, %v1083
      %v1092 = vmul.f32 %v1084, %v1084
      %v1093 = vmul.f32 %v1085, %v1085
      %v1094 = vmul.f32 %v1086, %v1086
      %v1095 = vmul.f32 %v1087, %v1087
      %v1096 = vmul.f32 %v1088, %v1088
      %v1097 = vmul.f32 %v1089, %v1089
      %v1098 = vmul.f32 %v1090, %v1090
      %v1099 = vmul.f32 %v1091, %v1091
      %v1100 = vsel %vm1050, %v1092, 0.0
      %1101 = vadd.xlane.f32.xlu0 %v1100
      %v1102 = vpop.xlane.xlu0 %1101
      %v1103 = vsel %vm1050, %v1093, 0.0
      %1104 = vadd.xlane.f32.xlu0 %v1103
      %v1105 = vpop.xlane.xlu0 %1104
      %v1106 = vsel %vm1050, %v1094, 0.0
      %1107 = vadd.xlane.f32.xlu0 %v1106
      %v1108 = vpop.xlane.xlu0 %1107
      %v1109 = vsel %vm1050, %v1095, 0.0
      %1110 = vadd.xlane.f32.xlu0 %v1109
      %v1111 = vpop.xlane.xlu0 %1110
      %v1112 = vsel %vm1050, %v1096, 0.0
      %1113 = vadd.xlane.f32.xlu0 %v1112
      %v1114 = vpop.xlane.xlu0 %1113
      %v1115 = vsel %vm1050, %v1097, 0.0
      %1116 = vadd.xlane.f32.xlu0 %v1115
      %v1117 = vpop.xlane.xlu0 %1116
      %v1118 = vsel %vm1050, %v1098, 0.0
      %1119 = vadd.xlane.f32.xlu0 %v1118
      %v1120 = vpop.xlane.xlu0 %1119
      %v1121 = vsel %vm1050, %v1099, 0.0
      %1122 = vadd.xlane.f32.xlu0 %v1121
      %v1123 = vpop.xlane.xlu0 %1122
      %v1124 = vmul.f32 %v1102, %v1075
      %v1125 = vmul.f32 %v1105, %v1075
      %v1126 = vmul.f32 %v1108, %v1075
      %v1127 = vmul.f32 %v1111, %v1075
      %v1128 = vmul.f32 %v1114, %v1075
      %v1129 = vmul.f32 %v1117, %v1075
      %v1130 = vmul.f32 %v1120, %v1075
      %v1131 = vmul.f32 %v1123, %v1075
      %v1132 = vadd.f32 %v1124, 1e-05
      %v1133 = vadd.f32 %v1125, 1e-05
      %v1134 = vadd.f32 %v1126, 1e-05
      %v1135 = vadd.f32 %v1127, 1e-05
      %v1136 = vadd.f32 %v1128, 1e-05
      %v1137 = vadd.f32 %v1129, 1e-05
      %v1138 = vadd.f32 %v1130, 1e-05
      %v1139 = vadd.f32 %v1131, 1e-05
      %v1140 = vrsqrt.pop %v1132
      %v1141 = vrsqrt.pop %v1133
      %v1142 = vrsqrt.pop %v1134
      %v1143 = vrsqrt.pop %v1135
      %v1144 = vrsqrt.pop %v1136
      %v1145 = vrsqrt.pop %v1137
      %v1146 = vrsqrt.pop %v1138
      %v1147 = vrsqrt.pop %v1139
      %v1148 = vmul.f32 %v1084, %v1140
      %v1149 = vmul.f32 %v1085, %v1141
      %v1150 = vmul.f32 %v1086, %v1142
      %v1151 = vmul.f32 %v1087, %v1143
      %v1152 = vmul.f32 %v1088, %v1144
      %v1153 = vmul.f32 %v1089, %v1145
      %v1154 = vmul.f32 %v1090, %v1146
      %v1155 = vmul.f32 %v1091, %v1147
      %s1156 = sld [smem:[#allocation2]]
      %vm1157 = vcmp.gt.f32.partialorder %v1148, 0.0
      %vm1158 = vcmp.gt.f32.partialorder %v1149, 0.0
      %vm1159 = vcmp.gt.f32.partialorder %v1150, 0.0
      %vm1160 = vcmp.gt.f32.partialorder %v1151, 0.0
      %vm1161 = vcmp.gt.f32.partialorder %v1152, 0.0
      %vm1162 = vcmp.gt.f32.partialorder %v1153, 0.0
      %vm1163 = vcmp.gt.f32.partialorder %v1154, 0.0
      %vm1164 = vcmp.gt.f32.partialorder %v1155, 0.0
      %v1165 = vstv %s1156
      %v1166 = vmul.f32 %v1165, %v1148
      %v1167 = vmul.f32 %v1165, %v1149
      %v1168 = vmul.f32 %v1165, %v1150
      %v1169 = vmul.f32 %v1165, %v1151
      %v1170 = vmul.f32 %v1165, %v1152
      %v1171 = vmul.f32 %v1165, %v1153
      %v1172 = vmul.f32 %v1165, %v1154
      %v1173 = vmul.f32 %v1165, %v1155
      %v1174 = vsel %vm1157, %v1148, %v1166
      %v1175 = vsel %vm1158, %v1149, %v1167
      %v1176 = vsel %vm1159, %v1150, %v1168
      %v1177 = vsel %vm1160, %v1151, %v1169
      %v1178 = vsel %vm1161, %v1152, %v1170
      %v1179 = vsel %vm1162, %v1153, %v1171
      %v1180 = vsel %vm1163, %v1154, %v1172
      %v1181 = vsel %vm1164, %v1155, %v1173
      %1182 = vst.msk [vmem:[%s171] sm:$0xff] %vm1050, %v1174
      %1183 = vst.msk [vmem:[%s171 + $0x8] sm:$0xff] %vm1050, %v1175
      %1184 = vst.msk [vmem:[%s171 + $0x10] sm:$0xff] %vm1050, %v1176
      %1185 = vst.msk [vmem:[%s171 + $0x18] sm:$0xff] %vm1050, %v1177
      %1186 = vst.msk [vmem:[%s171 + $0x20] sm:$0xff] %vm1050, %v1178
      %1187 = vst.msk [vmem:[%s171 + $0x28] sm:$0xff] %vm1050, %v1179
      %1188 = vst.msk [vmem:[%s171 + $0x30] sm:$0xff] %vm1050, %v1180
      %1189 = vst.msk [vmem:[%s171 + $0x38] sm:$0xff] %vm1050, %v1181
      %p1190 = scmp.lt.s32.totalorder %s15, 1
      %s1191 = scalar_select %p1190, %s15, 1
      %s1192 = smul.addr %s1191, 8
      %s1193 = smul.addr %s1192, 8
      %s1194 = scalar_lea.vmem %s3, %s1193
      // Predicated region
      $region33: #{_lambda_.9} parent=31 // pred_check
        %p1195 = pneg %p101
      $region34: #{_lambda_.9} parent=31 // pred_check_branch
        %1197 = sbr.rel (%p1195) target = $region36
      $region35: #{_lambda_.9} parent=31 // pred_region
        _
      $region36: #{_lambda_.9} parent=31 // pred_fallthru
        _
    $region32: #{_lambda_.9} parent=5 // pred_fallthru
      _
    %p1198 = scmp.le.s32.totalorder 2, %s10
    // Predicated region
    $region37: #{_lambda_.9} parent=5 // pred_check
      %p1199 = pneg %p1198
    $region38: #{_lambda_.9} parent=5 // pred_check_branch
      %1201 = sbr.rel (%p1199) target = $region40
    $region39: #{_lambda_.9} parent=5 // pred_region
      %s1202 = ssub.s32 %s10, 2
      // Predicated region
      $region41: #{_lambda_.9} parent=39 // pred_check
        %p1203 = pneg %p107
      $region42: #{_lambda_.9} parent=39 // pred_check_branch
        %1205 = sbr.rel (%p1203) target = $region44
      $region43: #{_lambda_.9} parent=39 // pred_region
        %p1206 = scmp.lt.s32.totalorder %s16, 1
        %s1207 = scalar_select %p1206, %s16, 1
        %s1208 = smul.addr %s1207, 8
        %s1209 = smul.addr %s1208, 8
        %s1210 = scalar_lea.vmem %s3, %s1209
      $region44: #{_lambda_.9} parent=39 // pred_fallthru
        _
    $region40: #{_lambda_.9} parent=5 // pred_fallthru
      _
  $region6: #{_lambda_.9} parent=0 // loop_footer
    %s14 = sadd.s32 1, %s10
  $region7: #{_lambda_.9} parent=0 // loop_footer_branch
    %9 = sbr.rel target = $region3
  $region8: #{_lambda_.9} parent=0 // loop_exit
    _

</llo_original>
